<compile_context>
chip_gen: v6e
topology: v6e:2x2x1
jax: 0.10.0
libtpu: 0.0.40
codegen_flags: <defaults>
</compile_context>

<pallas_src>
import functools

import numpy as np
import jax
import jax.numpy as jnp
from jax.experimental import pallas as pl
from jax.experimental.pallas import tpu as pltpu


IN_CH = 4
WIDTHS = (32, 64, 128, 256)   # c1..c4 channels (representative, lane-friendly)
EMBED = 128                    # decode-head embedding dim
NUM_CLASSES = 4

_BF16 = jnp.bfloat16
_F32 = jnp.float32


# --------------------------------------------------------------------------- #
# Trace-time constants: token permutations & 0/1 nearest-upsample matrices.
# The backbone tokens are kept in a parity-grouped ("Morton-like") order so that
# each stage's 2x2 patch merge reads 4 CONTIGUOUS row blocks of the previous
# activation inside the kernel (no layout shuffles on TPU).
# --------------------------------------------------------------------------- #
def _parent_order(child_order, child_w, parent_w):
    """Row order of the parent-stage tokens: 4 parity groups, each in child order."""
    ci, cj = child_order // child_w, child_order % child_w
    groups = [(2 * ci + a) * parent_w + (2 * cj + b)
              for a in (0, 1) for b in (0, 1)]
    return np.concatenate(groups)


def _parent_gather(child_order, child_w, parent_w):
    """(n_child, 4) flat parent indices (ee, eo, oe, oo) per child token."""
    ci, cj = child_order // child_w, child_order % child_w
    cols = [(2 * ci + a) * parent_w + (2 * cj + b)
            for a in (0, 1) for b in (0, 1)]
    return np.stack(cols, axis=1)


def _nearest_src_flat(hd, wd, hs, ws):
    ry = (np.arange(hd) * hs) // hd
    rx = (np.arange(wd) * ws) // wd
    return (ry[:, None] * ws + rx[None, :]).reshape(-1)


def _up_matrix_perm(hd, wd, hs, ws, dest_order, src_order):
    """0/1 nearest-upsample matrix (len(dest_order), len(src_order)) with the
    given row/column token orderings baked in."""
    src_flat = _nearest_src_flat(hd, wd, hs, ws)[dest_order]
    inv_src = np.argsort(src_order)
    src_rows = inv_src[src_flat]
    return (src_rows[:, None] == np.arange(len(src_order))[None, :]).astype(np.float32)


# --------------------------------------------------------------------------- #
# The single fused forward kernel (one grid step per batch element).
# --------------------------------------------------------------------------- #
def _fused_forward_kernel(
        x0_ref,
        w0_ref, b0_ref, w1_ref, b1_ref, w2_ref, b2_ref, w3_ref, b3_ref,
        wqkv_ref, bqkv_ref, wproj_ref, bproj_ref,
        wh1_ref, wh2_ref, wh3_ref, wh4_ref, bfuse_ref,
        clswt_ref, clsb_ref,
        u2_ref, u3_ref, u4_ref, uft_ref,
        o_ref,
        *, sizes, widths, scale):
    S1, S2, S3, S4 = sizes
    C1, C2, C3, C4 = widths

    def merge_stage(groups, w_ref, b_ref, cin):
        # GELU( sum_g groups[g] @ W[g*cin:(g+1)*cin] + b ); groups are the four
        # parity row-blocks of the previous stage (rows pre-permuted so blocks
        # are contiguous).  bf16 MXU operands, f32 accumulation.
        acc = jnp.dot(groups[0].astype(_BF16), w_ref[0:cin, :],
                      preferred_element_type=_F32)
        for g in range(1, 4):
            acc = acc + jnp.dot(groups[g].astype(_BF16),
                                w_ref[g * cin:(g + 1) * cin, :],
                                preferred_element_type=_F32)
        # NOTE: tanh-approx GELU (jax.nn.gelu default); PyTorch nn.GELU defaults
        # to exact erf -- acceptable for this representative architecture.
        return jax.nn.gelu(acc + b_ref[...])

    # -------------------- backbone: 4 fused patch-merge stages ----------------
    x0 = x0_ref[0]                                                   # (S1, 4*Cin)
    c1 = jax.nn.gelu(jnp.dot(x0, w0_ref[...], preferred_element_type=_F32)
                     + b0_ref[...])                                   # (S1, C1) f32
    c2 = merge_stage([c1[0:S2], c1[S2:2 * S2],
                      c1[2 * S2:3 * S2], c1[3 * S2:4 * S2]],
                     w1_ref, b1_ref, C1)                              # (S2, C2)
    c3 = merge_stage([c2[0:S3], c2[S3:2 * S3],
                      c2[2 * S3:3 * S3], c2[3 * S3:4 * S3]],
                     w2_ref, b2_ref, C2)                              # (S3, C3)
    # The S4-row groups sit at sublane offsets {0,4,8,12}; one roll keeps every
    # static slice start 8-aligned (offsets 0 / 8 only).
    c3r = pltpu.roll(c3, shift=3 * S4, axis=0)
    c4 = merge_stage([c3[0:S4], c3r[0:S4],
                      c3[2 * S4:3 * S4], c3r[2 * S4:3 * S4]],
                     w3_ref, b3_ref, C3)                              # (S4, C4) f32

    c1b, c2b, c3b, c4b = [t.astype(_BF16) for t in (c1, c2, c3, c4)]

    # -------------------- transformer: fused self-attention on c4 -------------
    qkv = jnp.dot(c4b, wqkv_ref[...], preferred_element_type=_F32) + bqkv_ref[...]
    q = qkv[:, 0:C4].astype(_BF16)
    k = qkv[:, C4:2 * C4].astype(_BF16)
    v = qkv[:, 2 * C4:3 * C4].astype(_BF16)
    s = jax.lax.dot_general(q, k, (((1,), (1,)), ((), ())),
                            preferred_element_type=_F32) * scale      # (S4, S4)
    s = s - jnp.max(s, axis=-1, keepdims=True)
    p = jnp.exp(s)
    # approx reciprocal (EUP slot): ~1e-2 rel. error on attn probs, inference-ok.
    p = p * pl.reciprocal(jnp.sum(p, axis=-1, keepdims=True), approx=True)
    att = jnp.dot(p.astype(_BF16), v, preferred_element_type=_F32)    # (S4, C4)
    att = jnp.dot(att.astype(_BF16), wproj_ref[...],
                  preferred_element_type=_F32) + bproj_ref[...]
    t4 = c4 + att                                                     # residual
    t4b = t4.astype(_BF16)

    # -------------------- fused decode head (computed transposed) -------------
    acc = jnp.dot(c1b, wh1_ref[...], preferred_element_type=_F32)     # (S1, E)
    p2 = jnp.dot(c2b, wh2_ref[...], preferred_element_type=_F32).astype(_BF16)
    acc = acc + jnp.dot(u2_ref[...], p2, preferred_element_type=_F32)
    p3 = jnp.dot(c3b, wh3_ref[...], preferred_element_type=_F32).astype(_BF16)
    acc = acc + jnp.dot(u3_ref[...], p3, preferred_element_type=_F32)
    p4 = jnp.dot(t4b, wh4_ref[...], preferred_element_type=_F32).astype(_BF16)
    acc = acc + jnp.dot(u4_ref[...], p4, preferred_element_type=_F32)
    feat = jnp.maximum(acc + bfuse_ref[...], 0.0).astype(_BF16)        # ReLU (S1, E)
    # logits transposed -> (NC, S1); final store is (NC, h*w): lane-dense and
    # already NCHW, so no wrapper transpose is needed.
    lg = jax.lax.dot_general(clswt_ref[...], feat, (((1,), (1,)), ((), ())),
                             preferred_element_type=_F32) + clsb_ref[...]
    o_ref[0] = jnp.dot(lg.astype(_BF16), uft_ref[...],
                       preferred_element_type=_F32)                    # (NC, h*w)


# --------------------------------------------------------------------------- #
# Parameters (deterministic, in-script).  Weights bf16, biases f32.
# --------------------------------------------------------------------------- #
def _dense_init(key, fan_in, fan_out):
    kw, kb = jax.random.split(key)
    w = (jax.random.normal(kw, (fan_in, fan_out), _F32) / fan_in ** 0.5).astype(_BF16)
    b = jax.random.normal(kb, (fan_out,), _F32) * 0.01
    return w, b


def init_params(key):
    params = {}
    keys = iter(jax.random.split(key, 16))
    cin = IN_CH
    for i, cout in enumerate(WIDTHS):
        w, b = _dense_init(next(keys), 4 * cin, cout)   # 2x2 patch -> 4*cin
        params[f"patch{i}_w"] = w
        params[f"patch{i}_b"] = b
        cin = cout
    c4 = WIDTHS[-1]
    params["qkv_w"], params["qkv_b"] = _dense_init(next(keys), c4, 3 * c4)
    params["proj_w"], params["proj_b"] = _dense_init(next(keys), c4, c4)
    for i, ci in enumerate(WIDTHS):
        params[f"head{i}_w"], params[f"head{i}_b"] = _dense_init(next(keys), ci, EMBED)
    params["fuse_w"], params["fuse_b"] = _dense_init(next(keys), 4 * EMBED, EMBED)
    params["cls_w"], params["cls_b"] = _dense_init(next(keys), EMBED, NUM_CLASSES)
    return params


# --------------------------------------------------------------------------- #
# Forward pass (mirrors ModelBuilder.forward) — one pallas_call total.
# --------------------------------------------------------------------------- #
def model_forward(params, x_nchw):
    B, cin, H, W = x_nchw.shape
    h, w = H, W                                    # matches `h, w = x.shape[-2:]`
    assert H % 16 == 0 and W % 16 == 0, "4 stride-2 stages need /16 spatial dims"

    H1, W1 = H // 2, W // 2
    H2, W2 = H // 4, W // 4
    H3, W3 = H // 8, W // 8
    H4, W4 = H // 16, W // 16
    S1, S2, S3, S4 = H1 * W1, H2 * W2, H3 * W3, H4 * W4
    Sf = h * w
    E, NC = EMBED, NUM_CLASSES
    C1, C2, C3, C4 = WIDTHS

    # ---- constants: parity token ordering + 0/1 upsample matrices (bf16) -----
    pi4 = np.arange(S4)                      # c4 rows in row-major 2x2 order
    pi3 = _parent_order(pi4, W4, W3)
    pi2 = _parent_order(pi3, W3, W2)
    pi1 = _parent_order(pi2, W2, W1)
    idx0 = _parent_gather(pi1, W1, W)        # (S1, 4) input-pixel gather

    u2 = jnp.asarray(_up_matrix_perm(H1, W1, H2, W2, pi1, pi2), dtype=_BF16)
    u3 = jnp.asarray(_up_matrix_perm(H1, W1, H3, W3, pi1, pi3), dtype=_BF16)
    u4 = jnp.asarray(_up_matrix_perm(H1, W1, H4, W4, pi1, pi4), dtype=_BF16)
    uf_t = jnp.asarray(_up_matrix_perm(h, w, H1, W1, np.arange(Sf), pi1).T,
                       dtype=_BF16)          # (S1, Sf), pre-transposed
    # TODO(synk): uf_t is O(h*w*S1); at realistic resolutions replace the final
    # resize-by-matmul with a wrapper-side / VPU nearest upsample.

    # ---- stage-1 tokens: 2x2 patch concat along K, rows already in pi1 order --
    x_flat = jnp.transpose(x_nchw, (0, 2, 3, 1)).reshape(B, H * W, cin)
    gather = jnp.asarray(idx0.reshape(-1).astype(np.int32))
    x0 = jnp.take(x_flat, gather, axis=1).reshape(B, S1, 4 * cin).astype(_BF16)

    # ---- fold head_i weights/biases into the fuse slices (tiny offline math) --
    fw = params["fuse_w"].astype(_F32)
    w_fold, b_fused = [], params["fuse_b"].astype(_F32)
    for i in range(4):
        fwi = fw[i * E:(i + 1) * E]
        w_fold.append(jnp.dot(params[f"head{i}_w"].astype(_F32), fwi).astype(_BF16))
        b_fused = b_fused + jnp.dot(params[f"head{i}_b"], fwi)

    clsw_t = jnp.transpose(params["cls_w"]).astype(_BF16)      # (NC, E)
    clsb = params["cls_b"].astype(_F32).reshape(NC, 1)
    scale = 1.0 / float(C4) ** 0.5

    operands = [
        x0,
        params["patch0_w"], params["patch0_b"].reshape(1, C1),
        params["patch1_w"], params["patch1_b"].reshape(1, C2),
        params["patch2_w"], params["patch2_b"].reshape(1, C3),
        params["patch3_w"], params["patch3_b"].reshape(1, C4),
        params["qkv_w"], params["qkv_b"].reshape(1, 3 * C4),
        params["proj_w"], params["proj_b"].reshape(1, C4),
        w_fold[0], w_fold[1], w_fold[2], w_fold[3],
        b_fused.reshape(1, E),
        clsw_t, clsb,
        u2, u3, u4, uf_t,
    ]

    in_specs = [pl.BlockSpec((1, S1, 4 * cin), lambda b: (b, 0, 0))]
    for op in operands[1:]:                   # weight/constant blocks: batch-invariant
        in_specs.append(pl.BlockSpec(op.shape, lambda b: (0, 0)))

    out = pl.pallas_call(
        functools.partial(_fused_forward_kernel,
                          sizes=(S1, S2, S3, S4), widths=WIDTHS, scale=scale),
        out_shape=jax.ShapeDtypeStruct((B, NC, Sf), _F32),
        grid_spec=pltpu.PrefetchScalarGridSpec(
            num_scalar_prefetch=0,
            grid=(B,),
            in_specs=in_specs,
            out_specs=pl.BlockSpec((1, NC, Sf), lambda b: (b, 0, 0)),
        ),
        compiler_params=pltpu.CompilerParams(
            dimension_semantics=("parallel",)),
    )(*operands)

    return out.reshape(B, NC, h, w)            # already NCHW; no transpose needed

# TODO(synk): the original ModelBuilder chooses backbone/transformer classes at
# runtime via importlib from a config dict; that dynamic dispatch has no Pallas
# equivalent, so a fixed representative architecture is instantiated above.


if __name__ == "__main__":
    key = jax.random.PRNGKey(0)
    k_x, k_p = jax.random.split(key)
    x = jax.random.normal(k_x, (2, IN_CH, 32, 32), _F32)    # NCHW, like PyTorch
    params = init_params(k_p)

    fwd = jax.jit(model_forward)
    out = fwd(params, x)
    jax.block_until_ready(out)
    assert out.shape == (2, NUM_CLASSES, 32, 32), out.shape
    print("KERNEL_OK")
</pallas_src>

<mosaic_0001>
module attributes {stable_mosaic.version = 11 : i64} {
  func.func @_fused_forward_kernel(%arg0: i32, %arg1: memref<1x256x16xbf16, #tpu.memory_space<vmem>>, %arg2: memref<16x32xbf16, #tpu.memory_space<vmem>>, %arg3: memref<1x32xf32, #tpu.memory_space<vmem>>, %arg4: memref<128x64xbf16, #tpu.memory_space<vmem>>, %arg5: memref<1x64xf32, #tpu.memory_space<vmem>>, %arg6: memref<256x128xbf16, #tpu.memory_space<vmem>>, %arg7: memref<1x128xf32, #tpu.memory_space<vmem>>, %arg8: memref<512x256xbf16, #tpu.memory_space<vmem>>, %arg9: memref<1x256xf32, #tpu.memory_space<vmem>>, %arg10: memref<256x768xbf16, #tpu.memory_space<vmem>>, %arg11: memref<1x768xf32, #tpu.memory_space<vmem>>, %arg12: memref<256x256xbf16, #tpu.memory_space<vmem>>, %arg13: memref<1x256xf32, #tpu.memory_space<vmem>>, %arg14: memref<32x128xbf16, #tpu.memory_space<vmem>>, %arg15: memref<64x128xbf16, #tpu.memory_space<vmem>>, %arg16: memref<128x128xbf16, #tpu.memory_space<vmem>>, %arg17: memref<256x128xbf16, #tpu.memory_space<vmem>>, %arg18: memref<1x128xf32, #tpu.memory_space<vmem>>, %arg19: memref<4x128xbf16, #tpu.memory_space<vmem>>, %arg20: memref<4x1xf32, #tpu.memory_space<vmem>>, %arg21: memref<256x64xbf16, #tpu.memory_space<vmem>>, %arg22: memref<256x16xbf16, #tpu.memory_space<vmem>>, %arg23: memref<256x4xbf16, #tpu.memory_space<vmem>>, %arg24: memref<256x1024xbf16, #tpu.memory_space<vmem>>, %arg25: memref<1x4x1024xf32, #tpu.memory_space<vmem>>) attributes {dimension_semantics = [#tpu.dimension_semantics<parallel>], iteration_bounds = array<i64: 2>, scalar_prefetch = 0 : i64, scratch_operands = 0 : i64, tpu.core_type = #tpu.core_type<tc>, window_params = [{transform_indices = @transform_0, window_bounds = array<i64: 1, 256, 16>}, {pipeline_mode = #tpu.pipeline_mode<synchronous>, transform_indices = @transform_1, window_bounds = array<i64: 16, 32>}, {pipeline_mode = #tpu.pipeline_mode<synchronous>, transform_indices = @transform_2, window_bounds = array<i64: 1, 32>}, {pipeline_mode = #tpu.pipeline_mode<synchronous>, transform_indices = @transform_3, window_bounds = array<i64: 128, 64>}, {pipeline_mode = #tpu.pipeline_mode<synchronous>, transform_indices = @transform_4, window_bounds = array<i64: 1, 64>}, {pipeline_mode = #tpu.pipeline_mode<synchronous>, transform_indices = @transform_5, window_bounds = array<i64: 256, 128>}, {pipeline_mode = #tpu.pipeline_mode<synchronous>, transform_indices = @transform_6, window_bounds = array<i64: 1, 128>}, {pipeline_mode = #tpu.pipeline_mode<synchronous>, transform_indices = @transform_7, window_bounds = array<i64: 512, 256>}, {pipeline_mode = #tpu.pipeline_mode<synchronous>, transform_indices = @transform_8, window_bounds = array<i64: 1, 256>}, {pipeline_mode = #tpu.pipeline_mode<synchronous>, transform_indices = @transform_9, window_bounds = array<i64: 256, 768>}, {pipeline_mode = #tpu.pipeline_mode<synchronous>, transform_indices = @transform_10, window_bounds = array<i64: 1, 768>}, {pipeline_mode = #tpu.pipeline_mode<synchronous>, transform_indices = @transform_11, window_bounds = array<i64: 256, 256>}, {pipeline_mode = #tpu.pipeline_mode<synchronous>, transform_indices = @transform_12, window_bounds = array<i64: 1, 256>}, {pipeline_mode = #tpu.pipeline_mode<synchronous>, transform_indices = @transform_13, window_bounds = array<i64: 32, 128>}, {pipeline_mode = #tpu.pipeline_mode<synchronous>, transform_indices = @transform_14, window_bounds = array<i64: 64, 128>}, {pipeline_mode = #tpu.pipeline_mode<synchronous>, transform_indices = @transform_15, window_bounds = array<i64: 128, 128>}, {pipeline_mode = #tpu.pipeline_mode<synchronous>, transform_indices = @transform_16, window_bounds = array<i64: 256, 128>}, {pipeline_mode = #tpu.pipeline_mode<synchronous>, transform_indices = @transform_17, window_bounds = array<i64: 1, 128>}, {pipeline_mode = #tpu.pipeline_mode<synchronous>, transform_indices = @transform_18, window_bounds = array<i64: 4, 128>}, {pipeline_mode = #tpu.pipeline_mode<synchronous>, transform_indices = @transform_19, window_bounds = array<i64: 4, 1>}, {pipeline_mode = #tpu.pipeline_mode<synchronous>, transform_indices = @transform_20, window_bounds = array<i64: 256, 64>}, {pipeline_mode = #tpu.pipeline_mode<synchronous>, transform_indices = @transform_21, window_bounds = array<i64: 256, 16>}, {pipeline_mode = #tpu.pipeline_mode<synchronous>, transform_indices = @transform_22, window_bounds = array<i64: 256, 4>}, {pipeline_mode = #tpu.pipeline_mode<synchronous>, transform_indices = @transform_23, window_bounds = array<i64: 256, 1024>}, {transform_indices = @transform_24, window_bounds = array<i64: 1, 4, 1024>}]} {
    %c0 = arith.constant 0 : index
    %c0_0 = arith.constant 0 : index
    %c0_1 = arith.constant 0 : index
    %0 = vector.load %arg1[%c0, %c0_0, %c0_1] : memref<1x256x16xbf16, #tpu.memory_space<vmem>>, vector<1x256x16xbf16>
    %1 = vector.shape_cast %0 : vector<1x256x16xbf16> to vector<256x16xbf16>
    %c0_2 = arith.constant 0 : index
    %c0_3 = arith.constant 0 : index
    %2 = vector.load %arg2[%c0_2, %c0_3] : memref<16x32xbf16, #tpu.memory_space<vmem>>, vector<16x32xbf16>
    %cst = arith.constant dense<0.000000e+00> : vector<256x32xf32>
    %3 = tpu.matmul %1, %2, %cst {dimension_numbers = #tpu.dot_dimension_numbers<[1], [0], [0], [1], [0, 0, 1, 1], [], []>} : vector<256x16xbf16>, vector<16x32xbf16>, vector<256x32xf32> -> vector<256x32xf32>
    %c0_4 = arith.constant 0 : index
    %c0_5 = arith.constant 0 : index
    %4 = vector.load %arg3[%c0_4, %c0_5] : memref<1x32xf32, #tpu.memory_space<vmem>>, vector<1x32xf32>
    %5 = vector.broadcast %4 : vector<1x32xf32> to vector<256x32xf32>
    %6 = arith.addf %3, %5 : vector<256x32xf32>
    %7 = arith.mulf %6, %6 : vector<256x32xf32>
    %8 = arith.mulf %6, %7 : vector<256x32xf32>
    %cst_6 = arith.constant 4.471500e-02 : f32
    %9 = vector.broadcast %cst_6 : f32 to vector<256x32xf32>
    %10 = arith.mulf %9, %8 : vector<256x32xf32>
    %11 = arith.addf %6, %10 : vector<256x32xf32>
    %cst_7 = arith.constant 0.797884583 : f32
    %12 = vector.broadcast %cst_7 : f32 to vector<256x32xf32>
    %13 = arith.mulf %12, %11 : vector<256x32xf32>
    %14 = math.tanh %13 : vector<256x32xf32>
    %cst_8 = arith.constant 1.000000e+00 : f32
    %15 = vector.broadcast %cst_8 : f32 to vector<256x32xf32>
    %16 = arith.addf %15, %14 : vector<256x32xf32>
    %cst_9 = arith.constant 5.000000e-01 : f32
    %17 = vector.broadcast %cst_9 : f32 to vector<256x32xf32>
    %18 = arith.mulf %17, %16 : vector<256x32xf32>
    %19 = arith.mulf %6, %18 : vector<256x32xf32>
    %20 = vector.extract_strided_slice %19 {offsets = [0, 0], sizes = [64, 32], strides = [1, 1]} : vector<256x32xf32> to vector<64x32xf32>
    %21 = vector.extract_strided_slice %19 {offsets = [64, 0], sizes = [64, 32], strides = [1, 1]} : vector<256x32xf32> to vector<64x32xf32>
    %22 = vector.extract_strided_slice %19 {offsets = [128, 0], sizes = [64, 32], strides = [1, 1]} : vector<256x32xf32> to vector<64x32xf32>
    %23 = vector.extract_strided_slice %19 {offsets = [192, 0], sizes = [64, 32], strides = [1, 1]} : vector<256x32xf32> to vector<64x32xf32>
    %24 = arith.truncf %20 : vector<64x32xf32> to vector<64x32xbf16>
    %c0_10 = arith.constant 0 : index
    %c0_11 = arith.constant 0 : index
    %25 = vector.load %arg4[%c0_10, %c0_11] : memref<128x64xbf16, #tpu.memory_space<vmem>>, vector<32x64xbf16>
    %cst_12 = arith.constant dense<0.000000e+00> : vector<64x64xf32>
    %26 = tpu.matmul %24, %25, %cst_12 {dimension_numbers = #tpu.dot_dimension_numbers<[1], [0], [0], [1], [0, 0, 1, 1], [], []>} : vector<64x32xbf16>, vector<32x64xbf16>, vector<64x64xf32> -> vector<64x64xf32>
    %27 = arith.truncf %21 : vector<64x32xf32> to vector<64x32xbf16>
    %c32 = arith.constant 32 : index
    %c0_13 = arith.constant 0 : index
    %28 = vector.load %arg4[%c32, %c0_13] : memref<128x64xbf16, #tpu.memory_space<vmem>>, vector<32x64xbf16>
    %cst_14 = arith.constant dense<0.000000e+00> : vector<64x64xf32>
    %29 = tpu.matmul %27, %28, %cst_14 {dimension_numbers = #tpu.dot_dimension_numbers<[1], [0], [0], [1], [0, 0, 1, 1], [], []>} : vector<64x32xbf16>, vector<32x64xbf16>, vector<64x64xf32> -> vector<64x64xf32>
    %30 = arith.addf %26, %29 : vector<64x64xf32>
    %31 = arith.truncf %22 : vector<64x32xf32> to vector<64x32xbf16>
    %c64 = arith.constant 64 : index
    %c0_15 = arith.constant 0 : index
    %32 = vector.load %arg4[%c64, %c0_15] : memref<128x64xbf16, #tpu.memory_space<vmem>>, vector<32x64xbf16>
    %cst_16 = arith.constant dense<0.000000e+00> : vector<64x64xf32>
    %33 = tpu.matmul %31, %32, %cst_16 {dimension_numbers = #tpu.dot_dimension_numbers<[1], [0], [0], [1], [0, 0, 1, 1], [], []>} : vector<64x32xbf16>, vector<32x64xbf16>, vector<64x64xf32> -> vector<64x64xf32>
    %34 = arith.addf %30, %33 : vector<64x64xf32>
    %35 = arith.truncf %23 : vector<64x32xf32> to vector<64x32xbf16>
    %c96 = arith.constant 96 : index
    %c0_17 = arith.constant 0 : index
    %36 = vector.load %arg4[%c96, %c0_17] : memref<128x64xbf16, #tpu.memory_space<vmem>>, vector<32x64xbf16>
    %cst_18 = arith.constant dense<0.000000e+00> : vector<64x64xf32>
    %37 = tpu.matmul %35, %36, %cst_18 {dimension_numbers = #tpu.dot_dimension_numbers<[1], [0], [0], [1], [0, 0, 1, 1], [], []>} : vector<64x32xbf16>, vector<32x64xbf16>, vector<64x64xf32> -> vector<64x64xf32>
    %38 = arith.addf %34, %37 : vector<64x64xf32>
    %c0_19 = arith.constant 0 : index
    %c0_20 = arith.constant 0 : index
    %39 = vector.load %arg5[%c0_19, %c0_20] : memref<1x64xf32, #tpu.memory_space<vmem>>, vector<1x64xf32>
    %40 = vector.broadcast %39 : vector<1x64xf32> to vector<64x64xf32>
    %41 = arith.addf %38, %40 : vector<64x64xf32>
    %42 = arith.mulf %41, %41 : vector<64x64xf32>
    %43 = arith.mulf %41, %42 : vector<64x64xf32>
    %cst_21 = arith.constant 4.471500e-02 : f32
    %44 = vector.broadcast %cst_21 : f32 to vector<64x64xf32>
    %45 = arith.mulf %44, %43 : vector<64x64xf32>
    %46 = arith.addf %41, %45 : vector<64x64xf32>
    %cst_22 = arith.constant 0.797884583 : f32
    %47 = vector.broadcast %cst_22 : f32 to vector<64x64xf32>
    %48 = arith.mulf %47, %46 : vector<64x64xf32>
    %49 = math.tanh %48 : vector<64x64xf32>
    %cst_23 = arith.constant 1.000000e+00 : f32
    %50 = vector.broadcast %cst_23 : f32 to vector<64x64xf32>
    %51 = arith.addf %50, %49 : vector<64x64xf32>
    %cst_24 = arith.constant 5.000000e-01 : f32
    %52 = vector.broadcast %cst_24 : f32 to vector<64x64xf32>
    %53 = arith.mulf %52, %51 : vector<64x64xf32>
    %54 = arith.mulf %41, %53 : vector<64x64xf32>
    %55 = vector.extract_strided_slice %54 {offsets = [0, 0], sizes = [16, 64], strides = [1, 1]} : vector<64x64xf32> to vector<16x64xf32>
    %56 = vector.extract_strided_slice %54 {offsets = [16, 0], sizes = [16, 64], strides = [1, 1]} : vector<64x64xf32> to vector<16x64xf32>
    %57 = vector.extract_strided_slice %54 {offsets = [32, 0], sizes = [16, 64], strides = [1, 1]} : vector<64x64xf32> to vector<16x64xf32>
    %58 = vector.extract_strided_slice %54 {offsets = [48, 0], sizes = [16, 64], strides = [1, 1]} : vector<64x64xf32> to vector<16x64xf32>
    %59 = arith.truncf %55 : vector<16x64xf32> to vector<16x64xbf16>
    %c0_25 = arith.constant 0 : index
    %c0_26 = arith.constant 0 : index
    %60 = vector.load %arg6[%c0_25, %c0_26] : memref<256x128xbf16, #tpu.memory_space<vmem>>, vector<64x128xbf16>
    %cst_27 = arith.constant dense<0.000000e+00> : vector<16x128xf32>
    %61 = tpu.matmul %59, %60, %cst_27 {dimension_numbers = #tpu.dot_dimension_numbers<[1], [0], [0], [1], [0, 0, 1, 1], [], []>} : vector<16x64xbf16>, vector<64x128xbf16>, vector<16x128xf32> -> vector<16x128xf32>
    %62 = arith.truncf %56 : vector<16x64xf32> to vector<16x64xbf16>
    %c64_28 = arith.constant 64 : index
    %c0_29 = arith.constant 0 : index
    %63 = vector.load %arg6[%c64_28, %c0_29] : memref<256x128xbf16, #tpu.memory_space<vmem>>, vector<64x128xbf16>
    %cst_30 = arith.constant dense<0.000000e+00> : vector<16x128xf32>
    %64 = tpu.matmul %62, %63, %cst_30 {dimension_numbers = #tpu.dot_dimension_numbers<[1], [0], [0], [1], [0, 0, 1, 1], [], []>} : vector<16x64xbf16>, vector<64x128xbf16>, vector<16x128xf32> -> vector<16x128xf32>
    %65 = arith.addf %61, %64 : vector<16x128xf32>
    %66 = arith.truncf %57 : vector<16x64xf32> to vector<16x64xbf16>
    %c128 = arith.constant 128 : index
    %c0_31 = arith.constant 0 : index
    %67 = vector.load %arg6[%c128, %c0_31] : memref<256x128xbf16, #tpu.memory_space<vmem>>, vector<64x128xbf16>
    %cst_32 = arith.constant dense<0.000000e+00> : vector<16x128xf32>
    %68 = tpu.matmul %66, %67, %cst_32 {dimension_numbers = #tpu.dot_dimension_numbers<[1], [0], [0], [1], [0, 0, 1, 1], [], []>} : vector<16x64xbf16>, vector<64x128xbf16>, vector<16x128xf32> -> vector<16x128xf32>
    %69 = arith.addf %65, %68 : vector<16x128xf32>
    %70 = arith.truncf %58 : vector<16x64xf32> to vector<16x64xbf16>
    %c192 = arith.constant 192 : index
    %c0_33 = arith.constant 0 : index
    %71 = vector.load %arg6[%c192, %c0_33] : memref<256x128xbf16, #tpu.memory_space<vmem>>, vector<64x128xbf16>
    %cst_34 = arith.constant dense<0.000000e+00> : vector<16x128xf32>
    %72 = tpu.matmul %70, %71, %cst_34 {dimension_numbers = #tpu.dot_dimension_numbers<[1], [0], [0], [1], [0, 0, 1, 1], [], []>} : vector<16x64xbf16>, vector<64x128xbf16>, vector<16x128xf32> -> vector<16x128xf32>
    %73 = arith.addf %69, %72 : vector<16x128xf32>
    %c0_35 = arith.constant 0 : index
    %c0_36 = arith.constant 0 : index
    %74 = vector.load %arg7[%c0_35, %c0_36] : memref<1x128xf32, #tpu.memory_space<vmem>>, vector<1x128xf32>
    %75 = vector.broadcast %74 : vector<1x128xf32> to vector<16x128xf32>
    %76 = arith.addf %73, %75 : vector<16x128xf32>
    %77 = arith.mulf %76, %76 : vector<16x128xf32>
    %78 = arith.mulf %76, %77 : vector<16x128xf32>
    %cst_37 = arith.constant 4.471500e-02 : f32
    %79 = vector.broadcast %cst_37 : f32 to vector<16x128xf32>
    %80 = arith.mulf %79, %78 : vector<16x128xf32>
    %81 = arith.addf %76, %80 : vector<16x128xf32>
    %cst_38 = arith.constant 0.797884583 : f32
    %82 = vector.broadcast %cst_38 : f32 to vector<16x128xf32>
    %83 = arith.mulf %82, %81 : vector<16x128xf32>
    %84 = math.tanh %83 : vector<16x128xf32>
    %cst_39 = arith.constant 1.000000e+00 : f32
    %85 = vector.broadcast %cst_39 : f32 to vector<16x128xf32>
    %86 = arith.addf %85, %84 : vector<16x128xf32>
    %cst_40 = arith.constant 5.000000e-01 : f32
    %87 = vector.broadcast %cst_40 : f32 to vector<16x128xf32>
    %88 = arith.mulf %87, %86 : vector<16x128xf32>
    %89 = arith.mulf %76, %88 : vector<16x128xf32>
    %c12_i32 = arith.constant 12 : i32
    %90 = tpu.dynamic_rotate %89 by %c12_i32 dim 0 : vector<16x128xf32>, i32 -> vector<16x128xf32>
    %91 = vector.extract_strided_slice %89 {offsets = [0, 0], sizes = [4, 128], strides = [1, 1]} : vector<16x128xf32> to vector<4x128xf32>
    %92 = vector.extract_strided_slice %90 {offsets = [0, 0], sizes = [4, 128], strides = [1, 1]} : vector<16x128xf32> to vector<4x128xf32>
    %93 = vector.extract_strided_slice %89 {offsets = [8, 0], sizes = [4, 128], strides = [1, 1]} : vector<16x128xf32> to vector<4x128xf32>
    %94 = vector.extract_strided_slice %90 {offsets = [8, 0], sizes = [4, 128], strides = [1, 1]} : vector<16x128xf32> to vector<4x128xf32>
    %95 = arith.truncf %91 : vector<4x128xf32> to vector<4x128xbf16>
    %c0_41 = arith.constant 0 : index
    %c0_42 = arith.constant 0 : index
    %96 = vector.load %arg8[%c0_41, %c0_42] : memref<512x256xbf16, #tpu.memory_space<vmem>>, vector<128x256xbf16>
    %cst_43 = arith.constant dense<0.000000e+00> : vector<4x256xf32>
    %97 = tpu.matmul %95, %96, %cst_43 {dimension_numbers = #tpu.dot_dimension_numbers<[1], [0], [0], [1], [0, 0, 1, 1], [], []>} : vector<4x128xbf16>, vector<128x256xbf16>, vector<4x256xf32> -> vector<4x256xf32>
    %98 = arith.truncf %92 : vector<4x128xf32> to vector<4x128xbf16>
    %c128_44 = arith.constant 128 : index
    %c0_45 = arith.constant 0 : index
    %99 = vector.load %arg8[%c128_44, %c0_45] : memref<512x256xbf16, #tpu.memory_space<vmem>>, vector<128x256xbf16>
    %cst_46 = arith.constant dense<0.000000e+00> : vector<4x256xf32>
    %100 = tpu.matmul %98, %99, %cst_46 {dimension_numbers = #tpu.dot_dimension_numbers<[1], [0], [0], [1], [0, 0, 1, 1], [], []>} : vector<4x128xbf16>, vector<128x256xbf16>, vector<4x256xf32> -> vector<4x256xf32>
    %101 = arith.addf %97, %100 : vector<4x256xf32>
    %102 = arith.truncf %93 : vector<4x128xf32> to vector<4x128xbf16>
    %c256 = arith.constant 256 : index
    %c0_47 = arith.constant 0 : index
    %103 = vector.load %arg8[%c256, %c0_47] : memref<512x256xbf16, #tpu.memory_space<vmem>>, vector<128x256xbf16>
    %cst_48 = arith.constant dense<0.000000e+00> : vector<4x256xf32>
    %104 = tpu.matmul %102, %103, %cst_48 {dimension_numbers = #tpu.dot_dimension_numbers<[1], [0], [0], [1], [0, 0, 1, 1], [], []>} : vector<4x128xbf16>, vector<128x256xbf16>, vector<4x256xf32> -> vector<4x256xf32>
    %105 = arith.addf %101, %104 : vector<4x256xf32>
    %106 = arith.truncf %94 : vector<4x128xf32> to vector<4x128xbf16>
    %c384 = arith.constant 384 : index
    %c0_49 = arith.constant 0 : index
    %107 = vector.load %arg8[%c384, %c0_49] : memref<512x256xbf16, #tpu.memory_space<vmem>>, vector<128x256xbf16>
    %cst_50 = arith.constant dense<0.000000e+00> : vector<4x256xf32>
    %108 = tpu.matmul %106, %107, %cst_50 {dimension_numbers = #tpu.dot_dimension_numbers<[1], [0], [0], [1], [0, 0, 1, 1], [], []>} : vector<4x128xbf16>, vector<128x256xbf16>, vector<4x256xf32> -> vector<4x256xf32>
    %109 = arith.addf %105, %108 : vector<4x256xf32>
    %c0_51 = arith.constant 0 : index
    %c0_52 = arith.constant 0 : index
    %110 = vector.load %arg9[%c0_51, %c0_52] : memref<1x256xf32, #tpu.memory_space<vmem>>, vector<1x256xf32>
    %111 = vector.broadcast %110 : vector<1x256xf32> to vector<4x256xf32>
    %112 = arith.addf %109, %111 : vector<4x256xf32>
    %113 = arith.mulf %112, %112 : vector<4x256xf32>
    %114 = arith.mulf %112, %113 : vector<4x256xf32>
    %cst_53 = arith.constant 4.471500e-02 : f32
    %115 = vector.broadcast %cst_53 : f32 to vector<4x256xf32>
    %116 = arith.mulf %115, %114 : vector<4x256xf32>
    %117 = arith.addf %112, %116 : vector<4x256xf32>
    %cst_54 = arith.constant 0.797884583 : f32
    %118 = vector.broadcast %cst_54 : f32 to vector<4x256xf32>
    %119 = arith.mulf %118, %117 : vector<4x256xf32>
    %120 = math.tanh %119 : vector<4x256xf32>
    %cst_55 = arith.constant 1.000000e+00 : f32
    %121 = vector.broadcast %cst_55 : f32 to vector<4x256xf32>
    %122 = arith.addf %121, %120 : vector<4x256xf32>
    %cst_56 = arith.constant 5.000000e-01 : f32
    %123 = vector.broadcast %cst_56 : f32 to vector<4x256xf32>
    %124 = arith.mulf %123, %122 : vector<4x256xf32>
    %125 = arith.mulf %112, %124 : vector<4x256xf32>
    %126 = arith.truncf %19 : vector<256x32xf32> to vector<256x32xbf16>
    %127 = arith.truncf %54 : vector<64x64xf32> to vector<64x64xbf16>
    %128 = arith.truncf %89 : vector<16x128xf32> to vector<16x128xbf16>
    %129 = arith.truncf %125 : vector<4x256xf32> to vector<4x256xbf16>
    %c0_57 = arith.constant 0 : index
    %c0_58 = arith.constant 0 : index
    %130 = vector.load %arg10[%c0_57, %c0_58] : memref<256x768xbf16, #tpu.memory_space<vmem>>, vector<256x768xbf16>
    %cst_59 = arith.constant dense<0.000000e+00> : vector<4x768xf32>
    %131 = tpu.matmul %129, %130, %cst_59 {dimension_numbers = #tpu.dot_dimension_numbers<[1], [0], [0], [1], [0, 0, 1, 1], [], []>} : vector<4x256xbf16>, vector<256x768xbf16>, vector<4x768xf32> -> vector<4x768xf32>
    %c0_60 = arith.constant 0 : index
    %c0_61 = arith.constant 0 : index
    %132 = vector.load %arg11[%c0_60, %c0_61] : memref<1x768xf32, #tpu.memory_space<vmem>>, vector<1x768xf32>
    %133 = vector.broadcast %132 : vector<1x768xf32> to vector<4x768xf32>
    %134 = arith.addf %131, %133 : vector<4x768xf32>
    %135 = vector.extract_strided_slice %134 {offsets = [0, 0], sizes = [4, 256], strides = [1, 1]} : vector<4x768xf32> to vector<4x256xf32>
    %136 = arith.truncf %135 : vector<4x256xf32> to vector<4x256xbf16>
    %137 = vector.extract_strided_slice %134 {offsets = [0, 256], sizes = [4, 256], strides = [1, 1]} : vector<4x768xf32> to vector<4x256xf32>
    %138 = arith.truncf %137 : vector<4x256xf32> to vector<4x256xbf16>
    %139 = vector.extract_strided_slice %134 {offsets = [0, 512], sizes = [4, 256], strides = [1, 1]} : vector<4x768xf32> to vector<4x256xf32>
    %140 = arith.truncf %139 : vector<4x256xf32> to vector<4x256xbf16>
    %cst_62 = arith.constant dense<0.000000e+00> : vector<4x4xf32>
    %141 = tpu.matmul %136, %138, %cst_62 {dimension_numbers = #tpu.dot_dimension_numbers<[1], [1], [0], [0], [0, 0, 1, 0], [], []>} : vector<4x256xbf16>, vector<4x256xbf16>, vector<4x4xf32> -> vector<4x4xf32>
    %cst_63 = arith.constant 6.250000e-02 : f32
    %142 = vector.broadcast %cst_63 : f32 to vector<4x4xf32>
    %143 = arith.mulf %141, %142 : vector<4x4xf32>
    %cst_64 = arith.constant dense<0xFF800000> : vector<4xf32>
    %144 = vector.multi_reduction <maximumf>, %143, %cst_64 [1] : vector<4x4xf32> to vector<4xf32>
    %145 = vector.shape_cast %144 : vector<4xf32> to vector<4x1xf32>
    %146 = vector.broadcast %145 : vector<4x1xf32> to vector<4x4xf32>
    %147 = arith.subf %143, %146 : vector<4x4xf32>
    %148 = math.exp %147 : vector<4x4xf32>
    %cst_65 = arith.constant dense<0.000000e+00> : vector<4xf32>
    %149 = vector.multi_reduction <add>, %148, %cst_65 [1] : vector<4x4xf32> to vector<4xf32>
    %150 = vector.shape_cast %149 : vector<4xf32> to vector<4x1xf32>
    %151 = tpu.reciprocal %150 {approx = true} : vector<4x1xf32> -> vector<4x1xf32>
    %152 = vector.broadcast %151 : vector<4x1xf32> to vector<4x4xf32>
    %153 = arith.mulf %148, %152 : vector<4x4xf32>
    %154 = arith.truncf %153 : vector<4x4xf32> to vector<4x4xbf16>
    %cst_66 = arith.constant dense<0.000000e+00> : vector<4x256xf32>
    %155 = tpu.matmul %154, %140, %cst_66 {dimension_numbers = #tpu.dot_dimension_numbers<[1], [0], [0], [1], [0, 0, 1, 1], [], []>} : vector<4x4xbf16>, vector<4x256xbf16>, vector<4x256xf32> -> vector<4x256xf32>
    %156 = arith.truncf %155 : vector<4x256xf32> to vector<4x256xbf16>
    %c0_67 = arith.constant 0 : index
    %c0_68 = arith.constant 0 : index
    %157 = vector.load %arg12[%c0_67, %c0_68] : memref<256x256xbf16, #tpu.memory_space<vmem>>, vector<256x256xbf16>
    %cst_69 = arith.constant dense<0.000000e+00> : vector<4x256xf32>
    %158 = tpu.matmul %156, %157, %cst_69 {dimension_numbers = #tpu.dot_dimension_numbers<[1], [0], [0], [1], [0, 0, 1, 1], [], []>} : vector<4x256xbf16>, vector<256x256xbf16>, vector<4x256xf32> -> vector<4x256xf32>
    %c0_70 = arith.constant 0 : index
    %c0_71 = arith.constant 0 : index
    %159 = vector.load %arg13[%c0_70, %c0_71] : memref<1x256xf32, #tpu.memory_space<vmem>>, vector<1x256xf32>
    %160 = vector.broadcast %159 : vector<1x256xf32> to vector<4x256xf32>
    %161 = arith.addf %158, %160 : vector<4x256xf32>
    %162 = arith.addf %125, %161 : vector<4x256xf32>
    %163 = arith.truncf %162 : vector<4x256xf32> to vector<4x256xbf16>
    %c0_72 = arith.constant 0 : index
    %c0_73 = arith.constant 0 : index
    %164 = vector.load %arg14[%c0_72, %c0_73] : memref<32x128xbf16, #tpu.memory_space<vmem>>, vector<32x128xbf16>
    %cst_74 = arith.constant dense<0.000000e+00> : vector<256x128xf32>
    %165 = tpu.matmul %126, %164, %cst_74 {dimension_numbers = #tpu.dot_dimension_numbers<[1], [0], [0], [1], [0, 0, 1, 1], [], []>} : vector<256x32xbf16>, vector<32x128xbf16>, vector<256x128xf32> -> vector<256x128xf32>
    %c0_75 = arith.constant 0 : index
    %c0_76 = arith.constant 0 : index
    %166 = vector.load %arg15[%c0_75, %c0_76] : memref<64x128xbf16, #tpu.memory_space<vmem>>, vector<64x128xbf16>
    %cst_77 = arith.constant dense<0.000000e+00> : vector<64x128xf32>
    %167 = tpu.matmul %127, %166, %cst_77 {dimension_numbers = #tpu.dot_dimension_numbers<[1], [0], [0], [1], [0, 0, 1, 1], [], []>} : vector<64x64xbf16>, vector<64x128xbf16>, vector<64x128xf32> -> vector<64x128xf32>
    %168 = arith.truncf %167 : vector<64x128xf32> to vector<64x128xbf16>
    %c0_78 = arith.constant 0 : index
    %c0_79 = arith.constant 0 : index
    %169 = vector.load %arg21[%c0_78, %c0_79] : memref<256x64xbf16, #tpu.memory_space<vmem>>, vector<256x64xbf16>
    %cst_80 = arith.constant dense<0.000000e+00> : vector<256x128xf32>
    %170 = tpu.matmul %169, %168, %cst_80 {dimension_numbers = #tpu.dot_dimension_numbers<[1], [0], [0], [1], [0, 0, 1, 1], [], []>} : vector<256x64xbf16>, vector<64x128xbf16>, vector<256x128xf32> -> vector<256x128xf32>
    %171 = arith.addf %165, %170 : vector<256x128xf32>
    %c0_81 = arith.constant 0 : index
    %c0_82 = arith.constant 0 : index
    %172 = vector.load %arg16[%c0_81, %c0_82] : memref<128x128xbf16, #tpu.memory_space<vmem>>, vector<128x128xbf16>
    %cst_83 = arith.constant dense<0.000000e+00> : vector<16x128xf32>
    %173 = tpu.matmul %128, %172, %cst_83 {dimension_numbers = #tpu.dot_dimension_numbers<[1], [0], [0], [1], [0, 0, 1, 1], [], []>} : vector<16x128xbf16>, vector<128x128xbf16>, vector<16x128xf32> -> vector<16x128xf32>
    %174 = arith.truncf %173 : vector<16x128xf32> to vector<16x128xbf16>
    %c0_84 = arith.constant 0 : index
    %c0_85 = arith.constant 0 : index
    %175 = vector.load %arg22[%c0_84, %c0_85] : memref<256x16xbf16, #tpu.memory_space<vmem>>, vector<256x16xbf16>
    %cst_86 = arith.constant dense<0.000000e+00> : vector<256x128xf32>
    %176 = tpu.matmul %175, %174, %cst_86 {dimension_numbers = #tpu.dot_dimension_numbers<[1], [0], [0], [1], [0, 0, 1, 1], [], []>} : vector<256x16xbf16>, vector<16x128xbf16>, vector<256x128xf32> -> vector<256x128xf32>
    %177 = arith.addf %171, %176 : vector<256x128xf32>
    %c0_87 = arith.constant 0 : index
    %c0_88 = arith.constant 0 : index
    %178 = vector.load %arg17[%c0_87, %c0_88] : memref<256x128xbf16, #tpu.memory_space<vmem>>, vector<256x128xbf16>
    %cst_89 = arith.constant dense<0.000000e+00> : vector<4x128xf32>
    %179 = tpu.matmul %163, %178, %cst_89 {dimension_numbers = #tpu.dot_dimension_numbers<[1], [0], [0], [1], [0, 0, 1, 1], [], []>} : vector<4x256xbf16>, vector<256x128xbf16>, vector<4x128xf32> -> vector<4x128xf32>
    %180 = arith.truncf %179 : vector<4x128xf32> to vector<4x128xbf16>
    %c0_90 = arith.constant 0 : index
    %c0_91 = arith.constant 0 : index
    %181 = vector.load %arg23[%c0_90, %c0_91] : memref<256x4xbf16, #tpu.memory_space<vmem>>, vector<256x4xbf16>
    %cst_92 = arith.constant dense<0.000000e+00> : vector<256x128xf32>
    %182 = tpu.matmul %181, %180, %cst_92 {dimension_numbers = #tpu.dot_dimension_numbers<[1], [0], [0], [1], [0, 0, 1, 1], [], []>} : vector<256x4xbf16>, vector<4x128xbf16>, vector<256x128xf32> -> vector<256x128xf32>
    %183 = arith.addf %177, %182 : vector<256x128xf32>
    %c0_93 = arith.constant 0 : index
    %c0_94 = arith.constant 0 : index
    %184 = vector.load %arg18[%c0_93, %c0_94] : memref<1x128xf32, #tpu.memory_space<vmem>>, vector<1x128xf32>
    %185 = vector.broadcast %184 : vector<1x128xf32> to vector<256x128xf32>
    %186 = arith.addf %183, %185 : vector<256x128xf32>
    %cst_95 = arith.constant 0.000000e+00 : f32
    %187 = vector.broadcast %cst_95 : f32 to vector<256x128xf32>
    %188 = arith.maximumf %186, %187 : vector<256x128xf32>
    %189 = arith.truncf %188 : vector<256x128xf32> to vector<256x128xbf16>
    %c0_96 = arith.constant 0 : index
    %c0_97 = arith.constant 0 : index
    %190 = vector.load %arg19[%c0_96, %c0_97] : memref<4x128xbf16, #tpu.memory_space<vmem>>, vector<4x128xbf16>
    %cst_98 = arith.constant dense<0.000000e+00> : vector<4x256xf32>
    %191 = tpu.matmul %190, %189, %cst_98 {dimension_numbers = #tpu.dot_dimension_numbers<[1], [1], [0], [0], [0, 0, 1, 0], [], []>} : vector<4x128xbf16>, vector<256x128xbf16>, vector<4x256xf32> -> vector<4x256xf32>
    %c0_99 = arith.constant 0 : index
    %c0_100 = arith.constant 0 : index
    %192 = vector.load %arg20[%c0_99, %c0_100] : memref<4x1xf32, #tpu.memory_space<vmem>>, vector<4x1xf32>
    %193 = vector.broadcast %192 : vector<4x1xf32> to vector<4x256xf32>
    %194 = arith.addf %191, %193 : vector<4x256xf32>
    %195 = arith.truncf %194 : vector<4x256xf32> to vector<4x256xbf16>
    %c0_101 = arith.constant 0 : index
    %c0_102 = arith.constant 0 : index
    %196 = vector.load %arg24[%c0_101, %c0_102] : memref<256x1024xbf16, #tpu.memory_space<vmem>>, vector<256x1024xbf16>
    %cst_103 = arith.constant dense<0.000000e+00> : vector<4x1024xf32>
    %197 = tpu.matmul %195, %196, %cst_103 {dimension_numbers = #tpu.dot_dimension_numbers<[1], [0], [0], [1], [0, 0, 1, 1], [], []>} : vector<4x256xbf16>, vector<256x1024xbf16>, vector<4x1024xf32> -> vector<4x1024xf32>
    %c0_104 = arith.constant 0 : index
    %c0_105 = arith.constant 0 : index
    %c0_106 = arith.constant 0 : index
    %198 = vector.load %arg25[%c0_104, %c0_105, %c0_106] : memref<1x4x1024xf32, #tpu.memory_space<vmem>>, vector<1x4x1024xf32>
    %199 = vector.shape_cast %198 : vector<1x4x1024xf32> to vector<4x1024xf32>
    %200 = vector.shape_cast %197 : vector<4x1024xf32> to vector<1x4x1024xf32>
    tpu.vector_store %arg25[%c0_104, %c0_105, %c0_106], %200 {strides = array<i32>} : memref<1x4x1024xf32, #tpu.memory_space<vmem>>, vector<1x4x1024xf32>,
    return
  }
  func.func @transform_0(%arg0: i32) -> (i32, i32, i32) {
    %c0_i32 = arith.constant 0 : i32
    %c0_i32_0 = arith.constant 0 : i32
    %c0_i32_1 = arith.constant 0 : i32
    return %arg0, %c0_i32, %c0_i32_0 : i32, i32, i32
  }
  func.func @transform_1(%arg0: i32) -> (i32, i32) {
    %c0_i32 = arith.constant 0 : i32
    %c0_i32_0 = arith.constant 0 : i32
    %c0_i32_1 = arith.constant 0 : i32
    return %c0_i32, %c0_i32_0 : i32, i32
  }
  func.func @transform_2(%arg0: i32) -> (i32, i32) {
    %c0_i32 = arith.constant 0 : i32
    %c0_i32_0 = arith.constant 0 : i32
    %c0_i32_1 = arith.constant 0 : i32
    return %c0_i32, %c0_i32_0 : i32, i32
  }
  func.func @transform_3(%arg0: i32) -> (i32, i32) {
    %c0_i32 = arith.constant 0 : i32
    %c0_i32_0 = arith.constant 0 : i32
    %c0_i32_1 = arith.constant 0 : i32
    return %c0_i32, %c0_i32_0 : i32, i32
  }
  func.func @transform_4(%arg0: i32) -> (i32, i32) {
    %c0_i32 = arith.constant 0 : i32
    %c0_i32_0 = arith.constant 0 : i32
    %c0_i32_1 = arith.constant 0 : i32
    return %c0_i32, %c0_i32_0 : i32, i32
  }
  func.func @transform_5(%arg0: i32) -> (i32, i32) {
    %c0_i32 = arith.constant 0 : i32
    %c0_i32_0 = arith.constant 0 : i32
    %c0_i32_1 = arith.constant 0 : i32
    return %c0_i32, %c0_i32_0 : i32, i32
  }
  func.func @transform_6(%arg0: i32) -> (i32, i32) {
    %c0_i32 = arith.constant 0 : i32
    %c0_i32_0 = arith.constant 0 : i32
    %c0_i32_1 = arith.constant 0 : i32
    return %c0_i32, %c0_i32_0 : i32, i32
  }
  func.func @transform_7(%arg0: i32) -> (i32, i32) {
    %c0_i32 = arith.constant 0 : i32
    %c0_i32_0 = arith.constant 0 : i32
    %c0_i32_1 = arith.constant 0 : i32
    return %c0_i32, %c0_i32_0 : i32, i32
  }
  func.func @transform_8(%arg0: i32) -> (i32, i32) {
    %c0_i32 = arith.constant 0 : i32
    %c0_i32_0 = arith.constant 0 : i32
    %c0_i32_1 = arith.constant 0 : i32
    return %c0_i32, %c0_i32_0 : i32, i32
  }
  func.func @transform_9(%arg0: i32) -> (i32, i32) {
    %c0_i32 = arith.constant 0 : i32
    %c0_i32_0 = arith.constant 0 : i32
    %c0_i32_1 = arith.constant 0 : i32
    return %c0_i32, %c0_i32_0 : i32, i32
  }
  func.func @transform_10(%arg0: i32) -> (i32, i32) {
    %c0_i32 = arith.constant 0 : i32
    %c0_i32_0 = arith.constant 0 : i32
    %c0_i32_1 = arith.constant 0 : i32
    return %c0_i32, %c0_i32_0 : i32, i32
  }
  func.func @transform_11(%arg0: i32) -> (i32, i32) {
    %c0_i32 = arith.constant 0 : i32
    %c0_i32_0 = arith.constant 0 : i32
    %c0_i32_1 = arith.constant 0 : i32
    return %c0_i32, %c0_i32_0 : i32, i32
  }
  func.func @transform_12(%arg0: i32) -> (i32, i32) {
    %c0_i32 = arith.constant 0 : i32
    %c0_i32_0 = arith.constant 0 : i32
    %c0_i32_1 = arith.constant 0 : i32
    return %c0_i32, %c0_i32_0 : i32, i32
  }
  func.func @transform_13(%arg0: i32) -> (i32, i32) {
    %c0_i32 = arith.constant 0 : i32
    %c0_i32_0 = arith.constant 0 : i32
    %c0_i32_1 = arith.constant 0 : i32
    return %c0_i32, %c0_i32_0 : i32, i32
  }
  func.func @transform_14(%arg0: i32) -> (i32, i32) {
    %c0_i32 = arith.constant 0 : i32
    %c0_i32_0 = arith.constant 0 : i32
    %c0_i32_1 = arith.constant 0 : i32
    return %c0_i32, %c0_i32_0 : i32, i32
  }
  func.func @transform_15(%arg0: i32) -> (i32, i32) {
    %c0_i32 = arith.constant 0 : i32
    %c0_i32_0 = arith.constant 0 : i32
    %c0_i32_1 = arith.constant 0 : i32
    return %c0_i32, %c0_i32_0 : i32, i32
  }
  func.func @transform_16(%arg0: i32) -> (i32, i32) {
    %c0_i32 = arith.constant 0 : i32
    %c0_i32_0 = arith.constant 0 : i32
    %c0_i32_1 = arith.constant 0 : i32
    return %c0_i32, %c0_i32_0 : i32, i32
  }
  func.func @transform_17(%arg0: i32) -> (i32, i32) {
    %c0_i32 = arith.constant 0 : i32
    %c0_i32_0 = arith.constant 0 : i32
    %c0_i32_1 = arith.constant 0 : i32
    return %c0_i32, %c0_i32_0 : i32, i32
  }
  func.func @transform_18(%arg0: i32) -> (i32, i32) {
    %c0_i32 = arith.constant 0 : i32
    %c0_i32_0 = arith.constant 0 : i32
    %c0_i32_1 = arith.constant 0 : i32
    return %c0_i32, %c0_i32_0 : i32, i32
  }
  func.func @transform_19(%arg0: i32) -> (i32, i32) {
    %c0_i32 = arith.constant 0 : i32
    %c0_i32_0 = arith.constant 0 : i32
    %c0_i32_1 = arith.constant 0 : i32
    return %c0_i32, %c0_i32_0 : i32, i32
  }
  func.func @transform_20(%arg0: i32) -> (i32, i32) {
    %c0_i32 = arith.constant 0 : i32
    %c0_i32_0 = arith.constant 0 : i32
    %c0_i32_1 = arith.constant 0 : i32
    return %c0_i32, %c0_i32_0 : i32, i32
  }
  func.func @transform_21(%arg0: i32) -> (i32, i32) {
    %c0_i32 = arith.constant 0 : i32
    %c0_i32_0 = arith.constant 0 : i32
    %c0_i32_1 = arith.constant 0 : i32
    return %c0_i32, %c0_i32_0 : i32, i32
  }
  func.func @transform_22(%arg0: i32) -> (i32, i32) {
    %c0_i32 = arith.constant 0 : i32
    %c0_i32_0 = arith.constant 0 : i32
    %c0_i32_1 = arith.constant 0 : i32
    return %c0_i32, %c0_i32_0 : i32, i32
  }
  func.func @transform_23(%arg0: i32) -> (i32, i32) {
    %c0_i32 = arith.constant 0 : i32
    %c0_i32_0 = arith.constant 0 : i32
    %c0_i32_1 = arith.constant 0 : i32
    return %c0_i32, %c0_i32_0 : i32, i32
  }
  func.func @transform_24(%arg0: i32) -> (i32, i32, i32) {
    %c0_i32 = arith.constant 0 : i32
    %c0_i32_0 = arith.constant 0 : i32
    %c0_i32_1 = arith.constant 0 : i32
    return %arg0, %c0_i32, %c0_i32_0 : i32, i32, i32
  }
}

</mosaic_0001>

<llo_original>
// kernel: model_forward.1
$region0: #{model_forward.1}
  #allocation0 [shape = 'u32[]', space=smem, size = 0x4, offset = 0x4, fixed_abs, tag = 'smem constant byte address 0x4 - core index']
  #allocation1 [shape = 'u32[144,128]{1,0:T(1,128)}', space=vmem, size = 0x12000, scoped, tag = 'internal scratch']
  %s0 = inlined_call_operand.vmem [shape: bf16[2,256,16], index: 0, kind: input, shape index: {}]
  %s1 = inlined_call_operand.vmem [shape: bf16[16,32], index: 1, kind: input, shape index: {}]
  %s2 = inlined_call_operand.vmem [shape: f32[1,32], index: 2, kind: input, shape index: {}]
  %s3 = inlined_call_operand.vmem [shape: bf16[128,64], index: 3, kind: input, shape index: {}]
  %s4 = inlined_call_operand.vmem [shape: f32[1,64], index: 4, kind: input, shape index: {}]
  %s5 = inlined_call_operand.vmem [shape: bf16[256,128], index: 5, kind: input, shape index: {}]
  %s6 = inlined_call_operand.vmem [shape: f32[1,128], index: 6, kind: input, shape index: {}]
  %s7 = inlined_call_operand.vmem [shape: bf16[512,256], index: 7, kind: input, shape index: {}]
  %s8 = inlined_call_operand.vmem [shape: f32[1,256], index: 8, kind: input, shape index: {}]
  %s9 = inlined_call_operand.vmem [shape: bf16[256,768], index: 9, kind: input, shape index: {}]
  %s10 = inlined_call_operand.vmem [shape: f32[1,768], index: 10, kind: input, shape index: {}]
  %s11 = inlined_call_operand.vmem [shape: bf16[256,256], index: 11, kind: input, shape index: {}]
  %s12 = inlined_call_operand.vmem [shape: f32[1,256], index: 12, kind: input, shape index: {}]
  %s13 = inlined_call_operand.vmem [shape: bf16[32,128], index: 13, kind: input, shape index: {}]
  %s14 = inlined_call_operand.vmem [shape: bf16[64,128], index: 14, kind: input, shape index: {}]
  %s15 = inlined_call_operand.vmem [shape: bf16[128,128], index: 15, kind: input, shape index: {}]
  %s16 = inlined_call_operand.vmem [shape: bf16[256,128], index: 16, kind: input, shape index: {}]
  %s17 = inlined_call_operand.vmem [shape: f32[1,128], index: 17, kind: input, shape index: {}]
  %s18 = inlined_call_operand.vmem [shape: bf16[4,128], index: 18, kind: input, shape index: {}]
  %s19 = inlined_call_operand.vmem [shape: f32[4,1], index: 19, kind: input, shape index: {}]
  %s20 = inlined_call_operand.vmem [shape: bf16[256,64], index: 20, kind: input, shape index: {}]
  %s21 = inlined_call_operand.vmem [shape: bf16[256,16], index: 21, kind: input, shape index: {}]
  %s22 = inlined_call_operand.vmem [shape: bf16[256,4], index: 22, kind: input, shape index: {}]
  %s23 = inlined_call_operand.vmem [shape: bf16[256,1024], index: 23, kind: input, shape index: {}]
  %s24 = inlined_call_operand.vmem [shape: f32[2,4,1024], index: 24, kind: output, shape index: {}]
  %s25 = sld [smem:[#allocation0]]
  $region129: #{model_forward.1} parent=0
    _
  %s27 = ssub.s32 1, %s25
  %s28 = scalar_select 0, %s27, %s25
  loop: start=0, step=1, limit=4
  $region2: #{model_forward.1} parent=0 // loop_pre_header
    _
  $region3: #{model_forward.1} parent=0 // loop_header
    %s30 = sphi 0, %s34
    %p31 = scmp.ge.s32.totalorder %s30, 4
    %s40 = sphi 0, %s42
    %s43 = sphi 0, %s40
    %s44 = sphi 0, %s43
    %s60 = sphi 0, %s44
    %s64 = sphi 0, %s64
    %s66 = sphi 0, %s64
    %s67 = sphi 0, %s66
    %s81 = sphi 0, %s67
    %s85 = sphi 0, %s85
    %s87 = sphi 0, %s85
    %s88 = sphi 0, %s87
    %s102 = sphi 0, %s88
    %s106 = sphi 0, %s106
    %s108 = sphi 0, %s106
    %s109 = sphi 0, %s108
    %s123 = sphi 0, %s109
    %s127 = sphi 0, %s127
    %s129 = sphi 0, %s127
    %s130 = sphi 0, %s129
    %s144 = sphi 0, %s130
    %s148 = sphi 0, %s148
    %s150 = sphi 0, %s148
    %s151 = sphi 0, %s150
    %s165 = sphi 0, %s151
    %s169 = sphi 0, %s169
    %s171 = sphi 0, %s169
    %s172 = sphi 0, %s171
    %s186 = sphi 0, %s172
    %s190 = sphi 0, %s190
    %s192 = sphi 0, %s190
    %s193 = sphi 0, %s192
    %s207 = sphi 0, %s193
    %s211 = sphi 0, %s211
    %s213 = sphi 0, %s211
    %s214 = sphi 0, %s213
    %s228 = sphi 0, %s214
    %s232 = sphi 0, %s232
    %s234 = sphi 0, %s232
    %s235 = sphi 0, %s234
    %s249 = sphi 0, %s235
    %s253 = sphi 0, %s253
    %s255 = sphi 0, %s253
    %s256 = sphi 0, %s255
    %s270 = sphi 0, %s256
    %s274 = sphi 0, %s274
    %s276 = sphi 0, %s274
    %s277 = sphi 0, %s276
    %s291 = sphi 0, %s277
    %s295 = sphi 0, %s295
    %s297 = sphi 0, %s295
    %s298 = sphi 0, %s297
    %s312 = sphi 0, %s298
    %s316 = sphi 0, %s316
    %s318 = sphi 0, %s316
    %s319 = sphi 0, %s318
    %s333 = sphi 0, %s319
    %s337 = sphi 0, %s337
    %s339 = sphi 0, %s337
    %s340 = sphi 0, %s339
    %s354 = sphi 0, %s340
    %s358 = sphi 0, %s358
    %s360 = sphi 0, %s358
    %s361 = sphi 0, %s360
    %s375 = sphi 0, %s361
    %s379 = sphi 0, %s379
    %s381 = sphi 0, %s379
    %s382 = sphi 0, %s381
    %s396 = sphi 0, %s382
    %s400 = sphi 0, %s400
    %s402 = sphi 0, %s400
    %s403 = sphi 0, %s402
    %s417 = sphi 0, %s403
    %s421 = sphi 0, %s421
    %s423 = sphi 0, %s421
    %s424 = sphi 0, %s423
    %s438 = sphi 0, %s424
    %s442 = sphi 0, %s442
    %s444 = sphi 0, %s442
    %s445 = sphi 0, %s444
    %s459 = sphi 0, %s445
    %s463 = sphi 0, %s463
    %s465 = sphi 0, %s463
    %s466 = sphi 0, %s465
    %s480 = sphi 0, %s466
    %s484 = sphi 0, %s484
    %s486 = sphi 0, %s484
    %s487 = sphi 0, %s486
    %s501 = sphi 0, %s487
    %s505 = sphi 0, %s505
    %s507 = sphi 0, %s505
    %s508 = sphi 0, %s507
    %s522 = sphi 0, %s508
    %s526 = sphi 0, %s526
    %s528 = sphi 0, %s526
    %s529 = sphi 0, %s528
    %s543 = sphi 0, %s529
    %s549 = sphi 0, %s551
    %s552 = sphi 0, %s549
    %s553 = sphi 0, %s552
    %s569 = sphi 0, %s553
  $region4: #{model_forward.1} parent=0 // loop_header_branch
    %33 = sbr.rel (%p31) target = $region8
  $region5: #{model_forward.1} parent=0 // loop_body
    %s35 = ssub.s32 %s30, 1
    %s36 = ssub.s32 %s30, 2
    %s37 = sadd.s32 %s30, 1
    %s38 = ssub.s32 %s30, %s37
    %p39 = scmp.eq.s32.totalorder %s38, 0
    %s41 = sadd.s32 %s40, 1
    %s42 = scalar_select %p39, %s40, %s41
    %p45 = pneg %p39
    %p46 = scmp.eq.s32.totalorder %s30, 1
    %p47 = por %p45, %p46
    %p48 = scmp.ne.s32.totalorder %s40, %s43
    %p49 = scmp.eq.s32.totalorder %s30, 0
    %p50 = por %p48, %p49
    %p51 = scmp.ne.s32.totalorder %s40, %s43
    %p52 = scmp.eq.s32.totalorder %s35, 1
    %p53 = por %p51, %p52
    %p54 = scmp.ne.s32.totalorder %s43, %s44
    %p55 = scmp.eq.s32.totalorder %s35, 0
    %p56 = por %p54, %p55
    %p57 = scmp.ne.s32.totalorder %s43, %s44
    %p58 = scmp.eq.s32.totalorder %s36, 1
    %p59 = por %p57, %p58
    %p61 = scmp.ne.s32.totalorder %s44, %s60
    %p62 = scmp.eq.s32.totalorder %s36, 0
    %p63 = por %p61, %p62
    %s65 = sadd.s32 %s64, 1
    %p68 = scmp.eq.s32.totalorder %s30, 1
    %p69 = scmp.ne.s32.totalorder %s64, %s66
    %p70 = scmp.eq.s32.totalorder %s30, 0
    %p71 = por %p69, %p70
    %p72 = scmp.ne.s32.totalorder %s64, %s66
    %p73 = scmp.eq.s32.totalorder %s35, 1
    %p74 = por %p72, %p73
    %p75 = scmp.ne.s32.totalorder %s66, %s67
    %p76 = scmp.eq.s32.totalorder %s35, 0
    %p77 = por %p75, %p76
    %p78 = scmp.ne.s32.totalorder %s66, %s67
    %p79 = scmp.eq.s32.totalorder %s36, 1
    %p80 = por %p78, %p79
    %p82 = scmp.ne.s32.totalorder %s67, %s81
    %p83 = scmp.eq.s32.totalorder %s36, 0
    %p84 = por %p82, %p83
    %s86 = sadd.s32 %s85, 1
    %p89 = scmp.eq.s32.totalorder %s30, 1
    %p90 = scmp.ne.s32.totalorder %s85, %s87
    %p91 = scmp.eq.s32.totalorder %s30, 0
    %p92 = por %p90, %p91
    %p93 = scmp.ne.s32.totalorder %s85, %s87
    %p94 = scmp.eq.s32.totalorder %s35, 1
    %p95 = por %p93, %p94
    %p96 = scmp.ne.s32.totalorder %s87, %s88
    %p97 = scmp.eq.s32.totalorder %s35, 0
    %p98 = por %p96, %p97
    %p99 = scmp.ne.s32.totalorder %s87, %s88
    %p100 = scmp.eq.s32.totalorder %s36, 1
    %p101 = por %p99, %p100
    %p103 = scmp.ne.s32.totalorder %s88, %s102
    %p104 = scmp.eq.s32.totalorder %s36, 0
    %p105 = por %p103, %p104
    %s107 = sadd.s32 %s106, 1
    %p110 = scmp.eq.s32.totalorder %s30, 1
    %p111 = scmp.ne.s32.totalorder %s106, %s108
    %p112 = scmp.eq.s32.totalorder %s30, 0
    %p113 = por %p111, %p112
    %p114 = scmp.ne.s32.totalorder %s106, %s108
    %p115 = scmp.eq.s32.totalorder %s35, 1
    %p116 = por %p114, %p115
    %p117 = scmp.ne.s32.totalorder %s108, %s109
    %p118 = scmp.eq.s32.totalorder %s35, 0
    %p119 = por %p117, %p118
    %p120 = scmp.ne.s32.totalorder %s108, %s109
    %p121 = scmp.eq.s32.totalorder %s36, 1
    %p122 = por %p120, %p121
    %p124 = scmp.ne.s32.totalorder %s109, %s123
    %p125 = scmp.eq.s32.totalorder %s36, 0
    %p126 = por %p124, %p125
    %s128 = sadd.s32 %s127, 1
    %p131 = scmp.eq.s32.totalorder %s30, 1
    %p132 = scmp.ne.s32.totalorder %s127, %s129
    %p133 = scmp.eq.s32.totalorder %s30, 0
    %p134 = por %p132, %p133
    %p135 = scmp.ne.s32.totalorder %s127, %s129
    %p136 = scmp.eq.s32.totalorder %s35, 1
    %p137 = por %p135, %p136
    %p138 = scmp.ne.s32.totalorder %s129, %s130
    %p139 = scmp.eq.s32.totalorder %s35, 0
    %p140 = por %p138, %p139
    %p141 = scmp.ne.s32.totalorder %s129, %s130
    %p142 = scmp.eq.s32.totalorder %s36, 1
    %p143 = por %p141, %p142
    %p145 = scmp.ne.s32.totalorder %s130, %s144
    %p146 = scmp.eq.s32.totalorder %s36, 0
    %p147 = por %p145, %p146
    %s149 = sadd.s32 %s148, 1
    %p152 = scmp.eq.s32.totalorder %s30, 1
    %p153 = scmp.ne.s32.totalorder %s148, %s150
    %p154 = scmp.eq.s32.totalorder %s30, 0
    %p155 = por %p153, %p154
    %p156 = scmp.ne.s32.totalorder %s148, %s150
    %p157 = scmp.eq.s32.totalorder %s35, 1
    %p158 = por %p156, %p157
    %p159 = scmp.ne.s32.totalorder %s150, %s151
    %p160 = scmp.eq.s32.totalorder %s35, 0
    %p161 = por %p159, %p160
    %p162 = scmp.ne.s32.totalorder %s150, %s151
    %p163 = scmp.eq.s32.totalorder %s36, 1
    %p164 = por %p162, %p163
    %p166 = scmp.ne.s32.totalorder %s151, %s165
    %p167 = scmp.eq.s32.totalorder %s36, 0
    %p168 = por %p166, %p167
    %s170 = sadd.s32 %s169, 1
    %p173 = scmp.eq.s32.totalorder %s30, 1
    %p174 = scmp.ne.s32.totalorder %s169, %s171
    %p175 = scmp.eq.s32.totalorder %s30, 0
    %p176 = por %p174, %p175
    %p177 = scmp.ne.s32.totalorder %s169, %s171
    %p178 = scmp.eq.s32.totalorder %s35, 1
    %p179 = por %p177, %p178
    %p180 = scmp.ne.s32.totalorder %s171, %s172
    %p181 = scmp.eq.s32.totalorder %s35, 0
    %p182 = por %p180, %p181
    %p183 = scmp.ne.s32.totalorder %s171, %s172
    %p184 = scmp.eq.s32.totalorder %s36, 1
    %p185 = por %p183, %p184
    %p187 = scmp.ne.s32.totalorder %s172, %s186
    %p188 = scmp.eq.s32.totalorder %s36, 0
    %p189 = por %p187, %p188
    %s191 = sadd.s32 %s190, 1
    %p194 = scmp.eq.s32.totalorder %s30, 1
    %p195 = scmp.ne.s32.totalorder %s190, %s192
    %p196 = scmp.eq.s32.totalorder %s30, 0
    %p197 = por %p195, %p196
    %p198 = scmp.ne.s32.totalorder %s190, %s192
    %p199 = scmp.eq.s32.totalorder %s35, 1
    %p200 = por %p198, %p199
    %p201 = scmp.ne.s32.totalorder %s192, %s193
    %p202 = scmp.eq.s32.totalorder %s35, 0
    %p203 = por %p201, %p202
    %p204 = scmp.ne.s32.totalorder %s192, %s193
    %p205 = scmp.eq.s32.totalorder %s36, 1
    %p206 = por %p204, %p205
    %p208 = scmp.ne.s32.totalorder %s193, %s207
    %p209 = scmp.eq.s32.totalorder %s36, 0
    %p210 = por %p208, %p209
    %s212 = sadd.s32 %s211, 1
    %p215 = scmp.eq.s32.totalorder %s30, 1
    %p216 = scmp.ne.s32.totalorder %s211, %s213
    %p217 = scmp.eq.s32.totalorder %s30, 0
    %p218 = por %p216, %p217
    %p219 = scmp.ne.s32.totalorder %s211, %s213
    %p220 = scmp.eq.s32.totalorder %s35, 1
    %p221 = por %p219, %p220
    %p222 = scmp.ne.s32.totalorder %s213, %s214
    %p223 = scmp.eq.s32.totalorder %s35, 0
    %p224 = por %p222, %p223
    %p225 = scmp.ne.s32.totalorder %s213, %s214
    %p226 = scmp.eq.s32.totalorder %s36, 1
    %p227 = por %p225, %p226
    %p229 = scmp.ne.s32.totalorder %s214, %s228
    %p230 = scmp.eq.s32.totalorder %s36, 0
    %p231 = por %p229, %p230
    %s233 = sadd.s32 %s232, 1
    %p236 = scmp.eq.s32.totalorder %s30, 1
    %p237 = scmp.ne.s32.totalorder %s232, %s234
    %p238 = scmp.eq.s32.totalorder %s30, 0
    %p239 = por %p237, %p238
    %p240 = scmp.ne.s32.totalorder %s232, %s234
    %p241 = scmp.eq.s32.totalorder %s35, 1
    %p242 = por %p240, %p241
    %p243 = scmp.ne.s32.totalorder %s234, %s235
    %p244 = scmp.eq.s32.totalorder %s35, 0
    %p245 = por %p243, %p244
    %p246 = scmp.ne.s32.totalorder %s234, %s235
    %p247 = scmp.eq.s32.totalorder %s36, 1
    %p248 = por %p246, %p247
    %p250 = scmp.ne.s32.totalorder %s235, %s249
    %p251 = scmp.eq.s32.totalorder %s36, 0
    %p252 = por %p250, %p251
    %s254 = sadd.s32 %s253, 1
    %p257 = scmp.eq.s32.totalorder %s30, 1
    %p258 = scmp.ne.s32.totalorder %s253, %s255
    %p259 = scmp.eq.s32.totalorder %s30, 0
    %p260 = por %p258, %p259
    %p261 = scmp.ne.s32.totalorder %s253, %s255
    %p262 = scmp.eq.s32.totalorder %s35, 1
    %p263 = por %p261, %p262
    %p264 = scmp.ne.s32.totalorder %s255, %s256
    %p265 = scmp.eq.s32.totalorder %s35, 0
    %p266 = por %p264, %p265
    %p267 = scmp.ne.s32.totalorder %s255, %s256
    %p268 = scmp.eq.s32.totalorder %s36, 1
    %p269 = por %p267, %p268
    %p271 = scmp.ne.s32.totalorder %s256, %s270
    %p272 = scmp.eq.s32.totalorder %s36, 0
    %p273 = por %p271, %p272
    %s275 = sadd.s32 %s274, 1
    %p278 = scmp.eq.s32.totalorder %s30, 1
    %p279 = scmp.ne.s32.totalorder %s274, %s276
    %p280 = scmp.eq.s32.totalorder %s30, 0
    %p281 = por %p279, %p280
    %p282 = scmp.ne.s32.totalorder %s274, %s276
    %p283 = scmp.eq.s32.totalorder %s35, 1
    %p284 = por %p282, %p283
    %p285 = scmp.ne.s32.totalorder %s276, %s277
    %p286 = scmp.eq.s32.totalorder %s35, 0
    %p287 = por %p285, %p286
    %p288 = scmp.ne.s32.totalorder %s276, %s277
    %p289 = scmp.eq.s32.totalorder %s36, 1
    %p290 = por %p288, %p289
    %p292 = scmp.ne.s32.totalorder %s277, %s291
    %p293 = scmp.eq.s32.totalorder %s36, 0
    %p294 = por %p292, %p293
    %s296 = sadd.s32 %s295, 1
    %p299 = scmp.eq.s32.totalorder %s30, 1
    %p300 = scmp.ne.s32.totalorder %s295, %s297
    %p301 = scmp.eq.s32.totalorder %s30, 0
    %p302 = por %p300, %p301
    %p303 = scmp.ne.s32.totalorder %s295, %s297
    %p304 = scmp.eq.s32.totalorder %s35, 1
    %p305 = por %p303, %p304
    %p306 = scmp.ne.s32.totalorder %s297, %s298
    %p307 = scmp.eq.s32.totalorder %s35, 0
    %p308 = por %p306, %p307
    %p309 = scmp.ne.s32.totalorder %s297, %s298
    %p310 = scmp.eq.s32.totalorder %s36, 1
    %p311 = por %p309, %p310
    %p313 = scmp.ne.s32.totalorder %s298, %s312
    %p314 = scmp.eq.s32.totalorder %s36, 0
    %p315 = por %p313, %p314
    %s317 = sadd.s32 %s316, 1
    %p320 = scmp.eq.s32.totalorder %s30, 1
    %p321 = scmp.ne.s32.totalorder %s316, %s318
    %p322 = scmp.eq.s32.totalorder %s30, 0
    %p323 = por %p321, %p322
    %p324 = scmp.ne.s32.totalorder %s316, %s318
    %p325 = scmp.eq.s32.totalorder %s35, 1
    %p326 = por %p324, %p325
    %p327 = scmp.ne.s32.totalorder %s318, %s319
    %p328 = scmp.eq.s32.totalorder %s35, 0
    %p329 = por %p327, %p328
    %p330 = scmp.ne.s32.totalorder %s318, %s319
    %p331 = scmp.eq.s32.totalorder %s36, 1
    %p332 = por %p330, %p331
    %p334 = scmp.ne.s32.totalorder %s319, %s333
    %p335 = scmp.eq.s32.totalorder %s36, 0
    %p336 = por %p334, %p335
    %s338 = sadd.s32 %s337, 1
    %p341 = scmp.eq.s32.totalorder %s30, 1
    %p342 = scmp.ne.s32.totalorder %s337, %s339
    %p343 = scmp.eq.s32.totalorder %s30, 0
    %p344 = por %p342, %p343
    %p345 = scmp.ne.s32.totalorder %s337, %s339
    %p346 = scmp.eq.s32.totalorder %s35, 1
    %p347 = por %p345, %p346
    %p348 = scmp.ne.s32.totalorder %s339, %s340
    %p349 = scmp.eq.s32.totalorder %s35, 0
    %p350 = por %p348, %p349
    %p351 = scmp.ne.s32.totalorder %s339, %s340
    %p352 = scmp.eq.s32.totalorder %s36, 1
    %p353 = por %p351, %p352
    %p355 = scmp.ne.s32.totalorder %s340, %s354
    %p356 = scmp.eq.s32.totalorder %s36, 0
    %p357 = por %p355, %p356
    %s359 = sadd.s32 %s358, 1
    %p362 = scmp.eq.s32.totalorder %s30, 1
    %p363 = scmp.ne.s32.totalorder %s358, %s360
    %p364 = scmp.eq.s32.totalorder %s30, 0
    %p365 = por %p363, %p364
    %p366 = scmp.ne.s32.totalorder %s358, %s360
    %p367 = scmp.eq.s32.totalorder %s35, 1
    %p368 = por %p366, %p367
    %p369 = scmp.ne.s32.totalorder %s360, %s361
    %p370 = scmp.eq.s32.totalorder %s35, 0
    %p371 = por %p369, %p370
    %p372 = scmp.ne.s32.totalorder %s360, %s361
    %p373 = scmp.eq.s32.totalorder %s36, 1
    %p374 = por %p372, %p373
    %p376 = scmp.ne.s32.totalorder %s361, %s375
    %p377 = scmp.eq.s32.totalorder %s36, 0
    %p378 = por %p376, %p377
    %s380 = sadd.s32 %s379, 1
    %p383 = scmp.eq.s32.totalorder %s30, 1
    %p384 = scmp.ne.s32.totalorder %s379, %s381
    %p385 = scmp.eq.s32.totalorder %s30, 0
    %p386 = por %p384, %p385
    %p387 = scmp.ne.s32.totalorder %s379, %s381
    %p388 = scmp.eq.s32.totalorder %s35, 1
    %p389 = por %p387, %p388
    %p390 = scmp.ne.s32.totalorder %s381, %s382
    %p391 = scmp.eq.s32.totalorder %s35, 0
    %p392 = por %p390, %p391
    %p393 = scmp.ne.s32.totalorder %s381, %s382
    %p394 = scmp.eq.s32.totalorder %s36, 1
    %p395 = por %p393, %p394
    %p397 = scmp.ne.s32.totalorder %s382, %s396
    %p398 = scmp.eq.s32.totalorder %s36, 0
    %p399 = por %p397, %p398
    %s401 = sadd.s32 %s400, 1
    %p404 = scmp.eq.s32.totalorder %s30, 1
    %p405 = scmp.ne.s32.totalorder %s400, %s402
    %p406 = scmp.eq.s32.totalorder %s30, 0
    %p407 = por %p405, %p406
    %p408 = scmp.ne.s32.totalorder %s400, %s402
    %p409 = scmp.eq.s32.totalorder %s35, 1
    %p410 = por %p408, %p409
    %p411 = scmp.ne.s32.totalorder %s402, %s403
    %p412 = scmp.eq.s32.totalorder %s35, 0
    %p413 = por %p411, %p412
    %p414 = scmp.ne.s32.totalorder %s402, %s403
    %p415 = scmp.eq.s32.totalorder %s36, 1
    %p416 = por %p414, %p415
    %p418 = scmp.ne.s32.totalorder %s403, %s417
    %p419 = scmp.eq.s32.totalorder %s36, 0
    %p420 = por %p418, %p419
    %s422 = sadd.s32 %s421, 1
    %p425 = scmp.eq.s32.totalorder %s30, 1
    %p426 = scmp.ne.s32.totalorder %s421, %s423
    %p427 = scmp.eq.s32.totalorder %s30, 0
    %p428 = por %p426, %p427
    %p429 = scmp.ne.s32.totalorder %s421, %s423
    %p430 = scmp.eq.s32.totalorder %s35, 1
    %p431 = por %p429, %p430
    %p432 = scmp.ne.s32.totalorder %s423, %s424
    %p433 = scmp.eq.s32.totalorder %s35, 0
    %p434 = por %p432, %p433
    %p435 = scmp.ne.s32.totalorder %s423, %s424
    %p436 = scmp.eq.s32.totalorder %s36, 1
    %p437 = por %p435, %p436
    %p439 = scmp.ne.s32.totalorder %s424, %s438
    %p440 = scmp.eq.s32.totalorder %s36, 0
    %p441 = por %p439, %p440
    %s443 = sadd.s32 %s442, 1
    %p446 = scmp.eq.s32.totalorder %s30, 1
    %p447 = scmp.ne.s32.totalorder %s442, %s444
    %p448 = scmp.eq.s32.totalorder %s30, 0
    %p449 = por %p447, %p448
    %p450 = scmp.ne.s32.totalorder %s442, %s444
    %p451 = scmp.eq.s32.totalorder %s35, 1
    %p452 = por %p450, %p451
    %p453 = scmp.ne.s32.totalorder %s444, %s445
    %p454 = scmp.eq.s32.totalorder %s35, 0
    %p455 = por %p453, %p454
    %p456 = scmp.ne.s32.totalorder %s444, %s445
    %p457 = scmp.eq.s32.totalorder %s36, 1
    %p458 = por %p456, %p457
    %p460 = scmp.ne.s32.totalorder %s445, %s459
    %p461 = scmp.eq.s32.totalorder %s36, 0
    %p462 = por %p460, %p461
    %s464 = sadd.s32 %s463, 1
    %p467 = scmp.eq.s32.totalorder %s30, 1
    %p468 = scmp.ne.s32.totalorder %s463, %s465
    %p469 = scmp.eq.s32.totalorder %s30, 0
    %p470 = por %p468, %p469
    %p471 = scmp.ne.s32.totalorder %s463, %s465
    %p472 = scmp.eq.s32.totalorder %s35, 1
    %p473 = por %p471, %p472
    %p474 = scmp.ne.s32.totalorder %s465, %s466
    %p475 = scmp.eq.s32.totalorder %s35, 0
    %p476 = por %p474, %p475
    %p477 = scmp.ne.s32.totalorder %s465, %s466
    %p478 = scmp.eq.s32.totalorder %s36, 1
    %p479 = por %p477, %p478
    %p481 = scmp.ne.s32.totalorder %s466, %s480
    %p482 = scmp.eq.s32.totalorder %s36, 0
    %p483 = por %p481, %p482
    %s485 = sadd.s32 %s484, 1
    %p488 = scmp.eq.s32.totalorder %s30, 1
    %p489 = scmp.ne.s32.totalorder %s484, %s486
    %p490 = scmp.eq.s32.totalorder %s30, 0
    %p491 = por %p489, %p490
    %p492 = scmp.ne.s32.totalorder %s484, %s486
    %p493 = scmp.eq.s32.totalorder %s35, 1
    %p494 = por %p492, %p493
    %p495 = scmp.ne.s32.totalorder %s486, %s487
    %p496 = scmp.eq.s32.totalorder %s35, 0
    %p497 = por %p495, %p496
    %p498 = scmp.ne.s32.totalorder %s486, %s487
    %p499 = scmp.eq.s32.totalorder %s36, 1
    %p500 = por %p498, %p499
    %p502 = scmp.ne.s32.totalorder %s487, %s501
    %p503 = scmp.eq.s32.totalorder %s36, 0
    %p504 = por %p502, %p503
    %s506 = sadd.s32 %s505, 1
    %p509 = scmp.eq.s32.totalorder %s30, 1
    %p510 = scmp.ne.s32.totalorder %s505, %s507
    %p511 = scmp.eq.s32.totalorder %s30, 0
    %p512 = por %p510, %p511
    %p513 = scmp.ne.s32.totalorder %s505, %s507
    %p514 = scmp.eq.s32.totalorder %s35, 1
    %p515 = por %p513, %p514
    %p516 = scmp.ne.s32.totalorder %s507, %s508
    %p517 = scmp.eq.s32.totalorder %s35, 0
    %p518 = por %p516, %p517
    %p519 = scmp.ne.s32.totalorder %s507, %s508
    %p520 = scmp.eq.s32.totalorder %s36, 1
    %p521 = por %p519, %p520
    %p523 = scmp.ne.s32.totalorder %s508, %s522
    %p524 = scmp.eq.s32.totalorder %s36, 0
    %p525 = por %p523, %p524
    %s527 = sadd.s32 %s526, 1
    %p530 = scmp.eq.s32.totalorder %s30, 1
    %p531 = scmp.ne.s32.totalorder %s526, %s528
    %p532 = scmp.eq.s32.totalorder %s30, 0
    %p533 = por %p531, %p532
    %p534 = scmp.ne.s32.totalorder %s526, %s528
    %p535 = scmp.eq.s32.totalorder %s35, 1
    %p536 = por %p534, %p535
    %p537 = scmp.ne.s32.totalorder %s528, %s529
    %p538 = scmp.eq.s32.totalorder %s35, 0
    %p539 = por %p537, %p538
    %p540 = scmp.ne.s32.totalorder %s528, %s529
    %p541 = scmp.eq.s32.totalorder %s36, 1
    %p542 = por %p540, %p541
    %p544 = scmp.ne.s32.totalorder %s529, %s543
    %p545 = scmp.eq.s32.totalorder %s36, 0
    %p546 = por %p544, %p545
    %s547 = ssub.s32 %s30, %s37
    %p548 = scmp.eq.s32.totalorder %s547, 0
    %s550 = sadd.s32 %s549, 1
    %s551 = scalar_select %p548, %s549, %s550
    %p554 = pneg %p548
    %p555 = scmp.eq.s32.totalorder %s30, 1
    %p556 = por %p554, %p555
    %p557 = scmp.ne.s32.totalorder %s549, %s552
    %p558 = scmp.eq.s32.totalorder %s30, 0
    %p559 = por %p557, %p558
    %p560 = scmp.ne.s32.totalorder %s549, %s552
    %p561 = scmp.eq.s32.totalorder %s35, 1
    %p562 = por %p560, %p561
    %p563 = scmp.ne.s32.totalorder %s552, %s553
    %p564 = scmp.eq.s32.totalorder %s35, 0
    %p565 = por %p563, %p564
    %p566 = scmp.ne.s32.totalorder %s552, %s553
    %p567 = scmp.eq.s32.totalorder %s36, 1
    %p568 = por %p566, %p567
    %p570 = scmp.ne.s32.totalorder %s553, %s569
    %p571 = scmp.eq.s32.totalorder %s36, 0
    %p572 = por %p570, %p571
    %p573 = scmp.le.s32.totalorder 1, %s30
    %p574 = scmp.lt.s32.totalorder %s30, 3
    %p575 = pnand %p573, %p574
    %p576 = pneg %p575
    // Predicated region
    $region9: #{model_forward.1} parent=5 // pred_check
      _
    $region10: #{model_forward.1} parent=5 // pred_check_branch
      %578 = sbr.rel (%p575) target = $region12
    $region11: #{model_forward.1} parent=5 // pred_region
      %s579 = ssub.s32 %s30, 1
      // Predicated region
      $region13: #{model_forward.1} parent=11 // pred_check
        %p580 = pneg %p77
      $region14: #{model_forward.1} parent=11 // pred_check_branch
        %582 = sbr.rel (%p580) target = $region16
      $region15: #{model_forward.1} parent=11 // pred_region
        _
      $region16: #{model_forward.1} parent=11 // pred_fallthru
        _
      // Predicated region
      $region17: #{model_forward.1} parent=11 // pred_check
        %p583 = pneg %p98
      $region18: #{model_forward.1} parent=11 // pred_check_branch
        %585 = sbr.rel (%p583) target = $region20
      $region19: #{model_forward.1} parent=11 // pred_region
        _
      $region20: #{model_forward.1} parent=11 // pred_fallthru
        _
      // Predicated region
      $region21: #{model_forward.1} parent=11 // pred_check
        %p586 = pneg %p119
      $region22: #{model_forward.1} parent=11 // pred_check_branch
        %588 = sbr.rel (%p586) target = $region24
      $region23: #{model_forward.1} parent=11 // pred_region
        _
      $region24: #{model_forward.1} parent=11 // pred_fallthru
        _
      // Predicated region
      $region25: #{model_forward.1} parent=11 // pred_check
        %p589 = pneg %p140
      $region26: #{model_forward.1} parent=11 // pred_check_branch
        %591 = sbr.rel (%p589) target = $region28
      $region27: #{model_forward.1} parent=11 // pred_region
        _
      $region28: #{model_forward.1} parent=11 // pred_fallthru
        _
      // Predicated region
      $region29: #{model_forward.1} parent=11 // pred_check
        %p592 = pneg %p161
      $region30: #{model_forward.1} parent=11 // pred_check_branch
        %594 = sbr.rel (%p592) target = $region32
      $region31: #{model_forward.1} parent=11 // pred_region
        _
      $region32: #{model_forward.1} parent=11 // pred_fallthru
        _
      // Predicated region
      $region33: #{model_forward.1} parent=11 // pred_check
        %p595 = pneg %p182
      $region34: #{model_forward.1} parent=11 // pred_check_branch
        %597 = sbr.rel (%p595) target = $region36
      $region35: #{model_forward.1} parent=11 // pred_region
        _
      $region36: #{model_forward.1} parent=11 // pred_fallthru
        _
      // Predicated region
      $region37: #{model_forward.1} parent=11 // pred_check
        %p598 = pneg %p203
      $region38: #{model_forward.1} parent=11 // pred_check_branch
        %600 = sbr.rel (%p598) target = $region40
      $region39: #{model_forward.1} parent=11 // pred_region
        _
      $region40: #{model_forward.1} parent=11 // pred_fallthru
        _
      // Predicated region
      $region41: #{model_forward.1} parent=11 // pred_check
        %p601 = pneg %p224
      $region42: #{model_forward.1} parent=11 // pred_check_branch
        %603 = sbr.rel (%p601) target = $region44
      $region43: #{model_forward.1} parent=11 // pred_region
        _
      $region44: #{model_forward.1} parent=11 // pred_fallthru
        _
      // Predicated region
      $region45: #{model_forward.1} parent=11 // pred_check
        %p604 = pneg %p245
      $region46: #{model_forward.1} parent=11 // pred_check_branch
        %606 = sbr.rel (%p604) target = $region48
      $region47: #{model_forward.1} parent=11 // pred_region
        _
      $region48: #{model_forward.1} parent=11 // pred_fallthru
        _
      // Predicated region
      $region49: #{model_forward.1} parent=11 // pred_check
        %p607 = pneg %p266
      $region50: #{model_forward.1} parent=11 // pred_check_branch
        %609 = sbr.rel (%p607) target = $region52
      $region51: #{model_forward.1} parent=11 // pred_region
        _
      $region52: #{model_forward.1} parent=11 // pred_fallthru
        _
      // Predicated region
      $region53: #{model_forward.1} parent=11 // pred_check
        %p610 = pneg %p287
      $region54: #{model_forward.1} parent=11 // pred_check_branch
        %612 = sbr.rel (%p610) target = $region56
      $region55: #{model_forward.1} parent=11 // pred_region
        _
      $region56: #{model_forward.1} parent=11 // pred_fallthru
        _
      // Predicated region
      $region57: #{model_forward.1} parent=11 // pred_check
        %p613 = pneg %p308
      $region58: #{model_forward.1} parent=11 // pred_check_branch
        %615 = sbr.rel (%p613) target = $region60
      $region59: #{model_forward.1} parent=11 // pred_region
        _
      $region60: #{model_forward.1} parent=11 // pred_fallthru
        _
      // Predicated region
      $region61: #{model_forward.1} parent=11 // pred_check
        %p616 = pneg %p329
      $region62: #{model_forward.1} parent=11 // pred_check_branch
        %618 = sbr.rel (%p616) target = $region64
      $region63: #{model_forward.1} parent=11 // pred_region
        _
      $region64: #{model_forward.1} parent=11 // pred_fallthru
        _
      // Predicated region
      $region65: #{model_forward.1} parent=11 // pred_check
        %p619 = pneg %p350
      $region66: #{model_forward.1} parent=11 // pred_check_branch
        %621 = sbr.rel (%p619) target = $region68
      $region67: #{model_forward.1} parent=11 // pred_region
        _
      $region68: #{model_forward.1} parent=11 // pred_fallthru
        _
      // Predicated region
      $region69: #{model_forward.1} parent=11 // pred_check
        %p622 = pneg %p371
      $region70: #{model_forward.1} parent=11 // pred_check_branch
        %624 = sbr.rel (%p622) target = $region72
      $region71: #{model_forward.1} parent=11 // pred_region
        _
      $region72: #{model_forward.1} parent=11 // pred_fallthru
        _
      // Predicated region
      $region73: #{model_forward.1} parent=11 // pred_check
        %p625 = pneg %p392
      $region74: #{model_forward.1} parent=11 // pred_check_branch
        %627 = sbr.rel (%p625) target = $region76
      $region75: #{model_forward.1} parent=11 // pred_region
        _
      $region76: #{model_forward.1} parent=11 // pred_fallthru
        _
      // Predicated region
      $region77: #{model_forward.1} parent=11 // pred_check
        %p628 = pneg %p413
      $region78: #{model_forward.1} parent=11 // pred_check_branch
        %630 = sbr.rel (%p628) target = $region80
      $region79: #{model_forward.1} parent=11 // pred_region
        _
      $region80: #{model_forward.1} parent=11 // pred_fallthru
        _
      // Predicated region
      $region81: #{model_forward.1} parent=11 // pred_check
        %p631 = pneg %p434
      $region82: #{model_forward.1} parent=11 // pred_check_branch
        %633 = sbr.rel (%p631) target = $region84
      $region83: #{model_forward.1} parent=11 // pred_region
        _
      $region84: #{model_forward.1} parent=11 // pred_fallthru
        _
      // Predicated region
      $region85: #{model_forward.1} parent=11 // pred_check
        %p634 = pneg %p455
      $region86: #{model_forward.1} parent=11 // pred_check_branch
        %636 = sbr.rel (%p634) target = $region88
      $region87: #{model_forward.1} parent=11 // pred_region
        _
      $region88: #{model_forward.1} parent=11 // pred_fallthru
        _
      // Predicated region
      $region89: #{model_forward.1} parent=11 // pred_check
        %p637 = pneg %p476
      $region90: #{model_forward.1} parent=11 // pred_check_branch
        %639 = sbr.rel (%p637) target = $region92
      $region91: #{model_forward.1} parent=11 // pred_region
        _
      $region92: #{model_forward.1} parent=11 // pred_fallthru
        _
      // Predicated region
      $region93: #{model_forward.1} parent=11 // pred_check
        %p640 = pneg %p497
      $region94: #{model_forward.1} parent=11 // pred_check_branch
        %642 = sbr.rel (%p640) target = $region96
      $region95: #{model_forward.1} parent=11 // pred_region
        _
      $region96: #{model_forward.1} parent=11 // pred_fallthru
        _
      // Predicated region
      $region97: #{model_forward.1} parent=11 // pred_check
        %p643 = pneg %p518
      $region98: #{model_forward.1} parent=11 // pred_check_branch
        %645 = sbr.rel (%p643) target = $region100
      $region99: #{model_forward.1} parent=11 // pred_region
        _
      $region100: #{model_forward.1} parent=11 // pred_fallthru
        _
      // Predicated region
      $region101: #{model_forward.1} parent=11 // pred_check
        %p646 = pneg %p539
      $region102: #{model_forward.1} parent=11 // pred_check_branch
        %648 = sbr.rel (%p646) target = $region104
      $region103: #{model_forward.1} parent=11 // pred_region
        _
      $region104: #{model_forward.1} parent=11 // pred_fallthru
        _
    $region12: #{model_forward.1} parent=5 // pred_fallthru
      _
    %p649 = scmp.lt.s32.totalorder %s30, 2
    // Predicated region
    $region105: #{model_forward.1} parent=5 // pred_check
      %p650 = pneg %p649
    $region106: #{model_forward.1} parent=5 // pred_check_branch
      %652 = sbr.rel (%p650) target = $region108
    $region107: #{model_forward.1} parent=5 // pred_region
      // Predicated region
      $region109: #{model_forward.1} parent=107 // pred_check
        %p653 = pneg %p50
      $region110: #{model_forward.1} parent=107 // pred_check_branch
        %655 = sbr.rel (%p653) target = $region112
      $region111: #{model_forward.1} parent=107 // pred_region
        %p656 = scmp.lt.s32.totalorder %s30, 1
        %s657 = scalar_select %p656, %s30, 1
        %s658 = smul.addr %s657, 32
        %s659 = smul.addr %s658, 4
        %s660 = scalar_lea.vmem %s0, %s659
      $region112: #{model_forward.1} parent=107 // pred_fallthru
        _
    $region108: #{model_forward.1} parent=5 // pred_fallthru
      _
    %p661 = scmp.le.s32.totalorder 1, %s30
    %p662 = scmp.lt.s32.totalorder %s30, 3
    %p663 = pnand %p661, %p662
    %p664 = pneg %p663
    // Predicated region
    $region113: #{model_forward.1} parent=5 // pred_check
      _
    $region114: #{model_forward.1} parent=5 // pred_check_branch
      %666 = sbr.rel (%p663) target = $region116
    $region115: #{model_forward.1} parent=5 // pred_region
      %s667 = ssub.s32 %s30, 1
      %p668 = scmp.lt.s32.totalorder %s35, 1
      %s669 = scalar_select %p668, %s35, 1
      %s670 = smul.addr %s669, 32
      %s671 = smul.addr %s670, 4
      %s672 = scalar_lea.vmem %s0, %s671
      %p673 = pneg %p56
      %p674 = pneg %p53
      %p675 = pneg %p77
      %p676 = pneg %p74
      %p677 = pneg %p98
      %p678 = pneg %p95
      %p679 = pneg %p119
      %p680 = pneg %p116
      %p681 = pneg %p140
      %p682 = pneg %p137
      %p683 = pneg %p161
      %p684 = pneg %p158
      %p685 = pneg %p182
      %p686 = pneg %p179
      %p687 = pneg %p203
      %p688 = pneg %p200
      %p689 = pneg %p224
      %p690 = pneg %p221
      %p691 = pneg %p245
      %p692 = pneg %p242
      %p693 = pneg %p266
      %p694 = pneg %p263
      %p695 = pneg %p287
      %p696 = pneg %p284
      %p697 = pneg %p308
      %p698 = pneg %p305
      %p699 = pneg %p329
      %p700 = pneg %p326
      %p701 = pneg %p350
      %p702 = pneg %p347
      %p703 = pneg %p371
      %p704 = pneg %p368
      %p705 = pneg %p392
      %p706 = pneg %p389
      %p707 = pneg %p413
      %p708 = pneg %p410
      %p709 = pneg %p434
      %p710 = pneg %p431
      %p711 = pneg %p455
      %p712 = pneg %p452
      %p713 = pneg %p476
      %p714 = pneg %p473
      %p715 = pneg %p497
      %p716 = pneg %p494
      %p717 = pneg %p518
      %p718 = pneg %p515
      %p719 = pneg %p539
      %p720 = pneg %p536
      %p721 = pneg %p565
      %p722 = pneg %p562
      %p723 = scmp.lt.s32.totalorder %s35, 1
      %s724 = scalar_select %p723, %s35, 1
      %s725 = smul.addr %s724, 8
      %s726 = smul.addr %s725, 4
      %s727 = scalar_lea.vmem %s24, %s726
      %p728 = scmp.lt.s32.totalorder %s35, 1
      %s729 = scalar_select %p728, %s35, 1
      %s730 = smul.addr %s729, 32
      %s731 = smul.addr %s730, 4
      %s732 = scalar_lea.vmem %s0, %s731
      %p733 = scmp.lt.s32.totalorder %s35, 1
      %s734 = scalar_select %p733, %s35, 1
      %s735 = smul.addr %s734, 8
      %s736 = smul.addr %s735, 4
      %s737 = scalar_lea.vmem %s24, %s736
      %v739 = vld [vmem:[%s732] sm:$0xf]
      %v740 = vld [vmem:[%s732 + $0x4] sm:$0xf]
      %v741 = vld [vmem:[%s732 + $0x8] sm:$0xf]
      %v742 = vld [vmem:[%s732 + $0xc] sm:$0xf]
      %v743 = vld [vmem:[%s732 + $0x10] sm:$0xf]
      %v744 = vld [vmem:[%s732 + $0x14] sm:$0xf]
      %v745 = vld [vmem:[%s732 + $0x18] sm:$0xf]
      %v746 = vld [vmem:[%s732 + $0x1c] sm:$0xf]
      %v747 = vld [vmem:[%s732 + $0x20] sm:$0xf]
      %v748 = vld [vmem:[%s732 + $0x24] sm:$0xf]
      %v749 = vld [vmem:[%s732 + $0x28] sm:$0xf]
      %v750 = vld [vmem:[%s732 + $0x2c] sm:$0xf]
      %v751 = vld [vmem:[%s732 + $0x30] sm:$0xf]
      %v752 = vld [vmem:[%s732 + $0x34] sm:$0xf]
      %v753 = vld [vmem:[%s732 + $0x38] sm:$0xf]
      %v754 = vld [vmem:[%s732 + $0x3c] sm:$0xf]
      %v755 = vld [vmem:[%s732 + $0x40] sm:$0xf]
      %v756 = vld [vmem:[%s732 + $0x44] sm:$0xf]
      %v757 = vld [vmem:[%s732 + $0x48] sm:$0xf]
      %v758 = vld [vmem:[%s732 + $0x4c] sm:$0xf]
      %v759 = vld [vmem:[%s732 + $0x50] sm:$0xf]
      %v760 = vld [vmem:[%s732 + $0x54] sm:$0xf]
      %v761 = vld [vmem:[%s732 + $0x58] sm:$0xf]
      %v762 = vld [vmem:[%s732 + $0x5c] sm:$0xf]
      %v763 = vld [vmem:[%s732 + $0x60] sm:$0xf]
      %v764 = vld [vmem:[%s732 + $0x64] sm:$0xf]
      %v765 = vld [vmem:[%s732 + $0x68] sm:$0xf]
      %v766 = vld [vmem:[%s732 + $0x6c] sm:$0xf]
      %v767 = vld [vmem:[%s732 + $0x70] sm:$0xf]
      %v768 = vld [vmem:[%s732 + $0x74] sm:$0xf]
      %v769 = vld [vmem:[%s732 + $0x78] sm:$0xf]
      %v770 = vld [vmem:[%s732 + $0x7c] sm:$0xf]
      %v771 = vld [vmem:[%s1] sm:$0xf]
      %v772 = vld [vmem:[%s1 + $0x4] sm:$0xf]
      %v773 = vld [vmem:[%s2] sm:$0x1]
      %v775 = vlaneseq
      %v776 = vshrl.u32 %v775, 7
      %v777 = vsub.s32 0, %v776
      %v778 = vrot.slane %v773, %v777
      %v812 = vunpack.c.l.b16 %v739
      %v813 = vunpack.c.l.b16 %v740
      %v814 = vunpack.c.l.b16 %v741
      %v815 = vunpack.c.l.b16 %v742
      %v816 = vunpack.c.l.b16 %v743
      %v817 = vunpack.c.l.b16 %v744
      %v818 = vunpack.c.l.b16 %v745
      %v819 = vunpack.c.l.b16 %v746
      %v820 = vunpack.c.l.b16 %v747
      %v821 = vunpack.c.l.b16 %v748
      %v822 = vunpack.c.l.b16 %v749
      %v823 = vunpack.c.l.b16 %v750
      %v824 = vunpack.c.l.b16 %v751
      %v825 = vunpack.c.l.b16 %v752
      %v826 = vunpack.c.l.b16 %v753
      %v827 = vunpack.c.l.b16 %v754
      %v828 = vunpack.c.l.b16 %v755
      %v829 = vunpack.c.l.b16 %v756
      %v830 = vunpack.c.l.b16 %v757
      %v831 = vunpack.c.l.b16 %v758
      %v832 = vunpack.c.l.b16 %v759
      %v833 = vunpack.c.l.b16 %v760
      %v834 = vunpack.c.l.b16 %v761
      %v835 = vunpack.c.l.b16 %v762
      %v836 = vunpack.c.l.b16 %v763
      %v837 = vunpack.c.l.b16 %v764
      %v838 = vunpack.c.l.b16 %v765
      %v839 = vunpack.c.l.b16 %v766
      %v840 = vunpack.c.l.b16 %v767
      %v841 = vunpack.c.l.b16 %v768
      %v842 = vunpack.c.l.b16 %v769
      %v843 = vunpack.c.l.b16 %v770
      %v844 = vpack.c.b16 %v813, %v812
      %v845 = vpack.c.b16 %v815, %v814
      %v846 = vpack.c.b16 %v817, %v816
      %v847 = vpack.c.b16 %v819, %v818
      %v848 = vpack.c.b16 %v821, %v820
      %v849 = vpack.c.b16 %v823, %v822
      %v850 = vpack.c.b16 %v825, %v824
      %v851 = vpack.c.b16 %v827, %v826
      %v852 = vpack.c.b16 %v829, %v828
      %v853 = vpack.c.b16 %v831, %v830
      %v854 = vpack.c.b16 %v833, %v832
      %v855 = vpack.c.b16 %v835, %v834
      %v856 = vpack.c.b16 %v837, %v836
      %v857 = vpack.c.b16 %v839, %v838
      %v858 = vpack.c.b16 %v841, %v840
      %v859 = vpack.c.b16 %v843, %v842
      %v862 = vunpack.c.l.b16 %v771
      %v863 = vunpack.c.l.b16 %v772
      %v864 = vpack.c.b16 %v863, %v862
      %vm866 = vcmask 130048
      %v868 = vsel %vm866, %v844, 0
      %v871 = vsel %vm866, %v845, 0
      %v874 = vsel %vm866, %v846, 0
      %v877 = vsel %vm866, %v847, 0
      %v880 = vsel %vm866, %v848, 0
      %v883 = vsel %vm866, %v849, 0
      %v886 = vsel %vm866, %v850, 0
      %v889 = vsel %vm866, %v851, 0
      %v892 = vsel %vm866, %v852, 0
      %v895 = vsel %vm866, %v853, 0
      %v898 = vsel %vm866, %v854, 0
      %v901 = vsel %vm866, %v855, 0
      %v904 = vsel %vm866, %v856, 0
      %v907 = vsel %vm866, %v857, 0
      %v910 = vsel %vm866, %v858, 0
      %v913 = vsel %vm866, %v859, 0
      %915 = vmatprep.subr.bf16.mxu0 0
      %916 = vmatpush1.bf16.msra.mxu0 0
      %917 = vmatprep.subr.bf16.mxu0 0
      %918 = vmatpush1.bf16.msra.mxu0 0
      %919 = vmatprep.subr.bf16.mxu0 0
      %920 = vmatpush1.bf16.msra.mxu0 0
      %921 = vmatprep.subr.bf16.mxu0 0
      %922 = vmatpush1.bf16.msra.mxu0 0
      %923 = vmatprep.subr.bf16.mxu0 0
      %924 = vmatpush1.bf16.msra.mxu0 0
      %925 = vmatprep.subr.bf16.mxu0 0
      %926 = vmatpush1.bf16.msra.mxu0 0
      %927 = vmatprep.subr.bf16.mxu0 0
      %928 = vmatpush1.bf16.msra.mxu0 0
      %929 = vmatprep.subr.bf16.mxu0 0
      %930 = vmatpush1.bf16.msra.mxu0 %v864
      %931 = vmatprep.subr.bf16.mxu0 0
      %932 = vmatpush2.bf16.msra.mxu0 0
      %933 = vmatprep.subr.bf16.mxu0 0
      %934 = vmatpush2.bf16.msra.mxu0 0
      %935 = vmatprep.subr.bf16.mxu0 0
      %936 = vmatpush2.bf16.msra.mxu0 0
      %937 = vmatprep.subr.bf16.mxu0 0
      %938 = vmatpush2.bf16.msra.mxu0 0
      %939 = vmatprep.subr.bf16.mxu0 0
      %940 = vmatpush2.bf16.msra.mxu0 0
      %941 = vmatprep.subr.bf16.mxu0 0
      %942 = vmatpush2.bf16.msra.mxu0 0
      %943 = vmatprep.subr.bf16.mxu0 0
      %944 = vmatpush2.bf16.msra.mxu0 0
      %945 = vmatprep.subr.bf16.mxu0 0
      %946 = vmatpush2.bf16.msra.mxu0 0
      %947 = vmatprep.mubr.bf16.mxu0 0
      %948 = vmatmul.mubr.bf16.gmra.mxu0 %v868
      %v949 = vpop.f32.mrf.mxu0
      %v950 = vadd.f32 %v778, %v949
      %v951 = vpop.f32.mrf.mxu0
      %v952 = vpop.f32.mrf.mxu0
      %v953 = vadd.f32 %v778, %v952
      %v954 = vpop.f32.mrf.mxu0
      %955 = vmatprep.mubr.bf16.mxu0 0
      %956 = vmatmul.mubr.bf16.gmra.mxu0 %v871
      %v957 = vpop.f32.mrf.mxu0
      %v958 = vadd.f32 %v778, %v957
      %v959 = vpop.f32.mrf.mxu0
      %v960 = vpop.f32.mrf.mxu0
      %v961 = vadd.f32 %v778, %v960
      %v962 = vpop.f32.mrf.mxu0
      %963 = vmatprep.mubr.bf16.mxu0 0
      %964 = vmatmul.mubr.bf16.gmra.mxu0 %v874
      %v965 = vpop.f32.mrf.mxu0
      %v966 = vadd.f32 %v778, %v965
      %v967 = vpop.f32.mrf.mxu0
      %v968 = vpop.f32.mrf.mxu0
      %v969 = vadd.f32 %v778, %v968
      %v970 = vpop.f32.mrf.mxu0
      %971 = vmatprep.mubr.bf16.mxu0 0
      %972 = vmatmul.mubr.bf16.gmra.mxu0 %v877
      %v973 = vpop.f32.mrf.mxu0
      %v974 = vadd.f32 %v778, %v973
      %v975 = vpop.f32.mrf.mxu0
      %v976 = vpop.f32.mrf.mxu0
      %v977 = vadd.f32 %v778, %v976
      %v978 = vpop.f32.mrf.mxu0
      %979 = vmatprep.mubr.bf16.mxu0 0
      %980 = vmatmul.mubr.bf16.gmra.mxu0 %v880
      %v981 = vpop.f32.mrf.mxu0
      %v982 = vadd.f32 %v778, %v981
      %v983 = vpop.f32.mrf.mxu0
      %v984 = vpop.f32.mrf.mxu0
      %v985 = vadd.f32 %v778, %v984
      %v986 = vpop.f32.mrf.mxu0
      %987 = vmatprep.mubr.bf16.mxu0 0
      %988 = vmatmul.mubr.bf16.gmra.mxu0 %v883
      %v989 = vpop.f32.mrf.mxu0
      %v990 = vadd.f32 %v778, %v989
      %v991 = vpop.f32.mrf.mxu0
      %v992 = vpop.f32.mrf.mxu0
      %v993 = vadd.f32 %v778, %v992
      %v994 = vpop.f32.mrf.mxu0
      %995 = vmatprep.mubr.bf16.mxu0 0
      %996 = vmatmul.mubr.bf16.gmra.mxu0 %v886
      %v997 = vpop.f32.mrf.mxu0
      %v998 = vadd.f32 %v778, %v997
      %v999 = vpop.f32.mrf.mxu0
      %v1000 = vpop.f32.mrf.mxu0
      %v1001 = vadd.f32 %v778, %v1000
      %v1002 = vpop.f32.mrf.mxu0
      %1003 = vmatprep.mubr.bf16.mxu0 0
      %1004 = vmatmul.mubr.bf16.gmra.mxu0 %v889
      %v1005 = vpop.f32.mrf.mxu0
      %v1006 = vadd.f32 %v778, %v1005
      %v1007 = vpop.f32.mrf.mxu0
      %v1008 = vpop.f32.mrf.mxu0
      %v1009 = vadd.f32 %v778, %v1008
      %v1010 = vpop.f32.mrf.mxu0
      %1011 = vmatprep.mubr.bf16.mxu0 0
      %1012 = vmatmul.mubr.bf16.gmra.mxu0 %v892
      %v1013 = vpop.f32.mrf.mxu0
      %v1014 = vadd.f32 %v778, %v1013
      %v1015 = vpop.f32.mrf.mxu0
      %v1016 = vpop.f32.mrf.mxu0
      %v1017 = vadd.f32 %v778, %v1016
      %v1018 = vpop.f32.mrf.mxu0
      %1019 = vmatprep.mubr.bf16.mxu0 0
      %1020 = vmatmul.mubr.bf16.gmra.mxu0 %v895
      %v1021 = vpop.f32.mrf.mxu0
      %v1022 = vadd.f32 %v778, %v1021
      %v1023 = vpop.f32.mrf.mxu0
      %v1024 = vpop.f32.mrf.mxu0
      %v1025 = vadd.f32 %v778, %v1024
      %v1026 = vpop.f32.mrf.mxu0
      %1027 = vmatprep.mubr.bf16.mxu0 0
      %1028 = vmatmul.mubr.bf16.gmra.mxu0 %v898
      %v1029 = vpop.f32.mrf.mxu0
      %v1030 = vadd.f32 %v778, %v1029
      %v1031 = vpop.f32.mrf.mxu0
      %v1032 = vpop.f32.mrf.mxu0
      %v1033 = vadd.f32 %v778, %v1032
      %v1034 = vpop.f32.mrf.mxu0
      %1035 = vmatprep.mubr.bf16.mxu0 0
      %1036 = vmatmul.mubr.bf16.gmra.mxu0 %v901
      %v1037 = vpop.f32.mrf.mxu0
      %v1038 = vadd.f32 %v778, %v1037
      %v1039 = vpop.f32.mrf.mxu0
      %v1040 = vpop.f32.mrf.mxu0
      %v1041 = vadd.f32 %v778, %v1040
      %v1042 = vpop.f32.mrf.mxu0
      %1043 = vmatprep.mubr.bf16.mxu0 0
      %1044 = vmatmul.mubr.bf16.gmra.mxu0 %v904
      %v1045 = vpop.f32.mrf.mxu0
      %v1046 = vadd.f32 %v778, %v1045
      %v1047 = vpop.f32.mrf.mxu0
      %v1048 = vpop.f32.mrf.mxu0
      %v1049 = vadd.f32 %v778, %v1048
      %v1050 = vpop.f32.mrf.mxu0
      %1051 = vmatprep.mubr.bf16.mxu0 0
      %1052 = vmatmul.mubr.bf16.gmra.mxu0 %v907
      %v1053 = vpop.f32.mrf.mxu0
      %v1054 = vadd.f32 %v778, %v1053
      %v1055 = vpop.f32.mrf.mxu0
      %v1056 = vpop.f32.mrf.mxu0
      %v1057 = vadd.f32 %v778, %v1056
      %v1058 = vpop.f32.mrf.mxu0
      %1059 = vmatprep.mubr.bf16.mxu0 0
      %1060 = vmatmul.mubr.bf16.gmra.mxu0 %v910
      %v1061 = vpop.f32.mrf.mxu0
      %v1062 = vadd.f32 %v778, %v1061
      %v1063 = vpop.f32.mrf.mxu0
      %v1064 = vpop.f32.mrf.mxu0
      %v1065 = vadd.f32 %v778, %v1064
      %v1066 = vpop.f32.mrf.mxu0
      %1067 = vmatprep.mubr.bf16.mxu0 0
      %1068 = vmatmul.mubr.bf16.gmra.mxu0 %v913
      %v1069 = vpop.f32.mrf.mxu0
      %v1070 = vadd.f32 %v778, %v1069
      %v1071 = vpop.f32.mrf.mxu0
      %v1072 = vpop.f32.mrf.mxu0
      %v1073 = vadd.f32 %v778, %v1072
      %v1074 = vpop.f32.mrf.mxu0
      %1075 = vdwg.mxu0
      %v1076 = vmul.f32 %v950, %v950
      %v1077 = vmul.f32 %v953, %v953
      %v1078 = vmul.f32 %v958, %v958
      %v1079 = vmul.f32 %v961, %v961
      %v1080 = vmul.f32 %v966, %v966
      %v1081 = vmul.f32 %v969, %v969
      %v1082 = vmul.f32 %v974, %v974
      %v1083 = vmul.f32 %v977, %v977
      %v1084 = vmul.f32 %v982, %v982
      %v1085 = vmul.f32 %v985, %v985
      %v1086 = vmul.f32 %v990, %v990
      %v1087 = vmul.f32 %v993, %v993
      %v1088 = vmul.f32 %v998, %v998
      %v1089 = vmul.f32 %v1001, %v1001
      %v1090 = vmul.f32 %v1006, %v1006
      %v1091 = vmul.f32 %v1009, %v1009
      %v1092 = vmul.f32 %v1014, %v1014
      %v1093 = vmul.f32 %v1017, %v1017
      %v1094 = vmul.f32 %v1022, %v1022
      %v1095 = vmul.f32 %v1025, %v1025
      %v1096 = vmul.f32 %v1030, %v1030
      %v1097 = vmul.f32 %v1033, %v1033
      %v1098 = vmul.f32 %v1038, %v1038
      %v1099 = vmul.f32 %v1041, %v1041
      %v1100 = vmul.f32 %v1046, %v1046
      %v1101 = vmul.f32 %v1049, %v1049
      %v1102 = vmul.f32 %v1054, %v1054
      %v1103 = vmul.f32 %v1057, %v1057
      %v1104 = vmul.f32 %v1062, %v1062
      %v1105 = vmul.f32 %v1065, %v1065
      %v1106 = vmul.f32 %v1070, %v1070
      %v1107 = vmul.f32 %v1073, %v1073
      %v1108 = vmul.f32 %v950, %v1076
      %v1109 = vmul.f32 %v953, %v1077
      %v1110 = vmul.f32 %v958, %v1078
      %v1111 = vmul.f32 %v961, %v1079
      %v1112 = vmul.f32 %v966, %v1080
      %v1113 = vmul.f32 %v969, %v1081
      %v1114 = vmul.f32 %v974, %v1082
      %v1115 = vmul.f32 %v977, %v1083
      %v1116 = vmul.f32 %v982, %v1084
      %v1117 = vmul.f32 %v985, %v1085
      %v1118 = vmul.f32 %v990, %v1086
      %v1119 = vmul.f32 %v993, %v1087
      %v1120 = vmul.f32 %v998, %v1088
      %v1121 = vmul.f32 %v1001, %v1089
      %v1122 = vmul.f32 %v1006, %v1090
      %v1123 = vmul.f32 %v1009, %v1091
      %v1124 = vmul.f32 %v1014, %v1092
      %v1125 = vmul.f32 %v1017, %v1093
      %v1126 = vmul.f32 %v1022, %v1094
      %v1127 = vmul.f32 %v1025, %v1095
      %v1128 = vmul.f32 %v1030, %v1096
      %v1129 = vmul.f32 %v1033, %v1097
      %v1130 = vmul.f32 %v1038, %v1098
      %v1131 = vmul.f32 %v1041, %v1099
      %v1132 = vmul.f32 %v1046, %v1100
      %v1133 = vmul.f32 %v1049, %v1101
      %v1134 = vmul.f32 %v1054, %v1102
      %v1135 = vmul.f32 %v1057, %v1103
      %v1136 = vmul.f32 %v1062, %v1104
      %v1137 = vmul.f32 %v1065, %v1105
      %v1138 = vmul.f32 %v1070, %v1106
      %v1139 = vmul.f32 %v1073, %v1107
      %v1140 = vmul.f32 %v1108, 0.044715
      %v1141 = vmul.f32 %v1109, 0.044715
      %v1142 = vmul.f32 %v1110, 0.044715
      %v1143 = vmul.f32 %v1111, 0.044715
      %v1144 = vmul.f32 %v1112, 0.044715
      %v1145 = vmul.f32 %v1113, 0.044715
      %v1146 = vmul.f32 %v1114, 0.044715
      %v1147 = vmul.f32 %v1115, 0.044715
      %v1148 = vmul.f32 %v1116, 0.044715
      %v1149 = vmul.f32 %v1117, 0.044715
      %v1150 = vmul.f32 %v1118, 0.044715
      %v1151 = vmul.f32 %v1119, 0.044715
      %v1152 = vmul.f32 %v1120, 0.044715
      %v1153 = vmul.f32 %v1121, 0.044715
      %v1154 = vmul.f32 %v1122, 0.044715
      %v1155 = vmul.f32 %v1123, 0.044715
      %v1156 = vmul.f32 %v1124, 0.044715
      %v1157 = vmul.f32 %v1125, 0.044715
      %v1158 = vmul.f32 %v1126, 0.044715
      %v1159 = vmul.f32 %v1127, 0.044715
      %v1160 = vmul.f32 %v1128, 0.044715
      %v1161 = vmul.f32 %v1129, 0.044715
      %v1162 = vmul.f32 %v1130, 0.044715
      %v1163 = vmul.f32 %v1131, 0.044715
      %v1164 = vmul.f32 %v1132, 0.044715
      %v1165 = vmul.f32 %v1133, 0.044715
      %v1166 = vmul.f32 %v1134, 0.044715
      %v1167 = vmul.f32 %v1135, 0.044715
      %v1168 = vmul.f32 %v1136, 0.044715
      %v1169 = vmul.f32 %v1137, 0.044715
      %v1170 = vmul.f32 %v1138, 0.044715
      %v1171 = vmul.f32 %v1139, 0.044715
      %v1172 = vadd.f32 %v950, %v1140
      %v1173 = vadd.f32 %v953, %v1141
      %v1174 = vadd.f32 %v958, %v1142
      %v1175 = vadd.f32 %v961, %v1143
      %v1176 = vadd.f32 %v966, %v1144
      %v1177 = vadd.f32 %v969, %v1145
      %v1178 = vadd.f32 %v974, %v1146
      %v1179 = vadd.f32 %v977, %v1147
      %v1180 = vadd.f32 %v982, %v1148
      %v1181 = vadd.f32 %v985, %v1149
      %v1182 = vadd.f32 %v990, %v1150
      %v1183 = vadd.f32 %v993, %v1151
      %v1184 = vadd.f32 %v998, %v1152
      %v1185 = vadd.f32 %v1001, %v1153
      %v1186 = vadd.f32 %v1006, %v1154
      %v1187 = vadd.f32 %v1009, %v1155
      %v1188 = vadd.f32 %v1014, %v1156
      %v1189 = vadd.f32 %v1017, %v1157
      %v1190 = vadd.f32 %v1022, %v1158
      %v1191 = vadd.f32 %v1025, %v1159
      %v1192 = vadd.f32 %v1030, %v1160
      %v1193 = vadd.f32 %v1033, %v1161
      %v1194 = vadd.f32 %v1038, %v1162
      %v1195 = vadd.f32 %v1041, %v1163
      %v1196 = vadd.f32 %v1046, %v1164
      %v1197 = vadd.f32 %v1049, %v1165
      %v1198 = vadd.f32 %v1054, %v1166
      %v1199 = vadd.f32 %v1057, %v1167
      %v1200 = vadd.f32 %v1062, %v1168
      %v1201 = vadd.f32 %v1065, %v1169
      %v1202 = vadd.f32 %v1070, %v1170
      %v1203 = vadd.f32 %v1073, %v1171
      %v1204 = vmul.f32 %v1172, 0.7978846
      %v1205 = vmul.f32 %v1173, 0.7978846
      %v1206 = vmul.f32 %v1174, 0.7978846
      %v1207 = vmul.f32 %v1175, 0.7978846
      %v1208 = vmul.f32 %v1176, 0.7978846
      %v1209 = vmul.f32 %v1177, 0.7978846
      %v1210 = vmul.f32 %v1178, 0.7978846
      %v1211 = vmul.f32 %v1179, 0.7978846
      %v1212 = vmul.f32 %v1180, 0.7978846
      %v1213 = vmul.f32 %v1181, 0.7978846
      %v1214 = vmul.f32 %v1182, 0.7978846
      %v1215 = vmul.f32 %v1183, 0.7978846
      %v1216 = vmul.f32 %v1184, 0.7978846
      %v1217 = vmul.f32 %v1185, 0.7978846
      %v1218 = vmul.f32 %v1186, 0.7978846
      %v1219 = vmul.f32 %v1187, 0.7978846
      %v1220 = vmul.f32 %v1188, 0.7978846
      %v1221 = vmul.f32 %v1189, 0.7978846
      %v1222 = vmul.f32 %v1190, 0.7978846
      %v1223 = vmul.f32 %v1191, 0.7978846
      %v1224 = vmul.f32 %v1192, 0.7978846
      %v1225 = vmul.f32 %v1193, 0.7978846
      %v1226 = vmul.f32 %v1194, 0.7978846
      %v1227 = vmul.f32 %v1195, 0.7978846
      %v1228 = vmul.f32 %v1196, 0.7978846
      %v1229 = vmul.f32 %v1197, 0.7978846
      %v1230 = vmul.f32 %v1198, 0.7978846
      %v1231 = vmul.f32 %v1199, 0.7978846
      %v1232 = vmul.f32 %v1200, 0.7978846
      %v1233 = vmul.f32 %v1201, 0.7978846
      %v1234 = vmul.f32 %v1202, 0.7978846
      %v1235 = vmul.f32 %v1203, 0.7978846
      %v1236 = vtanh.pop %v1204
      %v1237 = vtanh.pop %v1205
      %v1238 = vtanh.pop %v1206
      %v1239 = vtanh.pop %v1207
      %v1240 = vtanh.pop %v1208
      %v1241 = vtanh.pop %v1209
      %v1242 = vtanh.pop %v1210
      %v1243 = vtanh.pop %v1211
      %v1244 = vtanh.pop %v1212
      %v1245 = vtanh.pop %v1213
      %v1246 = vtanh.pop %v1214
      %v1247 = vtanh.pop %v1215
      %v1248 = vtanh.pop %v1216
      %v1249 = vtanh.pop %v1217
      %v1250 = vtanh.pop %v1218
      %v1251 = vtanh.pop %v1219
      %v1252 = vtanh.pop %v1220
      %v1253 = vtanh.pop %v1221
      %v1254 = vtanh.pop %v1222
      %v1255 = vtanh.pop %v1223
      %v1256 = vtanh.pop %v1224
      %v1257 = vtanh.pop %v1225
      %v1258 = vtanh.pop %v1226
      %v1259 = vtanh.pop %v1227
      %v1260 = vtanh.pop %v1228
      %v1261 = vtanh.pop %v1229
      %v1262 = vtanh.pop %v1230
      %v1263 = vtanh.pop %v1231
      %v1264 = vtanh.pop %v1232
      %v1265 = vtanh.pop %v1233
      %v1266 = vtanh.pop %v1234
      %v1267 = vtanh.pop %v1235
      %v1268 = vadd.f32 %v1236, 1.0
      %v1269 = vadd.f32 %v1237, 1.0
      %v1270 = vadd.f32 %v1238, 1.0
      %v1271 = vadd.f32 %v1239, 1.0
      %v1272 = vadd.f32 %v1240, 1.0
      %v1273 = vadd.f32 %v1241, 1.0
      %v1274 = vadd.f32 %v1242, 1.0
      %v1275 = vadd.f32 %v1243, 1.0
      %v1276 = vadd.f32 %v1244, 1.0
      %v1277 = vadd.f32 %v1245, 1.0
      %v1278 = vadd.f32 %v1246, 1.0
      %v1279 = vadd.f32 %v1247, 1.0
      %v1280 = vadd.f32 %v1248, 1.0
      %v1281 = vadd.f32 %v1249, 1.0
      %v1282 = vadd.f32 %v1250, 1.0
      %v1283 = vadd.f32 %v1251, 1.0
      %v1284 = vadd.f32 %v1252, 1.0
      %v1285 = vadd.f32 %v1253, 1.0
      %v1286 = vadd.f32 %v1254, 1.0
      %v1287 = vadd.f32 %v1255, 1.0
      %v1288 = vadd.f32 %v1256, 1.0
      %v1289 = vadd.f32 %v1257, 1.0
      %v1290 = vadd.f32 %v1258, 1.0
      %v1291 = vadd.f32 %v1259, 1.0
      %v1292 = vadd.f32 %v1260, 1.0
      %v1293 = vadd.f32 %v1261, 1.0
      %v1294 = vadd.f32 %v1262, 1.0
      %v1295 = vadd.f32 %v1263, 1.0
      %v1296 = vadd.f32 %v1264, 1.0
      %v1297 = vadd.f32 %v1265, 1.0
      %v1298 = vadd.f32 %v1266, 1.0
      %v1299 = vadd.f32 %v1267, 1.0
      %v1300 = vmul.f32 %v1268, 0.5
      %v1301 = vmul.f32 %v1269, 0.5
      %v1302 = vmul.f32 %v1270, 0.5
      %v1303 = vmul.f32 %v1271, 0.5
      %v1304 = vmul.f32 %v1272, 0.5
      %v1305 = vmul.f32 %v1273, 0.5
      %v1306 = vmul.f32 %v1274, 0.5
      %v1307 = vmul.f32 %v1275, 0.5
      %v1308 = vmul.f32 %v1276, 0.5
      %v1309 = vmul.f32 %v1277, 0.5
      %v1310 = vmul.f32 %v1278, 0.5
      %v1311 = vmul.f32 %v1279, 0.5
      %v1312 = vmul.f32 %v1280, 0.5
      %v1313 = vmul.f32 %v1281, 0.5
      %v1314 = vmul.f32 %v1282, 0.5
      %v1315 = vmul.f32 %v1283, 0.5
      %v1316 = vmul.f32 %v1284, 0.5
      %v1317 = vmul.f32 %v1285, 0.5
      %v1318 = vmul.f32 %v1286, 0.5
      %v1319 = vmul.f32 %v1287, 0.5
      %v1320 = vmul.f32 %v1288, 0.5
      %v1321 = vmul.f32 %v1289, 0.5
      %v1322 = vmul.f32 %v1290, 0.5
      %v1323 = vmul.f32 %v1291, 0.5
      %v1324 = vmul.f32 %v1292, 0.5
      %v1325 = vmul.f32 %v1293, 0.5
      %v1326 = vmul.f32 %v1294, 0.5
      %v1327 = vmul.f32 %v1295, 0.5
      %v1328 = vmul.f32 %v1296, 0.5
      %v1329 = vmul.f32 %v1297, 0.5
      %v1330 = vmul.f32 %v1298, 0.5
      %v1331 = vmul.f32 %v1299, 0.5
      %v1332 = vmul.f32 %v950, %v1300
      %v1333 = vmul.f32 %v953, %v1301
      %v1334 = vmul.f32 %v958, %v1302
      %v1335 = vmul.f32 %v961, %v1303
      %v1336 = vmul.f32 %v966, %v1304
      %v1337 = vmul.f32 %v969, %v1305
      %v1338 = vmul.f32 %v974, %v1306
      %v1339 = vmul.f32 %v977, %v1307
      %v1340 = vmul.f32 %v982, %v1308
      %v1341 = vmul.f32 %v985, %v1309
      %v1342 = vmul.f32 %v990, %v1310
      %v1343 = vmul.f32 %v993, %v1311
      %v1344 = vmul.f32 %v998, %v1312
      %v1345 = vmul.f32 %v1001, %v1313
      %v1346 = vmul.f32 %v1006, %v1314
      %v1347 = vmul.f32 %v1009, %v1315
      %v1348 = vmul.f32 %v1014, %v1316
      %v1349 = vmul.f32 %v1017, %v1317
      %v1350 = vmul.f32 %v1022, %v1318
      %v1351 = vmul.f32 %v1025, %v1319
      %v1352 = vmul.f32 %v1030, %v1320
      %v1353 = vmul.f32 %v1033, %v1321
      %v1354 = vmul.f32 %v1038, %v1322
      %v1355 = vmul.f32 %v1041, %v1323
      %v1356 = vmul.f32 %v1046, %v1324
      %v1357 = vmul.f32 %v1049, %v1325
      %v1358 = vmul.f32 %v1054, %v1326
      %v1359 = vmul.f32 %v1057, %v1327
      %v1360 = vmul.f32 %v1062, %v1328
      %v1361 = vmul.f32 %v1065, %v1329
      %v1362 = vmul.f32 %v1070, %v1330
      %v1363 = vmul.f32 %v1073, %v1331
      %v1364 = vpack.c.bf16 %v1333, %v1332
      %v1365 = vpack.c.bf16 %v1335, %v1334
      %v1366 = vpack.c.bf16 %v1337, %v1336
      %v1367 = vpack.c.bf16 %v1339, %v1338
      %v1368 = vld [vmem:[%s3] sm:$0xf]
      %v1369 = vld [vmem:[%s3 + $0x4] sm:$0xf]
      %v1370 = vld [vmem:[%s3 + $0x8] sm:$0xf]
      %v1371 = vld [vmem:[%s3 + $0xc] sm:$0xf]
      %v1372 = vpack.c.bf16 %v1341, %v1340
      %v1373 = vpack.c.bf16 %v1343, %v1342
      %v1374 = vpack.c.bf16 %v1345, %v1344
      %v1375 = vpack.c.bf16 %v1347, %v1346
      %v1376 = vld [vmem:[%s3 + $0x10] sm:$0xf]
      %v1377 = vld [vmem:[%s3 + $0x14] sm:$0xf]
      %v1378 = vld [vmem:[%s3 + $0x18] sm:$0xf]
      %v1379 = vld [vmem:[%s3 + $0x1c] sm:$0xf]
      %v1384 = vunpack.c.l.b16 %v1376
      %v1385 = vunpack.c.l.b16 %v1377
      %v1386 = vunpack.c.l.b16 %v1378
      %v1387 = vunpack.c.l.b16 %v1379
      %v1388 = vpack.c.b16 %v1385, %v1384
      %v1389 = vpack.c.b16 %v1387, %v1386
      %vm1392 = vcmask 261120
      %v1394 = vsel %vm1392, %v1372, 0
      %v1397 = vsel %vm1392, %v1373, 0
      %v1400 = vsel %vm1392, %v1374, 0
      %v1403 = vsel %vm1392, %v1375, 0
      %1405 = vmatprep.subr.bf16.mxu0 0
      %1406 = vmatpush1.bf16.msra.mxu0 0
      %1407 = vmatprep.subr.bf16.mxu0 0
      %1408 = vmatpush1.bf16.msra.mxu0 0
      %1409 = vmatprep.subr.bf16.mxu0 0
      %1410 = vmatpush1.bf16.msra.mxu0 0
      %1411 = vmatprep.subr.bf16.mxu0 0
      %1412 = vmatpush1.bf16.msra.mxu0 0
      %1413 = vmatprep.subr.bf16.mxu0 0
      %1414 = vmatpush1.bf16.msra.mxu0 0
      %1415 = vmatprep.subr.bf16.mxu0 0
      %1416 = vmatpush1.bf16.msra.mxu0 0
      %1417 = vmatprep.subr.bf16.mxu0 0
      %1418 = vmatpush1.bf16.msra.mxu0 %v1389
      %1419 = vmatprep.subr.bf16.mxu0 0
      %1420 = vmatpush1.bf16.msra.mxu0 %v1388
      %1421 = vmatprep.subr.bf16.mxu0 0
      %1422 = vmatpush2.bf16.msra.mxu0 0
      %1423 = vmatprep.subr.bf16.mxu0 0
      %1424 = vmatpush2.bf16.msra.mxu0 0
      %1425 = vmatprep.subr.bf16.mxu0 0
      %1426 = vmatpush2.bf16.msra.mxu0 0
      %1427 = vmatprep.subr.bf16.mxu0 0
      %1428 = vmatpush2.bf16.msra.mxu0 0
      %1429 = vmatprep.subr.bf16.mxu0 0
      %1430 = vmatpush2.bf16.msra.mxu0 0
      %1431 = vmatprep.subr.bf16.mxu0 0
      %1432 = vmatpush2.bf16.msra.mxu0 0
      %1433 = vmatprep.subr.bf16.mxu0 0
      %1434 = vmatpush2.bf16.msra.mxu0 0
      %1435 = vmatprep.subr.bf16.mxu0 0
      %1436 = vmatpush2.bf16.msra.mxu0 0
      %1437 = vmatprep.mubr.bf16.mxu0 0
      %1438 = vmatmul.mubr.bf16.gmra.mxu0 %v1394
      %v1439 = vpop.f32.mrf.mxu0
      %v1440 = vadd.f32 0.0, %v1439
      %v1441 = vpop.f32.mrf.mxu0
      %v1442 = vpop.f32.mrf.mxu0
      %v1443 = vadd.f32 0.0, %v1442
      %v1444 = vpop.f32.mrf.mxu0
      %1445 = vmatprep.mubr.bf16.mxu0 0
      %1446 = vmatmul.mubr.bf16.gmra.mxu0 %v1397
      %v1447 = vpop.f32.mrf.mxu0
      %v1448 = vadd.f32 0.0, %v1447
      %v1449 = vpop.f32.mrf.mxu0
      %v1450 = vpop.f32.mrf.mxu0
      %v1451 = vadd.f32 0.0, %v1450
      %v1452 = vpop.f32.mrf.mxu0
      %1453 = vmatprep.mubr.bf16.mxu0 0
      %1454 = vmatmul.mubr.bf16.gmra.mxu0 %v1400
      %v1455 = vpop.f32.mrf.mxu0
      %v1456 = vadd.f32 0.0, %v1455
      %v1457 = vpop.f32.mrf.mxu0
      %v1458 = vpop.f32.mrf.mxu0
      %v1459 = vadd.f32 0.0, %v1458
      %v1460 = vpop.f32.mrf.mxu0
      %1461 = vmatprep.mubr.bf16.mxu0 0
      %1462 = vmatmul.mubr.bf16.gmra.mxu0 %v1403
      %v1463 = vpop.f32.mrf.mxu0
      %v1464 = vadd.f32 0.0, %v1463
      %v1465 = vpop.f32.mrf.mxu0
      %v1466 = vpop.f32.mrf.mxu0
      %v1467 = vadd.f32 0.0, %v1466
      %v1468 = vpop.f32.mrf.mxu0
      %1469 = vdwg.mxu0
      %v1474 = vunpack.c.l.b16 %v1368
      %v1475 = vunpack.c.l.b16 %v1369
      %v1476 = vunpack.c.l.b16 %v1370
      %v1477 = vunpack.c.l.b16 %v1371
      %v1478 = vpack.c.b16 %v1475, %v1474
      %v1479 = vpack.c.b16 %v1477, %v1476
      %v1483 = vsel %vm1392, %v1364, 0
      %v1486 = vsel %vm1392, %v1365, 0
      %v1489 = vsel %vm1392, %v1366, 0
      %v1492 = vsel %vm1392, %v1367, 0
      %1494 = vmatprep.subr.bf16.mxu0 0
      %1495 = vmatpush1.bf16.msra.mxu0 0
      %1496 = vmatprep.subr.bf16.mxu0 0
      %1497 = vmatpush1.bf16.msra.mxu0 0
      %1498 = vmatprep.subr.bf16.mxu0 0
      %1499 = vmatpush1.bf16.msra.mxu0 0
      %1500 = vmatprep.subr.bf16.mxu0 0
      %1501 = vmatpush1.bf16.msra.mxu0 0
      %1502 = vmatprep.subr.bf16.mxu0 0
      %1503 = vmatpush1.bf16.msra.mxu0 0
      %1504 = vmatprep.subr.bf16.mxu0 0
      %1505 = vmatpush1.bf16.msra.mxu0 0
      %1506 = vmatprep.subr.bf16.mxu0 0
      %1507 = vmatpush1.bf16.msra.mxu0 %v1479
      %1508 = vmatprep.subr.bf16.mxu0 0
      %1509 = vmatpush1.bf16.msra.mxu0 %v1478
      %1510 = vmatprep.subr.bf16.mxu0 0
      %1511 = vmatpush2.bf16.msra.mxu0 0
      %1512 = vmatprep.subr.bf16.mxu0 0
      %1513 = vmatpush2.bf16.msra.mxu0 0
      %1514 = vmatprep.subr.bf16.mxu0 0
      %1515 = vmatpush2.bf16.msra.mxu0 0
      %1516 = vmatprep.subr.bf16.mxu0 0
      %1517 = vmatpush2.bf16.msra.mxu0 0
      %1518 = vmatprep.subr.bf16.mxu0 0
      %1519 = vmatpush2.bf16.msra.mxu0 0
      %1520 = vmatprep.subr.bf16.mxu0 0
      %1521 = vmatpush2.bf16.msra.mxu0 0
      %1522 = vmatprep.subr.bf16.mxu0 0
      %1523 = vmatpush2.bf16.msra.mxu0 0
      %1524 = vmatprep.subr.bf16.mxu0 0
      %1525 = vmatpush2.bf16.msra.mxu0 0
      %1526 = vmatprep.mubr.bf16.mxu0 0
      %1527 = vmatmul.mubr.bf16.gmra.mxu0 %v1483
      %v1528 = vpop.f32.mrf.mxu0
      %v1529 = vadd.f32 %v1440, %v1528
      %v1530 = vpop.f32.mrf.mxu0
      %v1531 = vpop.f32.mrf.mxu0
      %v1532 = vadd.f32 %v1443, %v1531
      %v1533 = vpop.f32.mrf.mxu0
      %1534 = vmatprep.mubr.bf16.mxu0 0
      %1535 = vmatmul.mubr.bf16.gmra.mxu0 %v1486
      %v1536 = vpop.f32.mrf.mxu0
      %v1537 = vadd.f32 %v1448, %v1536
      %v1538 = vpop.f32.mrf.mxu0
      %v1539 = vpop.f32.mrf.mxu0
      %v1540 = vadd.f32 %v1451, %v1539
      %v1541 = vpop.f32.mrf.mxu0
      %1542 = vmatprep.mubr.bf16.mxu0 0
      %1543 = vmatmul.mubr.bf16.gmra.mxu0 %v1489
      %v1544 = vpop.f32.mrf.mxu0
      %v1545 = vadd.f32 %v1456, %v1544
      %v1546 = vpop.f32.mrf.mxu0
      %v1547 = vpop.f32.mrf.mxu0
      %v1548 = vadd.f32 %v1459, %v1547
      %v1549 = vpop.f32.mrf.mxu0
      %1550 = vmatprep.mubr.bf16.mxu0 0
      %1551 = vmatmul.mubr.bf16.gmra.mxu0 %v1492
      %v1552 = vpop.f32.mrf.mxu0
      %v1553 = vadd.f32 %v1464, %v1552
      %v1554 = vpop.f32.mrf.mxu0
      %v1555 = vpop.f32.mrf.mxu0
      %v1556 = vadd.f32 %v1467, %v1555
      %v1557 = vpop.f32.mrf.mxu0
      %1558 = vdwg.mxu0
      %v1559 = vpack.c.bf16 %v1349, %v1348
      %v1560 = vpack.c.bf16 %v1351, %v1350
      %v1561 = vpack.c.bf16 %v1353, %v1352
      %v1562 = vpack.c.bf16 %v1355, %v1354
      %v1563 = vld [vmem:[%s3 + $0x20] sm:$0xf]
      %v1564 = vld [vmem:[%s3 + $0x24] sm:$0xf]
      %v1565 = vld [vmem:[%s3 + $0x28] sm:$0xf]
      %v1566 = vld [vmem:[%s3 + $0x2c] sm:$0xf]
      %v1571 = vunpack.c.l.b16 %v1563
      %v1572 = vunpack.c.l.b16 %v1564
      %v1573 = vunpack.c.l.b16 %v1565
      %v1574 = vunpack.c.l.b16 %v1566
      %v1575 = vpack.c.b16 %v1572, %v1571
      %v1576 = vpack.c.b16 %v1574, %v1573
      %v1580 = vsel %vm1392, %v1559, 0
      %v1583 = vsel %vm1392, %v1560, 0
      %v1586 = vsel %vm1392, %v1561, 0
      %v1589 = vsel %vm1392, %v1562, 0
      %1591 = vmatprep.subr.bf16.mxu0 0
      %1592 = vmatpush1.bf16.msra.mxu0 0
      %1593 = vmatprep.subr.bf16.mxu0 0
      %1594 = vmatpush1.bf16.msra.mxu0 0
      %1595 = vmatprep.subr.bf16.mxu0 0
      %1596 = vmatpush1.bf16.msra.mxu0 0
      %1597 = vmatprep.subr.bf16.mxu0 0
      %1598 = vmatpush1.bf16.msra.mxu0 0
      %1599 = vmatprep.subr.bf16.mxu0 0
      %1600 = vmatpush1.bf16.msra.mxu0 0
      %1601 = vmatprep.subr.bf16.mxu0 0
      %1602 = vmatpush1.bf16.msra.mxu0 0
      %1603 = vmatprep.subr.bf16.mxu0 0
      %1604 = vmatpush1.bf16.msra.mxu0 %v1576
      %1605 = vmatprep.subr.bf16.mxu0 0
      %1606 = vmatpush1.bf16.msra.mxu0 %v1575
      %1607 = vmatprep.subr.bf16.mxu0 0
      %1608 = vmatpush2.bf16.msra.mxu0 0
      %1609 = vmatprep.subr.bf16.mxu0 0
      %1610 = vmatpush2.bf16.msra.mxu0 0
      %1611 = vmatprep.subr.bf16.mxu0 0
      %1612 = vmatpush2.bf16.msra.mxu0 0
      %1613 = vmatprep.subr.bf16.mxu0 0
      %1614 = vmatpush2.bf16.msra.mxu0 0
      %1615 = vmatprep.subr.bf16.mxu0 0
      %1616 = vmatpush2.bf16.msra.mxu0 0
      %1617 = vmatprep.subr.bf16.mxu0 0
      %1618 = vmatpush2.bf16.msra.mxu0 0
      %1619 = vmatprep.subr.bf16.mxu0 0
      %1620 = vmatpush2.bf16.msra.mxu0 0
      %1621 = vmatprep.subr.bf16.mxu0 0
      %1622 = vmatpush2.bf16.msra.mxu0 0
      %1623 = vmatprep.mubr.bf16.mxu0 0
      %1624 = vmatmul.mubr.bf16.gmra.mxu0 %v1580
      %v1625 = vpop.f32.mrf.mxu0
      %v1626 = vadd.f32 0.0, %v1625
      %v1627 = vpop.f32.mrf.mxu0
      %v1628 = vpop.f32.mrf.mxu0
      %v1629 = vadd.f32 0.0, %v1628
      %v1630 = vpop.f32.mrf.mxu0
      %1631 = vmatprep.mubr.bf16.mxu0 0
      %1632 = vmatmul.mubr.bf16.gmra.mxu0 %v1583
      %v1633 = vpop.f32.mrf.mxu0
      %v1634 = vadd.f32 0.0, %v1633
      %v1635 = vpop.f32.mrf.mxu0
      %v1636 = vpop.f32.mrf.mxu0
      %v1637 = vadd.f32 0.0, %v1636
      %v1638 = vpop.f32.mrf.mxu0
      %1639 = vmatprep.mubr.bf16.mxu0 0
      %1640 = vmatmul.mubr.bf16.gmra.mxu0 %v1586
      %v1641 = vpop.f32.mrf.mxu0
      %v1642 = vadd.f32 0.0, %v1641
      %v1643 = vpop.f32.mrf.mxu0
      %v1644 = vpop.f32.mrf.mxu0
      %v1645 = vadd.f32 0.0, %v1644
      %v1646 = vpop.f32.mrf.mxu0
      %1647 = vmatprep.mubr.bf16.mxu0 0
      %1648 = vmatmul.mubr.bf16.gmra.mxu0 %v1589
      %v1649 = vpop.f32.mrf.mxu0
      %v1650 = vadd.f32 0.0, %v1649
      %v1651 = vpop.f32.mrf.mxu0
      %v1652 = vpop.f32.mrf.mxu0
      %v1653 = vadd.f32 0.0, %v1652
      %v1654 = vpop.f32.mrf.mxu0
      %1655 = vdwg.mxu0
      %v1656 = vadd.f32 %v1529, %v1626
      %v1657 = vadd.f32 %v1532, %v1629
      %v1658 = vadd.f32 %v1537, %v1634
      %v1659 = vadd.f32 %v1540, %v1637
      %v1660 = vadd.f32 %v1545, %v1642
      %v1661 = vadd.f32 %v1548, %v1645
      %v1662 = vadd.f32 %v1553, %v1650
      %v1663 = vadd.f32 %v1556, %v1653
      %v1664 = vpack.c.bf16 %v1357, %v1356
      %v1665 = vpack.c.bf16 %v1359, %v1358
      %v1666 = vpack.c.bf16 %v1361, %v1360
      %v1667 = vpack.c.bf16 %v1363, %v1362
      %v1668 = vld [vmem:[%s3 + $0x30] sm:$0xf]
      %v1669 = vld [vmem:[%s3 + $0x34] sm:$0xf]
      %v1670 = vld [vmem:[%s3 + $0x38] sm:$0xf]
      %v1671 = vld [vmem:[%s3 + $0x3c] sm:$0xf]
      %v1676 = vunpack.c.l.b16 %v1668
      %v1677 = vunpack.c.l.b16 %v1669
      %v1678 = vunpack.c.l.b16 %v1670
      %v1679 = vunpack.c.l.b16 %v1671
      %v1680 = vpack.c.b16 %v1677, %v1676
      %v1681 = vpack.c.b16 %v1679, %v1678
      %v1685 = vsel %vm1392, %v1664, 0
      %v1688 = vsel %vm1392, %v1665, 0
      %v1691 = vsel %vm1392, %v1666, 0
      %v1694 = vsel %vm1392, %v1667, 0
      %1696 = vmatprep.subr.bf16.mxu0 0
      %1697 = vmatpush1.bf16.msra.mxu0 0
      %1698 = vmatprep.subr.bf16.mxu0 0
      %1699 = vmatpush1.bf16.msra.mxu0 0
      %1700 = vmatprep.subr.bf16.mxu0 0
      %1701 = vmatpush1.bf16.msra.mxu0 0
      %1702 = vmatprep.subr.bf16.mxu0 0
      %1703 = vmatpush1.bf16.msra.mxu0 0
      %1704 = vmatprep.subr.bf16.mxu0 0
      %1705 = vmatpush1.bf16.msra.mxu0 0
      %1706 = vmatprep.subr.bf16.mxu0 0
      %1707 = vmatpush1.bf16.msra.mxu0 0
      %1708 = vmatprep.subr.bf16.mxu0 0
      %1709 = vmatpush1.bf16.msra.mxu0 %v1681
      %1710 = vmatprep.subr.bf16.mxu0 0
      %1711 = vmatpush1.bf16.msra.mxu0 %v1680
      %1712 = vmatprep.subr.bf16.mxu0 0
      %1713 = vmatpush2.bf16.msra.mxu0 0
      %1714 = vmatprep.subr.bf16.mxu0 0
      %1715 = vmatpush2.bf16.msra.mxu0 0
      %1716 = vmatprep.subr.bf16.mxu0 0
      %1717 = vmatpush2.bf16.msra.mxu0 0
      %1718 = vmatprep.subr.bf16.mxu0 0
      %1719 = vmatpush2.bf16.msra.mxu0 0
      %1720 = vmatprep.subr.bf16.mxu0 0
      %1721 = vmatpush2.bf16.msra.mxu0 0
      %1722 = vmatprep.subr.bf16.mxu0 0
      %1723 = vmatpush2.bf16.msra.mxu0 0
      %1724 = vmatprep.subr.bf16.mxu0 0
      %1725 = vmatpush2.bf16.msra.mxu0 0
      %1726 = vmatprep.subr.bf16.mxu0 0
      %1727 = vmatpush2.bf16.msra.mxu0 0
      %1728 = vmatprep.mubr.bf16.mxu0 0
      %1729 = vmatmul.mubr.bf16.gmra.mxu0 %v1685
      %v1730 = vpop.f32.mrf.mxu0
      %v1731 = vadd.f32 0.0, %v1730
      %v1732 = vpop.f32.mrf.mxu0
      %v1733 = vpop.f32.mrf.mxu0
      %v1734 = vadd.f32 0.0, %v1733
      %v1735 = vpop.f32.mrf.mxu0
      %1736 = vmatprep.mubr.bf16.mxu0 0
      %1737 = vmatmul.mubr.bf16.gmra.mxu0 %v1688
      %v1738 = vpop.f32.mrf.mxu0
      %v1739 = vadd.f32 0.0, %v1738
      %v1740 = vpop.f32.mrf.mxu0
      %v1741 = vpop.f32.mrf.mxu0
      %v1742 = vadd.f32 0.0, %v1741
      %v1743 = vpop.f32.mrf.mxu0
      %1744 = vmatprep.mubr.bf16.mxu0 0
      %1745 = vmatmul.mubr.bf16.gmra.mxu0 %v1691
      %v1746 = vpop.f32.mrf.mxu0
      %v1747 = vadd.f32 0.0, %v1746
      %v1748 = vpop.f32.mrf.mxu0
      %v1749 = vpop.f32.mrf.mxu0
      %v1750 = vadd.f32 0.0, %v1749
      %v1751 = vpop.f32.mrf.mxu0
      %1752 = vmatprep.mubr.bf16.mxu0 0
      %1753 = vmatmul.mubr.bf16.gmra.mxu0 %v1694
      %v1754 = vpop.f32.mrf.mxu0
      %v1755 = vadd.f32 0.0, %v1754
      %v1756 = vpop.f32.mrf.mxu0
      %v1757 = vpop.f32.mrf.mxu0
      %v1758 = vadd.f32 0.0, %v1757
      %v1759 = vpop.f32.mrf.mxu0
      %1760 = vdwg.mxu0
      %v1761 = vadd.f32 %v1656, %v1731
      %v1762 = vadd.f32 %v1657, %v1734
      %v1763 = vadd.f32 %v1658, %v1739
      %v1764 = vadd.f32 %v1659, %v1742
      %v1765 = vadd.f32 %v1660, %v1747
      %v1766 = vadd.f32 %v1661, %v1750
      %v1767 = vadd.f32 %v1662, %v1755
      %v1768 = vadd.f32 %v1663, %v1758
      %v1769 = vld [vmem:[%s4] sm:$0x1]
      %v1771 = vlaneseq
      %v1772 = vshrl.u32 %v1771, 7
      %v1773 = vsub.s32 0, %v1772
      %v1774 = vrot.slane %v1769, %v1773
      %v1776 = vadd.f32 %v1761, %v1774
      %v1777 = vadd.f32 %v1762, %v1774
      %v1778 = vadd.f32 %v1763, %v1774
      %v1779 = vadd.f32 %v1764, %v1774
      %v1780 = vadd.f32 %v1765, %v1774
      %v1781 = vadd.f32 %v1766, %v1774
      %v1782 = vadd.f32 %v1767, %v1774
      %v1783 = vadd.f32 %v1768, %v1774
      %v1784 = vmul.f32 %v1776, %v1776
      %v1785 = vmul.f32 %v1777, %v1777
      %v1786 = vmul.f32 %v1778, %v1778
      %v1787 = vmul.f32 %v1779, %v1779
      %v1788 = vmul.f32 %v1780, %v1780
      %v1789 = vmul.f32 %v1781, %v1781
      %v1790 = vmul.f32 %v1782, %v1782
      %v1791 = vmul.f32 %v1783, %v1783
      %v1792 = vmul.f32 %v1776, %v1784
      %v1793 = vmul.f32 %v1777, %v1785
      %v1794 = vmul.f32 %v1778, %v1786
      %v1795 = vmul.f32 %v1779, %v1787
      %v1796 = vmul.f32 %v1780, %v1788
      %v1797 = vmul.f32 %v1781, %v1789
      %v1798 = vmul.f32 %v1782, %v1790
      %v1799 = vmul.f32 %v1783, %v1791
      %v1800 = vmul.f32 %v1792, 0.044715
      %v1801 = vmul.f32 %v1793, 0.044715
      %v1802 = vmul.f32 %v1794, 0.044715
      %v1803 = vmul.f32 %v1795, 0.044715
      %v1804 = vmul.f32 %v1796, 0.044715
      %v1805 = vmul.f32 %v1797, 0.044715
      %v1806 = vmul.f32 %v1798, 0.044715
      %v1807 = vmul.f32 %v1799, 0.044715
      %v1808 = vadd.f32 %v1776, %v1800
      %v1809 = vadd.f32 %v1777, %v1801
      %v1810 = vadd.f32 %v1778, %v1802
      %v1811 = vadd.f32 %v1779, %v1803
      %v1812 = vadd.f32 %v1780, %v1804
      %v1813 = vadd.f32 %v1781, %v1805
      %v1814 = vadd.f32 %v1782, %v1806
      %v1815 = vadd.f32 %v1783, %v1807
      %v1816 = vmul.f32 %v1808, 0.7978846
      %v1817 = vmul.f32 %v1809, 0.7978846
      %v1818 = vmul.f32 %v1810, 0.7978846
      %v1819 = vmul.f32 %v1811, 0.7978846
      %v1820 = vmul.f32 %v1812, 0.7978846
      %v1821 = vmul.f32 %v1813, 0.7978846
      %v1822 = vmul.f32 %v1814, 0.7978846
      %v1823 = vmul.f32 %v1815, 0.7978846
      %v1824 = vtanh.pop %v1816
      %v1825 = vtanh.pop %v1817
      %v1826 = vtanh.pop %v1818
      %v1827 = vtanh.pop %v1819
      %v1828 = vtanh.pop %v1820
      %v1829 = vtanh.pop %v1821
      %v1830 = vtanh.pop %v1822
      %v1831 = vtanh.pop %v1823
      %v1832 = vadd.f32 %v1824, 1.0
      %v1833 = vadd.f32 %v1825, 1.0
      %v1834 = vadd.f32 %v1826, 1.0
      %v1835 = vadd.f32 %v1827, 1.0
      %v1836 = vadd.f32 %v1828, 1.0
      %v1837 = vadd.f32 %v1829, 1.0
      %v1838 = vadd.f32 %v1830, 1.0
      %v1839 = vadd.f32 %v1831, 1.0
      %v1840 = vmul.f32 %v1832, 0.5
      %v1841 = vmul.f32 %v1833, 0.5
      %v1842 = vmul.f32 %v1834, 0.5
      %v1843 = vmul.f32 %v1835, 0.5
      %v1844 = vmul.f32 %v1836, 0.5
      %v1845 = vmul.f32 %v1837, 0.5
      %v1846 = vmul.f32 %v1838, 0.5
      %v1847 = vmul.f32 %v1839, 0.5
      %v1848 = vmul.f32 %v1776, %v1840
      %v1849 = vmul.f32 %v1777, %v1841
      %v1850 = vmul.f32 %v1778, %v1842
      %v1851 = vmul.f32 %v1779, %v1843
      %v1852 = vmul.f32 %v1780, %v1844
      %v1853 = vmul.f32 %v1781, %v1845
      %v1854 = vmul.f32 %v1782, %v1846
      %v1855 = vmul.f32 %v1783, %v1847
      %v1856 = vpack.c.bf16 %v1849, %v1848
      %v1857 = vld [vmem:[%s5] sm:$0xf]
      %v1858 = vld [vmem:[%s5 + $0x4] sm:$0xf]
      %v1859 = vld [vmem:[%s5 + $0x8] sm:$0xf]
      %v1860 = vld [vmem:[%s5 + $0xc] sm:$0xf]
      %v1861 = vld [vmem:[%s5 + $0x10] sm:$0xf]
      %v1862 = vld [vmem:[%s5 + $0x14] sm:$0xf]
      %v1863 = vld [vmem:[%s5 + $0x18] sm:$0xf]
      %v1864 = vld [vmem:[%s5 + $0x1c] sm:$0xf]
      %v1865 = vpack.c.bf16 %v1851, %v1850
      %v1866 = vld [vmem:[%s5 + $0x20] sm:$0xf]
      %v1867 = vld [vmem:[%s5 + $0x24] sm:$0xf]
      %v1868 = vld [vmem:[%s5 + $0x28] sm:$0xf]
      %v1869 = vld [vmem:[%s5 + $0x2c] sm:$0xf]
      %v1870 = vld [vmem:[%s5 + $0x30] sm:$0xf]
      %v1871 = vld [vmem:[%s5 + $0x34] sm:$0xf]
      %v1872 = vld [vmem:[%s5 + $0x38] sm:$0xf]
      %v1873 = vld [vmem:[%s5 + $0x3c] sm:$0xf]
      %v1882 = vunpack.c.l.b16 %v1866
      %v1883 = vunpack.c.l.b16 %v1867
      %v1884 = vunpack.c.l.b16 %v1868
      %v1885 = vunpack.c.l.b16 %v1869
      %v1886 = vunpack.c.l.b16 %v1870
      %v1887 = vunpack.c.l.b16 %v1871
      %v1888 = vunpack.c.l.b16 %v1872
      %v1889 = vunpack.c.l.b16 %v1873
      %v1890 = vpack.c.b16 %v1883, %v1882
      %v1891 = vpack.c.b16 %v1885, %v1884
      %v1892 = vpack.c.b16 %v1887, %v1886
      %v1893 = vpack.c.b16 %v1889, %v1888
      %vm1898 = vcmask 523264
      %v1900 = vsel %vm1898, %v1865, 0
      %1902 = vmatprep.subr.bf16.mxu0 0
      %1903 = vmatpush1.bf16.msra.mxu0 0
      %1904 = vmatprep.subr.bf16.mxu0 0
      %1905 = vmatpush1.bf16.msra.mxu0 0
      %1906 = vmatprep.subr.bf16.mxu0 0
      %1907 = vmatpush1.bf16.msra.mxu0 0
      %1908 = vmatprep.subr.bf16.mxu0 0
      %1909 = vmatpush1.bf16.msra.mxu0 0
      %1910 = vmatprep.subr.bf16.mxu0 0
      %1911 = vmatpush1.bf16.msra.mxu0 %v1893
      %1912 = vmatprep.subr.bf16.mxu0 0
      %1913 = vmatpush1.bf16.msra.mxu0 %v1892
      %1914 = vmatprep.subr.bf16.mxu0 0
      %1915 = vmatpush1.bf16.msra.mxu0 %v1891
      %1916 = vmatprep.subr.bf16.mxu0 0
      %1917 = vmatpush1.bf16.msra.mxu0 %v1890
      %1918 = vmatprep.subr.bf16.mxu0 0
      %1919 = vmatpush2.bf16.msra.mxu0 0
      %1920 = vmatprep.subr.bf16.mxu0 0
      %1921 = vmatpush2.bf16.msra.mxu0 0
      %1922 = vmatprep.subr.bf16.mxu0 0
      %1923 = vmatpush2.bf16.msra.mxu0 0
      %1924 = vmatprep.subr.bf16.mxu0 0
      %1925 = vmatpush2.bf16.msra.mxu0 0
      %1926 = vmatprep.subr.bf16.mxu0 0
      %1927 = vmatpush2.bf16.msra.mxu0 0
      %1928 = vmatprep.subr.bf16.mxu0 0
      %1929 = vmatpush2.bf16.msra.mxu0 0
      %1930 = vmatprep.subr.bf16.mxu0 0
      %1931 = vmatpush2.bf16.msra.mxu0 0
      %1932 = vmatprep.subr.bf16.mxu0 0
      %1933 = vmatpush2.bf16.msra.mxu0 0
      %1934 = vmatprep.mubr.bf16.mxu0 0
      %1935 = vmatmul.mubr.bf16.gmra.mxu0 %v1900
      %v1936 = vpop.f32.mrf.mxu0
      %v1937 = vadd.f32 0.0, %v1936
      %v1938 = vpop.f32.mrf.mxu0
      %v1939 = vpop.f32.mrf.mxu0
      %v1940 = vadd.f32 0.0, %v1939
      %v1941 = vpop.f32.mrf.mxu0
      %1942 = vdwg.mxu0
      %v1951 = vunpack.c.l.b16 %v1857
      %v1952 = vunpack.c.l.b16 %v1858
      %v1953 = vunpack.c.l.b16 %v1859
      %v1954 = vunpack.c.l.b16 %v1860
      %v1955 = vunpack.c.l.b16 %v1861
      %v1956 = vunpack.c.l.b16 %v1862
      %v1957 = vunpack.c.l.b16 %v1863
      %v1958 = vunpack.c.l.b16 %v1864
      %v1959 = vpack.c.b16 %v1952, %v1951
      %v1960 = vpack.c.b16 %v1954, %v1953
      %v1961 = vpack.c.b16 %v1956, %v1955
      %v1962 = vpack.c.b16 %v1958, %v1957
      %v1968 = vsel %vm1898, %v1856, 0
      %1970 = vmatprep.subr.bf16.mxu0 0
      %1971 = vmatpush1.bf16.msra.mxu0 0
      %1972 = vmatprep.subr.bf16.mxu0 0
      %1973 = vmatpush1.bf16.msra.mxu0 0
      %1974 = vmatprep.subr.bf16.mxu0 0
      %1975 = vmatpush1.bf16.msra.mxu0 0
      %1976 = vmatprep.subr.bf16.mxu0 0
      %1977 = vmatpush1.bf16.msra.mxu0 0
      %1978 = vmatprep.subr.bf16.mxu0 0
      %1979 = vmatpush1.bf16.msra.mxu0 %v1962
      %1980 = vmatprep.subr.bf16.mxu0 0
      %1981 = vmatpush1.bf16.msra.mxu0 %v1961
      %1982 = vmatprep.subr.bf16.mxu0 0
      %1983 = vmatpush1.bf16.msra.mxu0 %v1960
      %1984 = vmatprep.subr.bf16.mxu0 0
      %1985 = vmatpush1.bf16.msra.mxu0 %v1959
      %1986 = vmatprep.subr.bf16.mxu0 0
      %1987 = vmatpush2.bf16.msra.mxu0 0
      %1988 = vmatprep.subr.bf16.mxu0 0
      %1989 = vmatpush2.bf16.msra.mxu0 0
      %1990 = vmatprep.subr.bf16.mxu0 0
      %1991 = vmatpush2.bf16.msra.mxu0 0
      %1992 = vmatprep.subr.bf16.mxu0 0
      %1993 = vmatpush2.bf16.msra.mxu0 0
      %1994 = vmatprep.subr.bf16.mxu0 0
      %1995 = vmatpush2.bf16.msra.mxu0 0
      %1996 = vmatprep.subr.bf16.mxu0 0
      %1997 = vmatpush2.bf16.msra.mxu0 0
      %1998 = vmatprep.subr.bf16.mxu0 0
      %1999 = vmatpush2.bf16.msra.mxu0 0
      %2000 = vmatprep.subr.bf16.mxu0 0
      %2001 = vmatpush2.bf16.msra.mxu0 0
      %2002 = vmatprep.mubr.bf16.mxu0 0
      %2003 = vmatmul.mubr.bf16.gmra.mxu0 %v1968
      %v2004 = vpop.f32.mrf.mxu0
      %v2005 = vadd.f32 %v1937, %v2004
      %v2006 = vpop.f32.mrf.mxu0
      %v2007 = vpop.f32.mrf.mxu0
      %v2008 = vadd.f32 %v1940, %v2007
      %v2009 = vpop.f32.mrf.mxu0
      %2010 = vdwg.mxu0
      %v2011 = vpack.c.bf16 %v1853, %v1852
      %v2012 = vld [vmem:[%s5 + $0x40] sm:$0xf]
      %v2013 = vld [vmem:[%s5 + $0x44] sm:$0xf]
      %v2014 = vld [vmem:[%s5 + $0x48] sm:$0xf]
      %v2015 = vld [vmem:[%s5 + $0x4c] sm:$0xf]
      %v2016 = vld [vmem:[%s5 + $0x50] sm:$0xf]
      %v2017 = vld [vmem:[%s5 + $0x54] sm:$0xf]
      %v2018 = vld [vmem:[%s5 + $0x58] sm:$0xf]
      %v2019 = vld [vmem:[%s5 + $0x5c] sm:$0xf]
      %v2028 = vunpack.c.l.b16 %v2012
      %v2029 = vunpack.c.l.b16 %v2013
      %v2030 = vunpack.c.l.b16 %v2014
      %v2031 = vunpack.c.l.b16 %v2015
      %v2032 = vunpack.c.l.b16 %v2016
      %v2033 = vunpack.c.l.b16 %v2017
      %v2034 = vunpack.c.l.b16 %v2018
      %v2035 = vunpack.c.l.b16 %v2019
      %v2036 = vpack.c.b16 %v2029, %v2028
      %v2037 = vpack.c.b16 %v2031, %v2030
      %v2038 = vpack.c.b16 %v2033, %v2032
      %v2039 = vpack.c.b16 %v2035, %v2034
      %v2045 = vsel %vm1898, %v2011, 0
      %2047 = vmatprep.subr.bf16.mxu0 0
      %2048 = vmatpush1.bf16.msra.mxu0 0
      %2049 = vmatprep.subr.bf16.mxu0 0
      %2050 = vmatpush1.bf16.msra.mxu0 0
      %2051 = vmatprep.subr.bf16.mxu0 0
      %2052 = vmatpush1.bf16.msra.mxu0 0
      %2053 = vmatprep.subr.bf16.mxu0 0
      %2054 = vmatpush1.bf16.msra.mxu0 0
      %2055 = vmatprep.subr.bf16.mxu0 0
      %2056 = vmatpush1.bf16.msra.mxu0 %v2039
      %2057 = vmatprep.subr.bf16.mxu0 0
      %2058 = vmatpush1.bf16.msra.mxu0 %v2038
      %2059 = vmatprep.subr.bf16.mxu0 0
      %2060 = vmatpush1.bf16.msra.mxu0 %v2037
      %2061 = vmatprep.subr.bf16.mxu0 0
      %2062 = vmatpush1.bf16.msra.mxu0 %v2036
      %2063 = vmatprep.subr.bf16.mxu0 0
      %2064 = vmatpush2.bf16.msra.mxu0 0
      %2065 = vmatprep.subr.bf16.mxu0 0
      %2066 = vmatpush2.bf16.msra.mxu0 0
      %2067 = vmatprep.subr.bf16.mxu0 0
      %2068 = vmatpush2.bf16.msra.mxu0 0
      %2069 = vmatprep.subr.bf16.mxu0 0
      %2070 = vmatpush2.bf16.msra.mxu0 0
      %2071 = vmatprep.subr.bf16.mxu0 0
      %2072 = vmatpush2.bf16.msra.mxu0 0
      %2073 = vmatprep.subr.bf16.mxu0 0
      %2074 = vmatpush2.bf16.msra.mxu0 0
      %2075 = vmatprep.subr.bf16.mxu0 0
      %2076 = vmatpush2.bf16.msra.mxu0 0
      %2077 = vmatprep.subr.bf16.mxu0 0
      %2078 = vmatpush2.bf16.msra.mxu0 0
      %2079 = vmatprep.mubr.bf16.mxu0 0
      %2080 = vmatmul.mubr.bf16.gmra.mxu0 %v2045
      %v2081 = vpop.f32.mrf.mxu0
      %v2082 = vadd.f32 0.0, %v2081
      %v2083 = vpop.f32.mrf.mxu0
      %v2084 = vpop.f32.mrf.mxu0
      %v2085 = vadd.f32 0.0, %v2084
      %v2086 = vpop.f32.mrf.mxu0
      %2087 = vdwg.mxu0
      %v2088 = vadd.f32 %v2005, %v2082
      %v2089 = vadd.f32 %v2008, %v2085
      %v2090 = vpack.c.bf16 %v1855, %v1854
      %v2091 = vld [vmem:[%s5 + $0x60] sm:$0xf]
      %v2092 = vld [vmem:[%s5 + $0x64] sm:$0xf]
      %v2093 = vld [vmem:[%s5 + $0x68] sm:$0xf]
      %v2094 = vld [vmem:[%s5 + $0x6c] sm:$0xf]
      %v2095 = vld [vmem:[%s5 + $0x70] sm:$0xf]
      %v2096 = vld [vmem:[%s5 + $0x74] sm:$0xf]
      %v2097 = vld [vmem:[%s5 + $0x78] sm:$0xf]
      %v2098 = vld [vmem:[%s5 + $0x7c] sm:$0xf]
      %v2107 = vunpack.c.l.b16 %v2091
      %v2108 = vunpack.c.l.b16 %v2092
      %v2109 = vunpack.c.l.b16 %v2093
      %v2110 = vunpack.c.l.b16 %v2094
      %v2111 = vunpack.c.l.b16 %v2095
      %v2112 = vunpack.c.l.b16 %v2096
      %v2113 = vunpack.c.l.b16 %v2097
      %v2114 = vunpack.c.l.b16 %v2098
      %v2115 = vpack.c.b16 %v2108, %v2107
      %v2116 = vpack.c.b16 %v2110, %v2109
      %v2117 = vpack.c.b16 %v2112, %v2111
      %v2118 = vpack.c.b16 %v2114, %v2113
      %v2124 = vsel %vm1898, %v2090, 0
      %2126 = vmatprep.subr.bf16.mxu0 0
      %2127 = vmatpush1.bf16.msra.mxu0 0
      %2128 = vmatprep.subr.bf16.mxu0 0
      %2129 = vmatpush1.bf16.msra.mxu0 0
      %2130 = vmatprep.subr.bf16.mxu0 0
      %2131 = vmatpush1.bf16.msra.mxu0 0
      %2132 = vmatprep.subr.bf16.mxu0 0
      %2133 = vmatpush1.bf16.msra.mxu0 0
      %2134 = vmatprep.subr.bf16.mxu0 0
      %2135 = vmatpush1.bf16.msra.mxu0 %v2118
      %2136 = vmatprep.subr.bf16.mxu0 0
      %2137 = vmatpush1.bf16.msra.mxu0 %v2117
      %2138 = vmatprep.subr.bf16.mxu0 0
      %2139 = vmatpush1.bf16.msra.mxu0 %v2116
      %2140 = vmatprep.subr.bf16.mxu0 0
      %2141 = vmatpush1.bf16.msra.mxu0 %v2115
      %2142 = vmatprep.subr.bf16.mxu0 0
      %2143 = vmatpush2.bf16.msra.mxu0 0
      %2144 = vmatprep.subr.bf16.mxu0 0
      %2145 = vmatpush2.bf16.msra.mxu0 0
      %2146 = vmatprep.subr.bf16.mxu0 0
      %2147 = vmatpush2.bf16.msra.mxu0 0
      %2148 = vmatprep.subr.bf16.mxu0 0
      %2149 = vmatpush2.bf16.msra.mxu0 0
      %2150 = vmatprep.subr.bf16.mxu0 0
      %2151 = vmatpush2.bf16.msra.mxu0 0
      %2152 = vmatprep.subr.bf16.mxu0 0
      %2153 = vmatpush2.bf16.msra.mxu0 0
      %2154 = vmatprep.subr.bf16.mxu0 0
      %2155 = vmatpush2.bf16.msra.mxu0 0
      %2156 = vmatprep.subr.bf16.mxu0 0
      %2157 = vmatpush2.bf16.msra.mxu0 0
      %2158 = vmatprep.mubr.bf16.mxu0 0
      %2159 = vmatmul.mubr.bf16.gmra.mxu0 %v2124
      %v2160 = vpop.f32.mrf.mxu0
      %v2161 = vadd.f32 0.0, %v2160
      %v2162 = vpop.f32.mrf.mxu0
      %v2163 = vpop.f32.mrf.mxu0
      %v2164 = vadd.f32 0.0, %v2163
      %v2165 = vpop.f32.mrf.mxu0
      %2166 = vdwg.mxu0
      %v2167 = vadd.f32 %v2088, %v2161
      %v2168 = vadd.f32 %v2089, %v2164
      %v2169 = vld [vmem:[%s6] sm:$0x1]
      %v2171 = vlaneseq
      %v2172 = vshrl.u32 %v2171, 7
      %v2173 = vsub.s32 0, %v2172
      %v2174 = vrot.slane %v2169, %v2173
      %v2176 = vadd.f32 %v2167, %v2174
      %v2177 = vadd.f32 %v2168, %v2174
      %v2178 = vmul.f32 %v2176, %v2176
      %v2179 = vmul.f32 %v2177, %v2177
      %v2180 = vmul.f32 %v2176, %v2178
      %v2181 = vmul.f32 %v2177, %v2179
      %v2182 = vmul.f32 %v2180, 0.044715
      %v2183 = vmul.f32 %v2181, 0.044715
      %v2184 = vadd.f32 %v2176, %v2182
      %v2185 = vadd.f32 %v2177, %v2183
      %v2186 = vmul.f32 %v2184, 0.7978846
      %v2187 = vmul.f32 %v2185, 0.7978846
      %v2188 = vtanh.pop %v2186
      %v2189 = vtanh.pop %v2187
      %v2190 = vadd.f32 %v2188, 1.0
      %v2191 = vadd.f32 %v2189, 1.0
      %v2192 = vmul.f32 %v2190, 0.5
      %v2193 = vmul.f32 %v2191, 0.5
      %v2194 = vmul.f32 %v2176, %v2192
      %v2195 = vmul.f32 %v2177, %v2193
      %v2196 = vrot.slane %v2194, 4
      %v2197 = vrot.slane %v2195, 4
      %v2198 = vlaneseq
      %v2199 = vshrl.u32 %v2198, 7
      %vm2200 = vcmp.lt.s32.totalorder %v2199, 4
      %v2201 = vsel %vm2200, %v2196, %v2197
      %v2202 = vsel %vm2200, %v2197, %v2196
      %v2203 = vpack.c.bf16 %v2194, %v2194
      %v2204 = vld [vmem:[%s7] sm:$0xff]
      %v2205 = vld [vmem:[%s7 + $0x8] sm:$0xff]
      %v2206 = vld [vmem:[%s7 + $0x10] sm:$0xff]
      %v2207 = vld [vmem:[%s7 + $0x18] sm:$0xff]
      %v2208 = vld [vmem:[%s7 + $0x20] sm:$0xff]
      %v2209 = vld [vmem:[%s7 + $0x28] sm:$0xff]
      %v2210 = vld [vmem:[%s7 + $0x30] sm:$0xff]
      %v2211 = vld [vmem:[%s7 + $0x38] sm:$0xff]
      %v2212 = vld [vmem:[%s7 + $0x40] sm:$0xff]
      %v2213 = vld [vmem:[%s7 + $0x48] sm:$0xff]
      %v2214 = vld [vmem:[%s7 + $0x50] sm:$0xff]
      %v2215 = vld [vmem:[%s7 + $0x58] sm:$0xff]
      %v2216 = vld [vmem:[%s7 + $0x60] sm:$0xff]
      %v2217 = vld [vmem:[%s7 + $0x68] sm:$0xff]
      %v2218 = vld [vmem:[%s7 + $0x70] sm:$0xff]
      %v2219 = vld [vmem:[%s7 + $0x78] sm:$0xff]
      %v2220 = vpack.c.bf16 %v2201, %v2201
      %v2221 = vld [vmem:[%s7 + $0x80] sm:$0xff]
      %v2222 = vld [vmem:[%s7 + $0x88] sm:$0xff]
      %v2223 = vld [vmem:[%s7 + $0x90] sm:$0xff]
      %v2224 = vld [vmem:[%s7 + $0x98] sm:$0xff]
      %v2225 = vld [vmem:[%s7 + $0xa0] sm:$0xff]
      %v2226 = vld [vmem:[%s7 + $0xa8] sm:$0xff]
      %v2227 = vld [vmem:[%s7 + $0xb0] sm:$0xff]
      %v2228 = vld [vmem:[%s7 + $0xb8] sm:$0xff]
      %v2229 = vld [vmem:[%s7 + $0xc0] sm:$0xff]
      %v2230 = vld [vmem:[%s7 + $0xc8] sm:$0xff]
      %v2231 = vld [vmem:[%s7 + $0xd0] sm:$0xff]
      %v2232 = vld [vmem:[%s7 + $0xd8] sm:$0xff]
      %v2233 = vld [vmem:[%s7 + $0xe0] sm:$0xff]
      %v2234 = vld [vmem:[%s7 + $0xe8] sm:$0xff]
      %v2235 = vld [vmem:[%s7 + $0xf0] sm:$0xff]
      %v2236 = vld [vmem:[%s7 + $0xf8] sm:$0xff]
      %v2253 = vunpack.c.l.b16 %v2221
      %v2254 = vunpack.c.h.b16 %v2221
      %v2255 = vunpack.c.l.b16 %v2222
      %v2256 = vunpack.c.h.b16 %v2222
      %v2257 = vunpack.c.l.b16 %v2223
      %v2258 = vunpack.c.h.b16 %v2223
      %v2259 = vunpack.c.l.b16 %v2224
      %v2260 = vunpack.c.h.b16 %v2224
      %v2261 = vunpack.c.l.b16 %v2225
      %v2262 = vunpack.c.h.b16 %v2225
      %v2263 = vunpack.c.l.b16 %v2226
      %v2264 = vunpack.c.h.b16 %v2226
      %v2265 = vunpack.c.l.b16 %v2227
      %v2266 = vunpack.c.h.b16 %v2227
      %v2267 = vunpack.c.l.b16 %v2228
      %v2268 = vunpack.c.h.b16 %v2228
      %v2269 = vunpack.c.l.b16 %v2229
      %v2270 = vunpack.c.h.b16 %v2229
      %v2271 = vunpack.c.l.b16 %v2230
      %v2272 = vunpack.c.h.b16 %v2230
      %v2273 = vunpack.c.l.b16 %v2231
      %v2274 = vunpack.c.h.b16 %v2231
      %v2275 = vunpack.c.l.b16 %v2232
      %v2276 = vunpack.c.h.b16 %v2232
      %v2277 = vunpack.c.l.b16 %v2233
      %v2278 = vunpack.c.h.b16 %v2233
      %v2279 = vunpack.c.l.b16 %v2234
      %v2280 = vunpack.c.h.b16 %v2234
      %v2281 = vunpack.c.l.b16 %v2235
      %v2282 = vunpack.c.h.b16 %v2235
      %v2283 = vunpack.c.l.b16 %v2236
      %v2284 = vunpack.c.h.b16 %v2236
      %v2285 = vpack.c.b16 %v2255, %v2253
      %v2286 = vpack.c.b16 %v2256, %v2254
      %v2287 = vpack.c.b16 %v2259, %v2257
      %v2288 = vpack.c.b16 %v2260, %v2258
      %v2289 = vpack.c.b16 %v2263, %v2261
      %v2290 = vpack.c.b16 %v2264, %v2262
      %v2291 = vpack.c.b16 %v2267, %v2265
      %v2292 = vpack.c.b16 %v2268, %v2266
      %v2293 = vpack.c.b16 %v2271, %v2269
      %v2294 = vpack.c.b16 %v2272, %v2270
      %v2295 = vpack.c.b16 %v2275, %v2273
      %v2296 = vpack.c.b16 %v2276, %v2274
      %v2297 = vpack.c.b16 %v2279, %v2277
      %v2298 = vpack.c.b16 %v2280, %v2278
      %v2299 = vpack.c.b16 %v2283, %v2281
      %v2300 = vpack.c.b16 %v2284, %v2282
      %2317 = vmatprep.subr.bf16.mxu0 %v2300
      %2318 = vmatpush1.bf16.msra.mxu0 %v2299
      %2319 = vmatprep.subr.bf16.mxu0 %v2298
      %2320 = vmatpush1.bf16.msra.mxu0 %v2297
      %2321 = vmatprep.subr.bf16.mxu0 %v2296
      %2322 = vmatpush1.bf16.msra.mxu0 %v2295
      %2323 = vmatprep.subr.bf16.mxu0 %v2294
      %2324 = vmatpush1.bf16.msra.mxu0 %v2293
      %2325 = vmatprep.subr.bf16.mxu0 %v2292
      %2326 = vmatpush1.bf16.msra.mxu0 %v2291
      %2327 = vmatprep.subr.bf16.mxu0 %v2290
      %2328 = vmatpush1.bf16.msra.mxu0 %v2289
      %2329 = vmatprep.subr.bf16.mxu0 %v2288
      %2330 = vmatpush1.bf16.msra.mxu0 %v2287
      %2331 = vmatprep.subr.bf16.mxu0 %v2286
      %2332 = vmatpush1.bf16.msra.mxu0 %v2285
      %2333 = vmatprep.subr.bf16.mxu0 0
      %2334 = vmatpush2.bf16.msra.mxu0 0
      %2335 = vmatprep.subr.bf16.mxu0 0
      %2336 = vmatpush2.bf16.msra.mxu0 0
      %2337 = vmatprep.subr.bf16.mxu0 0
      %2338 = vmatpush2.bf16.msra.mxu0 0
      %2339 = vmatprep.subr.bf16.mxu0 0
      %2340 = vmatpush2.bf16.msra.mxu0 0
      %2341 = vmatprep.subr.bf16.mxu0 0
      %2342 = vmatpush2.bf16.msra.mxu0 0
      %2343 = vmatprep.subr.bf16.mxu0 0
      %2344 = vmatpush2.bf16.msra.mxu0 0
      %2345 = vmatprep.subr.bf16.mxu0 0
      %2346 = vmatpush2.bf16.msra.mxu0 0
      %2347 = vmatprep.subr.bf16.mxu0 0
      %2348 = vmatpush2.bf16.msra.mxu0 0
      %2349 = vmatprep.mubr.bf16.mxu0 0
      %2350 = vmatmul.mubr.bf16.gmra.mxu0 %v2220
      %v2351 = vpop.f32.mrf.mxu0
      %v2352 = vadd.f32 0.0, %v2351
      %v2353 = vpop.f32.mrf.mxu0
      %v2354 = vadd.f32 0.0, %v2353
      %v2355 = vpop.f32.mrf.mxu0
      %v2356 = vpop.f32.mrf.mxu0
      %2357 = vdwg.mxu0
      %v2374 = vunpack.c.l.b16 %v2204
      %v2375 = vunpack.c.h.b16 %v2204
      %v2376 = vunpack.c.l.b16 %v2205
      %v2377 = vunpack.c.h.b16 %v2205
      %v2378 = vunpack.c.l.b16 %v2206
      %v2379 = vunpack.c.h.b16 %v2206
      %v2380 = vunpack.c.l.b16 %v2207
      %v2381 = vunpack.c.h.b16 %v2207
      %v2382 = vunpack.c.l.b16 %v2208
      %v2383 = vunpack.c.h.b16 %v2208
      %v2384 = vunpack.c.l.b16 %v2209
      %v2385 = vunpack.c.h.b16 %v2209
      %v2386 = vunpack.c.l.b16 %v2210
      %v2387 = vunpack.c.h.b16 %v2210
      %v2388 = vunpack.c.l.b16 %v2211
      %v2389 = vunpack.c.h.b16 %v2211
      %v2390 = vunpack.c.l.b16 %v2212
      %v2391 = vunpack.c.h.b16 %v2212
      %v2392 = vunpack.c.l.b16 %v2213
      %v2393 = vunpack.c.h.b16 %v2213
      %v2394 = vunpack.c.l.b16 %v2214
      %v2395 = vunpack.c.h.b16 %v2214
      %v2396 = vunpack.c.l.b16 %v2215
      %v2397 = vunpack.c.h.b16 %v2215
      %v2398 = vunpack.c.l.b16 %v2216
      %v2399 = vunpack.c.h.b16 %v2216
      %v2400 = vunpack.c.l.b16 %v2217
      %v2401 = vunpack.c.h.b16 %v2217
      %v2402 = vunpack.c.l.b16 %v2218
      %v2403 = vunpack.c.h.b16 %v2218
      %v2404 = vunpack.c.l.b16 %v2219
      %v2405 = vunpack.c.h.b16 %v2219
      %v2406 = vpack.c.b16 %v2376, %v2374
      %v2407 = vpack.c.b16 %v2377, %v2375
      %v2408 = vpack.c.b16 %v2380, %v2378
      %v2409 = vpack.c.b16 %v2381, %v2379
      %v2410 = vpack.c.b16 %v2384, %v2382
      %v2411 = vpack.c.b16 %v2385, %v2383
      %v2412 = vpack.c.b16 %v2388, %v2386
      %v2413 = vpack.c.b16 %v2389, %v2387
      %v2414 = vpack.c.b16 %v2392, %v2390
      %v2415 = vpack.c.b16 %v2393, %v2391
      %v2416 = vpack.c.b16 %v2396, %v2394
      %v2417 = vpack.c.b16 %v2397, %v2395
      %v2418 = vpack.c.b16 %v2400, %v2398
      %v2419 = vpack.c.b16 %v2401, %v2399
      %v2420 = vpack.c.b16 %v2404, %v2402
      %v2421 = vpack.c.b16 %v2405, %v2403
      %2438 = vmatprep.subr.bf16.mxu0 %v2421
      %2439 = vmatpush1.bf16.msra.mxu0 %v2420
      %2440 = vmatprep.subr.bf16.mxu0 %v2419
      %2441 = vmatpush1.bf16.msra.mxu0 %v2418
      %2442 = vmatprep.subr.bf16.mxu0 %v2417
      %2443 = vmatpush1.bf16.msra.mxu0 %v2416
      %2444 = vmatprep.subr.bf16.mxu0 %v2415
      %2445 = vmatpush1.bf16.msra.mxu0 %v2414
      %2446 = vmatprep.subr.bf16.mxu0 %v2413
      %2447 = vmatpush1.bf16.msra.mxu0 %v2412
      %2448 = vmatprep.subr.bf16.mxu0 %v2411
      %2449 = vmatpush1.bf16.msra.mxu0 %v2410
      %2450 = vmatprep.subr.bf16.mxu0 %v2409
      %2451 = vmatpush1.bf16.msra.mxu0 %v2408
      %2452 = vmatprep.subr.bf16.mxu0 %v2407
      %2453 = vmatpush1.bf16.msra.mxu0 %v2406
      %2454 = vmatprep.subr.bf16.mxu0 0
      %2455 = vmatpush2.bf16.msra.mxu0 0
      %2456 = vmatprep.subr.bf16.mxu0 0
      %2457 = vmatpush2.bf16.msra.mxu0 0
      %2458 = vmatprep.subr.bf16.mxu0 0
      %2459 = vmatpush2.bf16.msra.mxu0 0
      %2460 = vmatprep.subr.bf16.mxu0 0
      %2461 = vmatpush2.bf16.msra.mxu0 0
      %2462 = vmatprep.subr.bf16.mxu0 0
      %2463 = vmatpush2.bf16.msra.mxu0 0
      %2464 = vmatprep.subr.bf16.mxu0 0
      %2465 = vmatpush2.bf16.msra.mxu0 0
      %2466 = vmatprep.subr.bf16.mxu0 0
      %2467 = vmatpush2.bf16.msra.mxu0 0
      %2468 = vmatprep.subr.bf16.mxu0 0
      %2469 = vmatpush2.bf16.msra.mxu0 0
      %2470 = vmatprep.mubr.bf16.mxu0 0
      %2471 = vmatmul.mubr.bf16.gmra.mxu0 %v2203
      %v2472 = vpop.f32.mrf.mxu0
      %v2473 = vadd.f32 %v2352, %v2472
      %v2474 = vpop.f32.mrf.mxu0
      %v2475 = vadd.f32 %v2354, %v2474
      %v2476 = vpop.f32.mrf.mxu0
      %v2477 = vpop.f32.mrf.mxu0
      %2478 = vdwg.mxu0
      %v2479 = vpack.c.bf16 %v2195, %v2195
      %v2480 = vld [vmem:[%s7 + $0x100] sm:$0xff]
      %v2481 = vld [vmem:[%s7 + $0x108] sm:$0xff]
      %v2482 = vld [vmem:[%s7 + $0x110] sm:$0xff]
      %v2483 = vld [vmem:[%s7 + $0x118] sm:$0xff]
      %v2484 = vld [vmem:[%s7 + $0x120] sm:$0xff]
      %v2485 = vld [vmem:[%s7 + $0x128] sm:$0xff]
      %v2486 = vld [vmem:[%s7 + $0x130] sm:$0xff]
      %v2487 = vld [vmem:[%s7 + $0x138] sm:$0xff]
      %v2488 = vld [vmem:[%s7 + $0x140] sm:$0xff]
      %v2489 = vld [vmem:[%s7 + $0x148] sm:$0xff]
      %v2490 = vld [vmem:[%s7 + $0x150] sm:$0xff]
      %v2491 = vld [vmem:[%s7 + $0x158] sm:$0xff]
      %v2492 = vld [vmem:[%s7 + $0x160] sm:$0xff]
      %v2493 = vld [vmem:[%s7 + $0x168] sm:$0xff]
      %v2494 = vld [vmem:[%s7 + $0x170] sm:$0xff]
      %v2495 = vld [vmem:[%s7 + $0x178] sm:$0xff]
      %v2512 = vunpack.c.l.b16 %v2480
      %v2513 = vunpack.c.h.b16 %v2480
      %v2514 = vunpack.c.l.b16 %v2481
      %v2515 = vunpack.c.h.b16 %v2481
      %v2516 = vunpack.c.l.b16 %v2482
      %v2517 = vunpack.c.h.b16 %v2482
      %v2518 = vunpack.c.l.b16 %v2483
      %v2519 = vunpack.c.h.b16 %v2483
      %v2520 = vunpack.c.l.b16 %v2484
      %v2521 = vunpack.c.h.b16 %v2484
      %v2522 = vunpack.c.l.b16 %v2485
      %v2523 = vunpack.c.h.b16 %v2485
      %v2524 = vunpack.c.l.b16 %v2486
      %v2525 = vunpack.c.h.b16 %v2486
      %v2526 = vunpack.c.l.b16 %v2487
      %v2527 = vunpack.c.h.b16 %v2487
      %v2528 = vunpack.c.l.b16 %v2488
      %v2529 = vunpack.c.h.b16 %v2488
      %v2530 = vunpack.c.l.b16 %v2489
      %v2531 = vunpack.c.h.b16 %v2489
      %v2532 = vunpack.c.l.b16 %v2490
      %v2533 = vunpack.c.h.b16 %v2490
      %v2534 = vunpack.c.l.b16 %v2491
      %v2535 = vunpack.c.h.b16 %v2491
      %v2536 = vunpack.c.l.b16 %v2492
      %v2537 = vunpack.c.h.b16 %v2492
      %v2538 = vunpack.c.l.b16 %v2493
      %v2539 = vunpack.c.h.b16 %v2493
      %v2540 = vunpack.c.l.b16 %v2494
      %v2541 = vunpack.c.h.b16 %v2494
      %v2542 = vunpack.c.l.b16 %v2495
      %v2543 = vunpack.c.h.b16 %v2495
      %v2544 = vpack.c.b16 %v2514, %v2512
      %v2545 = vpack.c.b16 %v2515, %v2513
      %v2546 = vpack.c.b16 %v2518, %v2516
      %v2547 = vpack.c.b16 %v2519, %v2517
      %v2548 = vpack.c.b16 %v2522, %v2520
      %v2549 = vpack.c.b16 %v2523, %v2521
      %v2550 = vpack.c.b16 %v2526, %v2524
      %v2551 = vpack.c.b16 %v2527, %v2525
      %v2552 = vpack.c.b16 %v2530, %v2528
      %v2553 = vpack.c.b16 %v2531, %v2529
      %v2554 = vpack.c.b16 %v2534, %v2532
      %v2555 = vpack.c.b16 %v2535, %v2533
      %v2556 = vpack.c.b16 %v2538, %v2536
      %v2557 = vpack.c.b16 %v2539, %v2537
      %v2558 = vpack.c.b16 %v2542, %v2540
      %v2559 = vpack.c.b16 %v2543, %v2541
      %2576 = vmatprep.subr.bf16.mxu0 %v2559
      %2577 = vmatpush1.bf16.msra.mxu0 %v2558
      %2578 = vmatprep.subr.bf16.mxu0 %v2557
      %2579 = vmatpush1.bf16.msra.mxu0 %v2556
      %2580 = vmatprep.subr.bf16.mxu0 %v2555
      %2581 = vmatpush1.bf16.msra.mxu0 %v2554
      %2582 = vmatprep.subr.bf16.mxu0 %v2553
      %2583 = vmatpush1.bf16.msra.mxu0 %v2552
      %2584 = vmatprep.subr.bf16.mxu0 %v2551
      %2585 = vmatpush1.bf16.msra.mxu0 %v2550
      %2586 = vmatprep.subr.bf16.mxu0 %v2549
      %2587 = vmatpush1.bf16.msra.mxu0 %v2548
      %2588 = vmatprep.subr.bf16.mxu0 %v2547
      %2589 = vmatpush1.bf16.msra.mxu0 %v2546
      %2590 = vmatprep.subr.bf16.mxu0 %v2545
      %2591 = vmatpush1.bf16.msra.mxu0 %v2544
      %2592 = vmatprep.subr.bf16.mxu0 0
      %2593 = vmatpush2.bf16.msra.mxu0 0
      %2594 = vmatprep.subr.bf16.mxu0 0
      %2595 = vmatpush2.bf16.msra.mxu0 0
      %2596 = vmatprep.subr.bf16.mxu0 0
      %2597 = vmatpush2.bf16.msra.mxu0 0
      %2598 = vmatprep.subr.bf16.mxu0 0
      %2599 = vmatpush2.bf16.msra.mxu0 0
      %2600 = vmatprep.subr.bf16.mxu0 0
      %2601 = vmatpush2.bf16.msra.mxu0 0
      %2602 = vmatprep.subr.bf16.mxu0 0
      %2603 = vmatpush2.bf16.msra.mxu0 0
      %2604 = vmatprep.subr.bf16.mxu0 0
      %2605 = vmatpush2.bf16.msra.mxu0 0
      %2606 = vmatprep.subr.bf16.mxu0 0
      %2607 = vmatpush2.bf16.msra.mxu0 0
      %2608 = vmatprep.mubr.bf16.mxu0 0
      %2609 = vmatmul.mubr.bf16.gmra.mxu0 %v2479
      %v2610 = vpop.f32.mrf.mxu0
      %v2611 = vadd.f32 0.0, %v2610
      %v2612 = vpop.f32.mrf.mxu0
      %v2613 = vadd.f32 0.0, %v2612
      %v2614 = vpop.f32.mrf.mxu0
      %v2615 = vpop.f32.mrf.mxu0
      %2616 = vdwg.mxu0
      %v2617 = vadd.f32 %v2473, %v2611
      %v2618 = vadd.f32 %v2475, %v2613
      %v2619 = vpack.c.bf16 %v2202, %v2202
      %v2620 = vld [vmem:[%s7 + $0x180] sm:$0xff]
      %v2621 = vld [vmem:[%s7 + $0x188] sm:$0xff]
      %v2622 = vld [vmem:[%s7 + $0x190] sm:$0xff]
      %v2623 = vld [vmem:[%s7 + $0x198] sm:$0xff]
      %v2624 = vld [vmem:[%s7 + $0x1a0] sm:$0xff]
      %v2625 = vld [vmem:[%s7 + $0x1a8] sm:$0xff]
      %v2626 = vld [vmem:[%s7 + $0x1b0] sm:$0xff]
      %v2627 = vld [vmem:[%s7 + $0x1b8] sm:$0xff]
      %v2628 = vld [vmem:[%s7 + $0x1c0] sm:$0xff]
      %v2629 = vld [vmem:[%s7 + $0x1c8] sm:$0xff]
      %v2630 = vld [vmem:[%s7 + $0x1d0] sm:$0xff]
      %v2631 = vld [vmem:[%s7 + $0x1d8] sm:$0xff]
      %v2632 = vld [vmem:[%s7 + $0x1e0] sm:$0xff]
      %v2633 = vld [vmem:[%s7 + $0x1e8] sm:$0xff]
      %v2634 = vld [vmem:[%s7 + $0x1f0] sm:$0xff]
      %v2635 = vld [vmem:[%s7 + $0x1f8] sm:$0xff]
      %v2652 = vunpack.c.l.b16 %v2620
      %v2653 = vunpack.c.h.b16 %v2620
      %v2654 = vunpack.c.l.b16 %v2621
      %v2655 = vunpack.c.h.b16 %v2621
      %v2656 = vunpack.c.l.b16 %v2622
      %v2657 = vunpack.c.h.b16 %v2622
      %v2658 = vunpack.c.l.b16 %v2623
      %v2659 = vunpack.c.h.b16 %v2623
      %v2660 = vunpack.c.l.b16 %v2624
      %v2661 = vunpack.c.h.b16 %v2624
      %v2662 = vunpack.c.l.b16 %v2625
      %v2663 = vunpack.c.h.b16 %v2625
      %v2664 = vunpack.c.l.b16 %v2626
      %v2665 = vunpack.c.h.b16 %v2626
      %v2666 = vunpack.c.l.b16 %v2627
      %v2667 = vunpack.c.h.b16 %v2627
      %v2668 = vunpack.c.l.b16 %v2628
      %v2669 = vunpack.c.h.b16 %v2628
      %v2670 = vunpack.c.l.b16 %v2629
      %v2671 = vunpack.c.h.b16 %v2629
      %v2672 = vunpack.c.l.b16 %v2630
      %v2673 = vunpack.c.h.b16 %v2630
      %v2674 = vunpack.c.l.b16 %v2631
      %v2675 = vunpack.c.h.b16 %v2631
      %v2676 = vunpack.c.l.b16 %v2632
      %v2677 = vunpack.c.h.b16 %v2632
      %v2678 = vunpack.c.l.b16 %v2633
      %v2679 = vunpack.c.h.b16 %v2633
      %v2680 = vunpack.c.l.b16 %v2634
      %v2681 = vunpack.c.h.b16 %v2634
      %v2682 = vunpack.c.l.b16 %v2635
      %v2683 = vunpack.c.h.b16 %v2635
      %v2684 = vpack.c.b16 %v2654, %v2652
      %v2685 = vpack.c.b16 %v2655, %v2653
      %v2686 = vpack.c.b16 %v2658, %v2656
      %v2687 = vpack.c.b16 %v2659, %v2657
      %v2688 = vpack.c.b16 %v2662, %v2660
      %v2689 = vpack.c.b16 %v2663, %v2661
      %v2690 = vpack.c.b16 %v2666, %v2664
      %v2691 = vpack.c.b16 %v2667, %v2665
      %v2692 = vpack.c.b16 %v2670, %v2668
      %v2693 = vpack.c.b16 %v2671, %v2669
      %v2694 = vpack.c.b16 %v2674, %v2672
      %v2695 = vpack.c.b16 %v2675, %v2673
      %v2696 = vpack.c.b16 %v2678, %v2676
      %v2697 = vpack.c.b16 %v2679, %v2677
      %v2698 = vpack.c.b16 %v2682, %v2680
      %v2699 = vpack.c.b16 %v2683, %v2681
      %2716 = vmatprep.subr.bf16.mxu0 %v2699
      %2717 = vmatpush1.bf16.msra.mxu0 %v2698
      %2718 = vmatprep.subr.bf16.mxu0 %v2697
      %2719 = vmatpush1.bf16.msra.mxu0 %v2696
      %2720 = vmatprep.subr.bf16.mxu0 %v2695
      %2721 = vmatpush1.bf16.msra.mxu0 %v2694
      %2722 = vmatprep.subr.bf16.mxu0 %v2693
      %2723 = vmatpush1.bf16.msra.mxu0 %v2692
      %2724 = vmatprep.subr.bf16.mxu0 %v2691
      %2725 = vmatpush1.bf16.msra.mxu0 %v2690
      %2726 = vmatprep.subr.bf16.mxu0 %v2689
      %2727 = vmatpush1.bf16.msra.mxu0 %v2688
      %2728 = vmatprep.subr.bf16.mxu0 %v2687
      %2729 = vmatpush1.bf16.msra.mxu0 %v2686
      %2730 = vmatprep.subr.bf16.mxu0 %v2685
      %2731 = vmatpush1.bf16.msra.mxu0 %v2684
      %2732 = vmatprep.subr.bf16.mxu0 0
      %2733 = vmatpush2.bf16.msra.mxu0 0
      %2734 = vmatprep.subr.bf16.mxu0 0
      %2735 = vmatpush2.bf16.msra.mxu0 0
      %2736 = vmatprep.subr.bf16.mxu0 0
      %2737 = vmatpush2.bf16.msra.mxu0 0
      %2738 = vmatprep.subr.bf16.mxu0 0
      %2739 = vmatpush2.bf16.msra.mxu0 0
      %2740 = vmatprep.subr.bf16.mxu0 0
      %2741 = vmatpush2.bf16.msra.mxu0 0
      %2742 = vmatprep.subr.bf16.mxu0 0
      %2743 = vmatpush2.bf16.msra.mxu0 0
      %2744 = vmatprep.subr.bf16.mxu0 0
      %2745 = vmatpush2.bf16.msra.mxu0 0
      %2746 = vmatprep.subr.bf16.mxu0 0
      %2747 = vmatpush2.bf16.msra.mxu0 0
      %2748 = vmatprep.mubr.bf16.mxu0 0
      %2749 = vmatmul.mubr.bf16.gmra.mxu0 %v2619
      %v2750 = vpop.f32.mrf.mxu0
      %v2751 = vadd.f32 0.0, %v2750
      %v2752 = vpop.f32.mrf.mxu0
      %v2753 = vadd.f32 0.0, %v2752
      %v2754 = vpop.f32.mrf.mxu0
      %v2755 = vpop.f32.mrf.mxu0
      %2756 = vdwg.mxu0
      %v2757 = vadd.f32 %v2617, %v2751
      %v2758 = vadd.f32 %v2618, %v2753
      %v2759 = vld [vmem:[%s8] sm:$0x3]
      %v2761 = vlaneseq
      %v2762 = vshrl.u32 %v2761, 7
      %v2763 = vsub.s32 0, %v2762
      %v2764 = vrot.slane %v2759, %v2763
      %v2765 = vlaneseq
      %v2766 = vshrl.u32 %v2765, 7
      %v2767 = vsub.s32 1, %v2766
      %v2768 = vrot.slane %v2759, %v2767
      %v2771 = vadd.f32 %v2757, %v2764
      %v2772 = vadd.f32 %v2758, %v2768
      %v2773 = vmul.f32 %v2771, %v2771
      %v2774 = vmul.f32 %v2772, %v2772
      %v2775 = vmul.f32 %v2771, %v2773
      %v2776 = vmul.f32 %v2772, %v2774
      %v2777 = vmul.f32 %v2775, 0.044715
      %v2778 = vmul.f32 %v2776, 0.044715
      %v2779 = vadd.f32 %v2771, %v2777
      %v2780 = vadd.f32 %v2772, %v2778
      %v2781 = vmul.f32 %v2779, 0.7978846
      %v2782 = vmul.f32 %v2780, 0.7978846
      %v2783 = vtanh.pop %v2781
      %v2784 = vtanh.pop %v2782
      %v2785 = vadd.f32 %v2783, 1.0
      %v2786 = vadd.f32 %v2784, 1.0
      %v2787 = vmul.f32 %v2785, 0.5
      %v2788 = vmul.f32 %v2786, 0.5
      %v2789 = vmul.f32 %v2771, %v2787
      %v2790 = vmul.f32 %v2772, %v2788
      %v2791 = vpack.c.bf16 %v2195, %v2194
      %v2792 = vpack.c.bf16 %v2789, %v2789
      %v2793 = vpack.c.bf16 %v2790, %v2790
      %v2794 = vld [vmem:[%s9] sm:$0xff]
      %v2795 = vld [vmem:[%s9 + $0x8] sm:$0xff]
      %v2796 = vld [vmem:[%s9 + $0x10] sm:$0xff]
      %v2797 = vld [vmem:[%s9 + $0x18] sm:$0xff]
      %v2798 = vld [vmem:[%s9 + $0x20] sm:$0xff]
      %v2799 = vld [vmem:[%s9 + $0x28] sm:$0xff]
      %v2800 = vld [vmem:[%s9 + $0x30] sm:$0xff]
      %v2801 = vld [vmem:[%s9 + $0x38] sm:$0xff]
      %v2802 = vld [vmem:[%s9 + $0x40] sm:$0xff]
      %v2803 = vld [vmem:[%s9 + $0x48] sm:$0xff]
      %v2804 = vld [vmem:[%s9 + $0x50] sm:$0xff]
      %v2805 = vld [vmem:[%s9 + $0x58] sm:$0xff]
      %v2806 = vld [vmem:[%s9 + $0x60] sm:$0xff]
      %v2807 = vld [vmem:[%s9 + $0x68] sm:$0xff]
      %v2808 = vld [vmem:[%s9 + $0x70] sm:$0xff]
      %v2809 = vld [vmem:[%s9 + $0x78] sm:$0xff]
      %v2810 = vld [vmem:[%s9 + $0x80] sm:$0xff]
      %v2811 = vld [vmem:[%s9 + $0x88] sm:$0xff]
      %v2812 = vld [vmem:[%s9 + $0x90] sm:$0xff]
      %v2813 = vld [vmem:[%s9 + $0x98] sm:$0xff]
      %v2814 = vld [vmem:[%s9 + $0xa0] sm:$0xff]
      %v2815 = vld [vmem:[%s9 + $0xa8] sm:$0xff]
      %v2816 = vld [vmem:[%s9 + $0xb0] sm:$0xff]
      %v2817 = vld [vmem:[%s9 + $0xb8] sm:$0xff]
      %v2818 = vld [vmem:[%s9 + $0xc0] sm:$0xff]
      %v2819 = vld [vmem:[%s9 + $0xc8] sm:$0xff]
      %v2820 = vld [vmem:[%s9 + $0xd0] sm:$0xff]
      %v2821 = vld [vmem:[%s9 + $0xd8] sm:$0xff]
      %v2822 = vld [vmem:[%s9 + $0xe0] sm:$0xff]
      %v2823 = vld [vmem:[%s9 + $0xe8] sm:$0xff]
      %v2824 = vld [vmem:[%s9 + $0xf0] sm:$0xff]
      %v2825 = vld [vmem:[%s9 + $0xf8] sm:$0xff]
      %v2826 = vld [vmem:[%s9 + $0x100] sm:$0xff]
      %v2827 = vld [vmem:[%s9 + $0x108] sm:$0xff]
      %v2828 = vld [vmem:[%s9 + $0x110] sm:$0xff]
      %v2829 = vld [vmem:[%s9 + $0x118] sm:$0xff]
      %v2830 = vld [vmem:[%s9 + $0x120] sm:$0xff]
      %v2831 = vld [vmem:[%s9 + $0x128] sm:$0xff]
      %v2832 = vld [vmem:[%s9 + $0x130] sm:$0xff]
      %v2833 = vld [vmem:[%s9 + $0x138] sm:$0xff]
      %v2834 = vld [vmem:[%s9 + $0x140] sm:$0xff]
      %v2835 = vld [vmem:[%s9 + $0x148] sm:$0xff]
      %v2836 = vld [vmem:[%s9 + $0x150] sm:$0xff]
      %v2837 = vld [vmem:[%s9 + $0x158] sm:$0xff]
      %v2838 = vld [vmem:[%s9 + $0x160] sm:$0xff]
      %v2839 = vld [vmem:[%s9 + $0x168] sm:$0xff]
      %v2840 = vld [vmem:[%s9 + $0x170] sm:$0xff]
      %v2841 = vld [vmem:[%s9 + $0x178] sm:$0xff]
      %v2842 = vld [vmem:[%s9 + $0x180] sm:$0xff]
      %v2843 = vld [vmem:[%s9 + $0x188] sm:$0xff]
      %v2844 = vld [vmem:[%s9 + $0x190] sm:$0xff]
      %v2845 = vld [vmem:[%s9 + $0x198] sm:$0xff]
      %v2846 = vld [vmem:[%s9 + $0x1a0] sm:$0xff]
      %v2847 = vld [vmem:[%s9 + $0x1a8] sm:$0xff]
      %v2848 = vld [vmem:[%s9 + $0x1b0] sm:$0xff]
      %v2849 = vld [vmem:[%s9 + $0x1b8] sm:$0xff]
      %v2850 = vld [vmem:[%s9 + $0x1c0] sm:$0xff]
      %v2851 = vld [vmem:[%s9 + $0x1c8] sm:$0xff]
      %v2852 = vld [vmem:[%s9 + $0x1d0] sm:$0xff]
      %v2853 = vld [vmem:[%s9 + $0x1d8] sm:$0xff]
      %v2854 = vld [vmem:[%s9 + $0x1e0] sm:$0xff]
      %v2855 = vld [vmem:[%s9 + $0x1e8] sm:$0xff]
      %v2856 = vld [vmem:[%s9 + $0x1f0] sm:$0xff]
      %v2857 = vld [vmem:[%s9 + $0x1f8] sm:$0xff]
      %v2858 = vld [vmem:[%s9 + $0x200] sm:$0xff]
      %v2859 = vld [vmem:[%s9 + $0x208] sm:$0xff]
      %v2860 = vld [vmem:[%s9 + $0x210] sm:$0xff]
      %v2861 = vld [vmem:[%s9 + $0x218] sm:$0xff]
      %v2862 = vld [vmem:[%s9 + $0x220] sm:$0xff]
      %v2863 = vld [vmem:[%s9 + $0x228] sm:$0xff]
      %v2864 = vld [vmem:[%s9 + $0x230] sm:$0xff]
      %v2865 = vld [vmem:[%s9 + $0x238] sm:$0xff]
      %v2866 = vld [vmem:[%s9 + $0x240] sm:$0xff]
      %v2867 = vld [vmem:[%s9 + $0x248] sm:$0xff]
      %v2868 = vld [vmem:[%s9 + $0x250] sm:$0xff]
      %v2869 = vld [vmem:[%s9 + $0x258] sm:$0xff]
      %v2870 = vld [vmem:[%s9 + $0x260] sm:$0xff]
      %v2871 = vld [vmem:[%s9 + $0x268] sm:$0xff]
      %v2872 = vld [vmem:[%s9 + $0x270] sm:$0xff]
      %v2873 = vld [vmem:[%s9 + $0x278] sm:$0xff]
      %v2874 = vld [vmem:[%s9 + $0x280] sm:$0xff]
      %v2875 = vld [vmem:[%s9 + $0x288] sm:$0xff]
      %v2876 = vld [vmem:[%s9 + $0x290] sm:$0xff]
      %v2877 = vld [vmem:[%s9 + $0x298] sm:$0xff]
      %v2878 = vld [vmem:[%s9 + $0x2a0] sm:$0xff]
      %v2879 = vld [vmem:[%s9 + $0x2a8] sm:$0xff]
      %v2880 = vld [vmem:[%s9 + $0x2b0] sm:$0xff]
      %v2881 = vld [vmem:[%s9 + $0x2b8] sm:$0xff]
      %v2882 = vld [vmem:[%s9 + $0x2c0] sm:$0xff]
      %v2883 = vld [vmem:[%s9 + $0x2c8] sm:$0xff]
      %v2884 = vld [vmem:[%s9 + $0x2d0] sm:$0xff]
      %v2885 = vld [vmem:[%s9 + $0x2d8] sm:$0xff]
      %v2886 = vld [vmem:[%s9 + $0x2e0] sm:$0xff]
      %v2887 = vld [vmem:[%s9 + $0x2e8] sm:$0xff]
      %v2888 = vld [vmem:[%s9 + $0x2f0] sm:$0xff]
      %v2889 = vld [vmem:[%s9 + $0x2f8] sm:$0xff]
      %v2890 = vld [vmem:[%s10] sm:$0x3f]
      %v2892 = vlaneseq
      %v2893 = vshrl.u32 %v2892, 7
      %v2894 = vsub.s32 0, %v2893
      %v2895 = vrot.slane %v2890, %v2894
      %v2896 = vlaneseq
      %v2897 = vshrl.u32 %v2896, 7
      %v2898 = vsub.s32 1, %v2897
      %v2899 = vrot.slane %v2890, %v2898
      %v2900 = vlaneseq
      %v2901 = vshrl.u32 %v2900, 7
      %v2902 = vsub.s32 2, %v2901
      %v2903 = vrot.slane %v2890, %v2902
      %v2904 = vlaneseq
      %v2905 = vshrl.u32 %v2904, 7
      %v2906 = vsub.s32 3, %v2905
      %v2907 = vrot.slane %v2890, %v2906
      %v2908 = vlaneseq
      %v2909 = vshrl.u32 %v2908, 7
      %v2910 = vsub.s32 4, %v2909
      %v2911 = vrot.slane %v2890, %v2910
      %v2912 = vlaneseq
      %v2913 = vshrl.u32 %v2912, 7
      %v2914 = vsub.s32 5, %v2913
      %v2915 = vrot.slane %v2890, %v2914
      %v3018 = vunpack.c.l.b16 %v2794
      %v3019 = vunpack.c.h.b16 %v2794
      %v3020 = vunpack.c.l.b16 %v2795
      %v3021 = vunpack.c.h.b16 %v2795
      %v3022 = vunpack.c.l.b16 %v2796
      %v3023 = vunpack.c.h.b16 %v2796
      %v3024 = vunpack.c.l.b16 %v2797
      %v3025 = vunpack.c.h.b16 %v2797
      %v3026 = vunpack.c.l.b16 %v2798
      %v3027 = vunpack.c.h.b16 %v2798
      %v3028 = vunpack.c.l.b16 %v2799
      %v3029 = vunpack.c.h.b16 %v2799
      %v3030 = vunpack.c.l.b16 %v2800
      %v3031 = vunpack.c.h.b16 %v2800
      %v3032 = vunpack.c.l.b16 %v2801
      %v3033 = vunpack.c.h.b16 %v2801
      %v3034 = vunpack.c.l.b16 %v2802
      %v3035 = vunpack.c.h.b16 %v2802
      %v3036 = vunpack.c.l.b16 %v2803
      %v3037 = vunpack.c.h.b16 %v2803
      %v3038 = vunpack.c.l.b16 %v2804
      %v3039 = vunpack.c.h.b16 %v2804
      %v3040 = vunpack.c.l.b16 %v2805
      %v3041 = vunpack.c.h.b16 %v2805
      %v3042 = vunpack.c.l.b16 %v2806
      %v3043 = vunpack.c.h.b16 %v2806
      %v3044 = vunpack.c.l.b16 %v2807
      %v3045 = vunpack.c.h.b16 %v2807
      %v3046 = vunpack.c.l.b16 %v2808
      %v3047 = vunpack.c.h.b16 %v2808
      %v3048 = vunpack.c.l.b16 %v2809
      %v3049 = vunpack.c.h.b16 %v2809
      %v3050 = vunpack.c.l.b16 %v2810
      %v3051 = vunpack.c.h.b16 %v2810
      %v3052 = vunpack.c.l.b16 %v2811
      %v3053 = vunpack.c.h.b16 %v2811
      %v3054 = vunpack.c.l.b16 %v2812
      %v3055 = vunpack.c.h.b16 %v2812
      %v3056 = vunpack.c.l.b16 %v2813
      %v3057 = vunpack.c.h.b16 %v2813
      %v3058 = vunpack.c.l.b16 %v2814
      %v3059 = vunpack.c.h.b16 %v2814
      %v3060 = vunpack.c.l.b16 %v2815
      %v3061 = vunpack.c.h.b16 %v2815
      %v3062 = vunpack.c.l.b16 %v2816
      %v3063 = vunpack.c.h.b16 %v2816
      %v3064 = vunpack.c.l.b16 %v2817
      %v3065 = vunpack.c.h.b16 %v2817
      %v3066 = vunpack.c.l.b16 %v2818
      %v3067 = vunpack.c.h.b16 %v2818
      %v3068 = vunpack.c.l.b16 %v2819
      %v3069 = vunpack.c.h.b16 %v2819
      %v3070 = vunpack.c.l.b16 %v2820
      %v3071 = vunpack.c.h.b16 %v2820
      %v3072 = vunpack.c.l.b16 %v2821
      %v3073 = vunpack.c.h.b16 %v2821
      %v3074 = vunpack.c.l.b16 %v2822
      %v3075 = vunpack.c.h.b16 %v2822
      %v3076 = vunpack.c.l.b16 %v2823
      %v3077 = vunpack.c.h.b16 %v2823
      %v3078 = vunpack.c.l.b16 %v2824
      %v3079 = vunpack.c.h.b16 %v2824
      %v3080 = vunpack.c.l.b16 %v2825
      %v3081 = vunpack.c.h.b16 %v2825
      %v3082 = vunpack.c.l.b16 %v2826
      %v3083 = vunpack.c.h.b16 %v2826
      %v3084 = vunpack.c.l.b16 %v2827
      %v3085 = vunpack.c.h.b16 %v2827
      %v3086 = vunpack.c.l.b16 %v2828
      %v3087 = vunpack.c.h.b16 %v2828
      %v3088 = vunpack.c.l.b16 %v2829
      %v3089 = vunpack.c.h.b16 %v2829
      %v3090 = vunpack.c.l.b16 %v2830
      %v3091 = vunpack.c.h.b16 %v2830
      %v3092 = vunpack.c.l.b16 %v2831
      %v3093 = vunpack.c.h.b16 %v2831
      %v3094 = vunpack.c.l.b16 %v2832
      %v3095 = vunpack.c.h.b16 %v2832
      %v3096 = vunpack.c.l.b16 %v2833
      %v3097 = vunpack.c.h.b16 %v2833
      %v3098 = vunpack.c.l.b16 %v2834
      %v3099 = vunpack.c.h.b16 %v2834
      %v3100 = vunpack.c.l.b16 %v2835
      %v3101 = vunpack.c.h.b16 %v2835
      %v3102 = vunpack.c.l.b16 %v2836
      %v3103 = vunpack.c.h.b16 %v2836
      %v3104 = vunpack.c.l.b16 %v2837
      %v3105 = vunpack.c.h.b16 %v2837
      %v3106 = vunpack.c.l.b16 %v2838
      %v3107 = vunpack.c.h.b16 %v2838
      %v3108 = vunpack.c.l.b16 %v2839
      %v3109 = vunpack.c.h.b16 %v2839
      %v3110 = vunpack.c.l.b16 %v2840
      %v3111 = vunpack.c.h.b16 %v2840
      %v3112 = vunpack.c.l.b16 %v2841
      %v3113 = vunpack.c.h.b16 %v2841
      %v3114 = vunpack.c.l.b16 %v2842
      %v3115 = vunpack.c.h.b16 %v2842
      %v3116 = vunpack.c.l.b16 %v2843
      %v3117 = vunpack.c.h.b16 %v2843
      %v3118 = vunpack.c.l.b16 %v2844
      %v3119 = vunpack.c.h.b16 %v2844
      %v3120 = vunpack.c.l.b16 %v2845
      %v3121 = vunpack.c.h.b16 %v2845
      %v3122 = vunpack.c.l.b16 %v2846
      %v3123 = vunpack.c.h.b16 %v2846
      %v3124 = vunpack.c.l.b16 %v2847
      %v3125 = vunpack.c.h.b16 %v2847
      %v3126 = vunpack.c.l.b16 %v2848
      %v3127 = vunpack.c.h.b16 %v2848
      %v3128 = vunpack.c.l.b16 %v2849
      %v3129 = vunpack.c.h.b16 %v2849
      %v3130 = vunpack.c.l.b16 %v2850
      %v3131 = vunpack.c.h.b16 %v2850
      %v3132 = vunpack.c.l.b16 %v2851
      %v3133 = vunpack.c.h.b16 %v2851
      %v3134 = vunpack.c.l.b16 %v2852
      %v3135 = vunpack.c.h.b16 %v2852
      %v3136 = vunpack.c.l.b16 %v2853
      %v3137 = vunpack.c.h.b16 %v2853
      %v3138 = vunpack.c.l.b16 %v2854
      %v3139 = vunpack.c.h.b16 %v2854
      %v3140 = vunpack.c.l.b16 %v2855
      %v3141 = vunpack.c.h.b16 %v2855
      %v3142 = vunpack.c.l.b16 %v2856
      %v3143 = vunpack.c.h.b16 %v2856
      %v3144 = vunpack.c.l.b16 %v2857
      %v3145 = vunpack.c.h.b16 %v2857
      %v3146 = vunpack.c.l.b16 %v2858
      %v3147 = vunpack.c.h.b16 %v2858
      %v3148 = vunpack.c.l.b16 %v2859
      %v3149 = vunpack.c.h.b16 %v2859
      %v3150 = vunpack.c.l.b16 %v2860
      %v3151 = vunpack.c.h.b16 %v2860
      %v3152 = vunpack.c.l.b16 %v2861
      %v3153 = vunpack.c.h.b16 %v2861
      %v3154 = vunpack.c.l.b16 %v2862
      %v3155 = vunpack.c.h.b16 %v2862
      %v3156 = vunpack.c.l.b16 %v2863
      %v3157 = vunpack.c.h.b16 %v2863
      %v3158 = vunpack.c.l.b16 %v2864
      %v3159 = vunpack.c.h.b16 %v2864
      %v3160 = vunpack.c.l.b16 %v2865
      %v3161 = vunpack.c.h.b16 %v2865
      %v3162 = vunpack.c.l.b16 %v2866
      %v3163 = vunpack.c.h.b16 %v2866
      %v3164 = vunpack.c.l.b16 %v2867
      %v3165 = vunpack.c.h.b16 %v2867
      %v3166 = vunpack.c.l.b16 %v2868
      %v3167 = vunpack.c.h.b16 %v2868
      %v3168 = vunpack.c.l.b16 %v2869
      %v3169 = vunpack.c.h.b16 %v2869
      %v3170 = vunpack.c.l.b16 %v2870
      %v3171 = vunpack.c.h.b16 %v2870
      %v3172 = vunpack.c.l.b16 %v2871
      %v3173 = vunpack.c.h.b16 %v2871
      %v3174 = vunpack.c.l.b16 %v2872
      %v3175 = vunpack.c.h.b16 %v2872
      %v3176 = vunpack.c.l.b16 %v2873
      %v3177 = vunpack.c.h.b16 %v2873
      %v3178 = vunpack.c.l.b16 %v2874
      %v3179 = vunpack.c.h.b16 %v2874
      %v3180 = vunpack.c.l.b16 %v2875
      %v3181 = vunpack.c.h.b16 %v2875
      %v3182 = vunpack.c.l.b16 %v2876
      %v3183 = vunpack.c.h.b16 %v2876
      %v3184 = vunpack.c.l.b16 %v2877
      %v3185 = vunpack.c.h.b16 %v2877
      %v3186 = vunpack.c.l.b16 %v2878
      %v3187 = vunpack.c.h.b16 %v2878
      %v3188 = vunpack.c.l.b16 %v2879
      %v3189 = vunpack.c.h.b16 %v2879
      %v3190 = vunpack.c.l.b16 %v2880
      %v3191 = vunpack.c.h.b16 %v2880
      %v3192 = vunpack.c.l.b16 %v2881
      %v3193 = vunpack.c.h.b16 %v2881
      %v3194 = vunpack.c.l.b16 %v2882
      %v3195 = vunpack.c.h.b16 %v2882
      %v3196 = vunpack.c.l.b16 %v2883
      %v3197 = vunpack.c.h.b16 %v2883
      %v3198 = vunpack.c.l.b16 %v2884
      %v3199 = vunpack.c.h.b16 %v2884
      %v3200 = vunpack.c.l.b16 %v2885
      %v3201 = vunpack.c.h.b16 %v2885
      %v3202 = vunpack.c.l.b16 %v2886
      %v3203 = vunpack.c.h.b16 %v2886
      %v3204 = vunpack.c.l.b16 %v2887
      %v3205 = vunpack.c.h.b16 %v2887
      %v3206 = vunpack.c.l.b16 %v2888
      %v3207 = vunpack.c.h.b16 %v2888
      %v3208 = vunpack.c.l.b16 %v2889
      %v3209 = vunpack.c.h.b16 %v2889
      %v3210 = vpack.c.b16 %v3024, %v3018
      %v3211 = vpack.c.b16 %v3025, %v3019
      %v3212 = vpack.c.b16 %v3026, %v3020
      %v3213 = vpack.c.b16 %v3027, %v3021
      %v3214 = vpack.c.b16 %v3028, %v3022
      %v3215 = vpack.c.b16 %v3029, %v3023
      %v3216 = vpack.c.b16 %v3036, %v3030
      %v3217 = vpack.c.b16 %v3037, %v3031
      %v3218 = vpack.c.b16 %v3038, %v3032
      %v3219 = vpack.c.b16 %v3039, %v3033
      %v3220 = vpack.c.b16 %v3040, %v3034
      %v3221 = vpack.c.b16 %v3041, %v3035
      %v3222 = vpack.c.b16 %v3048, %v3042
      %v3223 = vpack.c.b16 %v3049, %v3043
      %v3224 = vpack.c.b16 %v3050, %v3044
      %v3225 = vpack.c.b16 %v3051, %v3045
      %v3226 = vpack.c.b16 %v3052, %v3046
      %v3227 = vpack.c.b16 %v3053, %v3047
      %v3228 = vpack.c.b16 %v3060, %v3054
      %v3229 = vpack.c.b16 %v3061, %v3055
      %v3230 = vpack.c.b16 %v3062, %v3056
      %v3231 = vpack.c.b16 %v3063, %v3057
      %v3232 = vpack.c.b16 %v3064, %v3058
      %v3233 = vpack.c.b16 %v3065, %v3059
      %v3234 = vpack.c.b16 %v3072, %v3066
      %v3235 = vpack.c.b16 %v3073, %v3067
      %v3236 = vpack.c.b16 %v3074, %v3068
      %v3237 = vpack.c.b16 %v3075, %v3069
      %v3238 = vpack.c.b16 %v3076, %v3070
      %v3239 = vpack.c.b16 %v3077, %v3071
      %v3240 = vpack.c.b16 %v3084, %v3078
      %v3241 = vpack.c.b16 %v3085, %v3079
      %v3242 = vpack.c.b16 %v3086, %v3080
      %v3243 = vpack.c.b16 %v3087, %v3081
      %v3244 = vpack.c.b16 %v3088, %v3082
      %v3245 = vpack.c.b16 %v3089, %v3083
      %v3246 = vpack.c.b16 %v3096, %v3090
      %v3247 = vpack.c.b16 %v3097, %v3091
      %v3248 = vpack.c.b16 %v3098, %v3092
      %v3249 = vpack.c.b16 %v3099, %v3093
      %v3250 = vpack.c.b16 %v3100, %v3094
      %v3251 = vpack.c.b16 %v3101, %v3095
      %v3252 = vpack.c.b16 %v3108, %v3102
      %v3253 = vpack.c.b16 %v3109, %v3103
      %v3254 = vpack.c.b16 %v3110, %v3104
      %v3255 = vpack.c.b16 %v3111, %v3105
      %v3256 = vpack.c.b16 %v3112, %v3106
      %v3257 = vpack.c.b16 %v3113, %v3107
      %v3258 = vpack.c.b16 %v3120, %v3114
      %v3259 = vpack.c.b16 %v3121, %v3115
      %v3260 = vpack.c.b16 %v3122, %v3116
      %v3261 = vpack.c.b16 %v3123, %v3117
      %v3262 = vpack.c.b16 %v3124, %v3118
      %v3263 = vpack.c.b16 %v3125, %v3119
      %v3264 = vpack.c.b16 %v3132, %v3126
      %v3265 = vpack.c.b16 %v3133, %v3127
      %v3266 = vpack.c.b16 %v3134, %v3128
      %v3267 = vpack.c.b16 %v3135, %v3129
      %v3268 = vpack.c.b16 %v3136, %v3130
      %v3269 = vpack.c.b16 %v3137, %v3131
      %v3270 = vpack.c.b16 %v3144, %v3138
      %v3271 = vpack.c.b16 %v3145, %v3139
      %v3272 = vpack.c.b16 %v3146, %v3140
      %v3273 = vpack.c.b16 %v3147, %v3141
      %v3274 = vpack.c.b16 %v3148, %v3142
      %v3275 = vpack.c.b16 %v3149, %v3143
      %v3276 = vpack.c.b16 %v3156, %v3150
      %v3277 = vpack.c.b16 %v3157, %v3151
      %v3278 = vpack.c.b16 %v3158, %v3152
      %v3279 = vpack.c.b16 %v3159, %v3153
      %v3280 = vpack.c.b16 %v3160, %v3154
      %v3281 = vpack.c.b16 %v3161, %v3155
      %v3282 = vpack.c.b16 %v3168, %v3162
      %v3283 = vpack.c.b16 %v3169, %v3163
      %v3284 = vpack.c.b16 %v3170, %v3164
      %v3285 = vpack.c.b16 %v3171, %v3165
      %v3286 = vpack.c.b16 %v3172, %v3166
      %v3287 = vpack.c.b16 %v3173, %v3167
      %v3288 = vpack.c.b16 %v3180, %v3174
      %v3289 = vpack.c.b16 %v3181, %v3175
      %v3290 = vpack.c.b16 %v3182, %v3176
      %v3291 = vpack.c.b16 %v3183, %v3177
      %v3292 = vpack.c.b16 %v3184, %v3178
      %v3293 = vpack.c.b16 %v3185, %v3179
      %v3294 = vpack.c.b16 %v3192, %v3186
      %v3295 = vpack.c.b16 %v3193, %v3187
      %v3296 = vpack.c.b16 %v3194, %v3188
      %v3297 = vpack.c.b16 %v3195, %v3189
      %v3298 = vpack.c.b16 %v3196, %v3190
      %v3299 = vpack.c.b16 %v3197, %v3191
      %v3300 = vpack.c.b16 %v3204, %v3198
      %v3301 = vpack.c.b16 %v3205, %v3199
      %v3302 = vpack.c.b16 %v3206, %v3200
      %v3303 = vpack.c.b16 %v3207, %v3201
      %v3304 = vpack.c.b16 %v3208, %v3202
      %v3305 = vpack.c.b16 %v3209, %v3203
      %3402 = vmatprep.subr.bf16.mxu0 %v3253
      %3403 = vmatpush1.bf16.msra.mxu0 %v3252
      %3404 = vmatprep.subr.bf16.mxu0 %v3247
      %3405 = vmatpush1.bf16.msra.mxu0 %v3246
      %3406 = vmatprep.subr.bf16.mxu0 %v3241
      %3407 = vmatpush1.bf16.msra.mxu0 %v3240
      %3408 = vmatprep.subr.bf16.mxu0 %v3235
      %3409 = vmatpush1.bf16.msra.mxu0 %v3234
      %3410 = vmatprep.subr.bf16.mxu0 %v3229
      %3411 = vmatpush1.bf16.msra.mxu0 %v3228
      %3412 = vmatprep.subr.bf16.mxu0 %v3223
      %3413 = vmatpush1.bf16.msra.mxu0 %v3222
      %3414 = vmatprep.subr.bf16.mxu0 %v3217
      %3415 = vmatpush1.bf16.msra.mxu0 %v3216
      %3416 = vmatprep.subr.bf16.mxu0 %v3211
      %3417 = vmatpush1.bf16.msra.mxu0 %v3210
      %3418 = vmatprep.subr.bf16.mxu0 %v3301
      %3419 = vmatpush2.bf16.msra.mxu0 %v3300
      %3420 = vmatprep.subr.bf16.mxu0 %v3295
      %3421 = vmatpush2.bf16.msra.mxu0 %v3294
      %3422 = vmatprep.subr.bf16.mxu0 %v3289
      %3423 = vmatpush2.bf16.msra.mxu0 %v3288
      %3424 = vmatprep.subr.bf16.mxu0 %v3283
      %3425 = vmatpush2.bf16.msra.mxu0 %v3282
      %3426 = vmatprep.subr.bf16.mxu0 %v3277
      %3427 = vmatpush2.bf16.msra.mxu0 %v3276
      %3428 = vmatprep.subr.bf16.mxu0 %v3271
      %3429 = vmatpush2.bf16.msra.mxu0 %v3270
      %3430 = vmatprep.subr.bf16.mxu0 %v3265
      %3431 = vmatpush2.bf16.msra.mxu0 %v3264
      %3432 = vmatprep.subr.bf16.mxu0 %v3259
      %3433 = vmatpush2.bf16.msra.mxu0 %v3258
      %3434 = vmatprep.mubr.bf16.mxu0 %v2793
      %3435 = vmatmul.mubr.bf16.gmra.mxu0 %v2792
      %v3436 = vpop.f32.mrf.mxu0
      %v3437 = vadd.f32 %v2895, %v3436
      %v3438 = vpop.f32.mrf.mxu0
      %v3439 = vadd.f32 %v2899, %v3438
      %v3440 = vpop.f32.mrf.mxu0
      %v3441 = vpop.f32.mrf.mxu0
      %3442 = vdwg.mxu0
      %3443 = vmatprep.subr.bf16.mxu0 %v3255
      %3444 = vmatpush1.bf16.msra.mxu0 %v3254
      %3445 = vmatprep.subr.bf16.mxu0 %v3249
      %3446 = vmatpush1.bf16.msra.mxu0 %v3248
      %3447 = vmatprep.subr.bf16.mxu0 %v3243
      %3448 = vmatpush1.bf16.msra.mxu0 %v3242
      %3449 = vmatprep.subr.bf16.mxu0 %v3237
      %3450 = vmatpush1.bf16.msra.mxu0 %v3236
      %3451 = vmatprep.subr.bf16.mxu0 %v3231
      %3452 = vmatpush1.bf16.msra.mxu0 %v3230
      %3453 = vmatprep.subr.bf16.mxu0 %v3225
      %3454 = vmatpush1.bf16.msra.mxu0 %v3224
      %3455 = vmatprep.subr.bf16.mxu0 %v3219
      %3456 = vmatpush1.bf16.msra.mxu0 %v3218
      %3457 = vmatprep.subr.bf16.mxu0 %v3213
      %3458 = vmatpush1.bf16.msra.mxu0 %v3212
      %3459 = vmatprep.subr.bf16.mxu0 %v3303
      %3460 = vmatpush2.bf16.msra.mxu0 %v3302
      %3461 = vmatprep.subr.bf16.mxu0 %v3297
      %3462 = vmatpush2.bf16.msra.mxu0 %v3296
      %3463 = vmatprep.subr.bf16.mxu0 %v3291
      %3464 = vmatpush2.bf16.msra.mxu0 %v3290
      %3465 = vmatprep.subr.bf16.mxu0 %v3285
      %3466 = vmatpush2.bf16.msra.mxu0 %v3284
      %3467 = vmatprep.subr.bf16.mxu0 %v3279
      %3468 = vmatpush2.bf16.msra.mxu0 %v3278
      %3469 = vmatprep.subr.bf16.mxu0 %v3273
      %3470 = vmatpush2.bf16.msra.mxu0 %v3272
      %3471 = vmatprep.subr.bf16.mxu0 %v3267
      %3472 = vmatpush2.bf16.msra.mxu0 %v3266
      %3473 = vmatprep.subr.bf16.mxu0 %v3261
      %3474 = vmatpush2.bf16.msra.mxu0 %v3260
      %3475 = vmatprep.mubr.bf16.mxu0 %v2793
      %3476 = vmatmul.mubr.bf16.gmra.mxu0 %v2792
      %v3477 = vpop.f32.mrf.mxu0
      %v3478 = vadd.f32 %v2903, %v3477
      %v3479 = vpop.f32.mrf.mxu0
      %v3480 = vadd.f32 %v2907, %v3479
      %v3481 = vpop.f32.mrf.mxu0
      %v3482 = vpop.f32.mrf.mxu0
      %3483 = vdwg.mxu0
      %3484 = vmatprep.subr.bf16.mxu0 %v3257
      %3485 = vmatpush1.bf16.msra.mxu0 %v3256
      %3486 = vmatprep.subr.bf16.mxu0 %v3251
      %3487 = vmatpush1.bf16.msra.mxu0 %v3250
      %3488 = vmatprep.subr.bf16.mxu0 %v3245
      %3489 = vmatpush1.bf16.msra.mxu0 %v3244
      %3490 = vmatprep.subr.bf16.mxu0 %v3239
      %3491 = vmatpush1.bf16.msra.mxu0 %v3238
      %3492 = vmatprep.subr.bf16.mxu0 %v3233
      %3493 = vmatpush1.bf16.msra.mxu0 %v3232
      %3494 = vmatprep.subr.bf16.mxu0 %v3227
      %3495 = vmatpush1.bf16.msra.mxu0 %v3226
      %3496 = vmatprep.subr.bf16.mxu0 %v3221
      %3497 = vmatpush1.bf16.msra.mxu0 %v3220
      %3498 = vmatprep.subr.bf16.mxu0 %v3215
      %3499 = vmatpush1.bf16.msra.mxu0 %v3214
      %3500 = vmatprep.subr.bf16.mxu0 %v3305
      %3501 = vmatpush2.bf16.msra.mxu0 %v3304
      %3502 = vmatprep.subr.bf16.mxu0 %v3299
      %3503 = vmatpush2.bf16.msra.mxu0 %v3298
      %3504 = vmatprep.subr.bf16.mxu0 %v3293
      %3505 = vmatpush2.bf16.msra.mxu0 %v3292
      %3506 = vmatprep.subr.bf16.mxu0 %v3287
      %3507 = vmatpush2.bf16.msra.mxu0 %v3286
      %3508 = vmatprep.subr.bf16.mxu0 %v3281
      %3509 = vmatpush2.bf16.msra.mxu0 %v3280
      %3510 = vmatprep.subr.bf16.mxu0 %v3275
      %3511 = vmatpush2.bf16.msra.mxu0 %v3274
      %3512 = vmatprep.subr.bf16.mxu0 %v3269
      %3513 = vmatpush2.bf16.msra.mxu0 %v3268
      %3514 = vmatprep.subr.bf16.mxu0 %v3263
      %3515 = vmatpush2.bf16.msra.mxu0 %v3262
      %3516 = vmatprep.mubr.bf16.mxu0 %v2793
      %3517 = vmatmul.mubr.bf16.gmra.mxu0 %v2792
      %v3518 = vpop.f32.mrf.mxu0
      %v3519 = vadd.f32 %v2911, %v3518
      %v3520 = vpop.f32.mrf.mxu0
      %v3521 = vadd.f32 %v2915, %v3520
      %v3522 = vpop.f32.mrf.mxu0
      %v3523 = vpop.f32.mrf.mxu0
      %3524 = vdwg.mxu0
      %v3525 = vpack.c.bf16 %v3437, %v3437
      %v3526 = vpack.c.bf16 %v3439, %v3439
      %v3527 = vpack.c.bf16 %v3478, %v3478
      %v3528 = vpack.c.bf16 %v3480, %v3480
      %v3529 = vpack.c.bf16 %v3519, %v3519
      %v3530 = vpack.c.bf16 %v3521, %v3521
      %3531 = vmatprep.subr.bf16.mxu0 0
      %3532 = vmatpush1.bf16.xpose.msra.mxu0 0
      %3533 = vmatprep.subr.bf16.mxu0 0
      %3534 = vmatpush1.bf16.xpose.msra.mxu0 0
      %3535 = vmatprep.subr.bf16.mxu0 0
      %3536 = vmatpush1.bf16.xpose.msra.mxu0 0
      %3537 = vmatprep.subr.bf16.mxu0 0
      %3538 = vmatpush1.bf16.xpose.msra.mxu0 0
      %3539 = vmatprep.subr.bf16.mxu0 0
      %3540 = vmatpush1.bf16.xpose.msra.mxu0 0
      %3541 = vmatprep.subr.bf16.mxu0 0
      %3542 = vmatpush1.bf16.xpose.msra.mxu0 0
      %3543 = vmatprep.subr.bf16.mxu0 0
      %3544 = vmatpush1.bf16.xpose.msra.mxu0 0
      %3545 = vmatprep.subr.bf16.mxu0 %v3528
      %3546 = vmatpush1.bf16.xpose.msra.mxu0 %v3527
      %3547 = vmatprep.subr.bf16.mxu0 0
      %3548 = vmatpush2.bf16.xpose.msra.mxu0 0
      %3549 = vmatprep.subr.bf16.mxu0 0
      %3550 = vmatpush2.bf16.xpose.msra.mxu0 0
      %3551 = vmatprep.subr.bf16.mxu0 0
      %3552 = vmatpush2.bf16.xpose.msra.mxu0 0
      %3553 = vmatprep.subr.bf16.mxu0 0
      %3554 = vmatpush2.bf16.xpose.msra.mxu0 0
      %3555 = vmatprep.subr.bf16.mxu0 0
      %3556 = vmatpush2.bf16.xpose.msra.mxu0 0
      %3557 = vmatprep.subr.bf16.mxu0 0
      %3558 = vmatpush2.bf16.xpose.msra.mxu0 0
      %3559 = vmatprep.subr.bf16.mxu0 0
      %3560 = vmatpush2.bf16.xpose.msra.mxu0 0
      %3561 = vmatprep.subr.bf16.mxu0 0
      %3562 = vmatpush2.bf16.xpose.msra.mxu0 0
      %3563 = vmatprep.mubr.bf16.mxu0 %v3526
      %3564 = vmatmul.mubr.bf16.gmra.mxu0 %v3525
      %v3565 = vpop.f32.mrf.mxu0
      %v3566 = vadd.f32 0.0, %v3565
      %v3567 = vpop.f32.mrf.mxu0
      %v3568 = vpop.f32.mrf.mxu0
      %v3569 = vpop.f32.mrf.mxu0
      %3570 = vdwg.mxu0
      %v3571 = vmul.f32 %v3566, 0.0625
      %vm3572 = vcmask 27648
      %v3573 = vsel %vm3572, %v3571, -inf
      %3574 = vmax.xlane.f32.xlu0 %v3573
      %v3575 = vpop.xlane.xlu0 %3574
      %v3576 = vsub.f32 %v3571, %v3575
      %v3577 = vmul.f32 %v3576, 1.442695
      %v3578 = vpow.pop %v3577
      %v3579 = vsel %vm3572, %v3578, 0.0
      %3580 = vadd.xlane.f32.xlu0 %v3579
      %v3581 = vpop.xlane.xlu0 %3580
      %v3582 = vrcp.pop %v3581
      %v3583 = vmul.f32 %v3578, %v3582
      %v3584 = vpack.c.bf16 %v3583, %v3583
      %vm3585 = vcmask 31744
      %v3587 = vsel %vm3585, %v3584, 0
      %vm3589 = vcmask 1041408
      %v3591 = vsel %vm3589, %v3529, 0
      %v3594 = vsel %vm3589, %v3530, 0
      %3596 = vmatprep.subr.bf16.mxu0 0
      %3597 = vmatpush1.bf16.msra.mxu0 0
      %3598 = vmatprep.subr.bf16.mxu0 0
      %3599 = vmatpush1.bf16.msra.mxu0 0
      %3600 = vmatprep.subr.bf16.mxu0 0
      %3601 = vmatpush1.bf16.msra.mxu0 0
      %3602 = vmatprep.subr.bf16.mxu0 0
      %3603 = vmatpush1.bf16.msra.mxu0 0
      %3604 = vmatprep.subr.bf16.mxu0 0
      %3605 = vmatpush1.bf16.msra.mxu0 0
      %3606 = vmatprep.subr.bf16.mxu0 0
      %3607 = vmatpush1.bf16.msra.mxu0 0
      %3608 = vmatprep.subr.bf16.mxu0 0
      %3609 = vmatpush1.bf16.msra.mxu0 0
      %3610 = vmatprep.subr.bf16.mxu0 %v3594
      %3611 = vmatpush1.bf16.msra.mxu0 %v3591
      %3612 = vmatprep.subr.bf16.mxu0 0
      %3613 = vmatpush2.bf16.msra.mxu0 0
      %3614 = vmatprep.subr.bf16.mxu0 0
      %3615 = vmatpush2.bf16.msra.mxu0 0
      %3616 = vmatprep.subr.bf16.mxu0 0
      %3617 = vmatpush2.bf16.msra.mxu0 0
      %3618 = vmatprep.subr.bf16.mxu0 0
      %3619 = vmatpush2.bf16.msra.mxu0 0
      %3620 = vmatprep.subr.bf16.mxu0 0
      %3621 = vmatpush2.bf16.msra.mxu0 0
      %3622 = vmatprep.subr.bf16.mxu0 0
      %3623 = vmatpush2.bf16.msra.mxu0 0
      %3624 = vmatprep.subr.bf16.mxu0 0
      %3625 = vmatpush2.bf16.msra.mxu0 0
      %3626 = vmatprep.subr.bf16.mxu0 0
      %3627 = vmatpush2.bf16.msra.mxu0 0
      %3628 = vmatprep.mubr.bf16.mxu0 0
      %3629 = vmatmul.mubr.bf16.gmra.mxu0 %v3587
      %v3630 = vpop.f32.mrf.mxu0
      %v3631 = vadd.f32 0.0, %v3630
      %v3632 = vpop.f32.mrf.mxu0
      %v3633 = vadd.f32 0.0, %v3632
      %v3634 = vpop.f32.mrf.mxu0
      %v3635 = vpop.f32.mrf.mxu0
      %3636 = vdwg.mxu0
      %v3637 = vpack.c.bf16 %v3631, %v3631
      %v3638 = vpack.c.bf16 %v3633, %v3633
      %v3639 = vld [vmem:[%s11] sm:$0xff]
      %v3640 = vld [vmem:[%s11 + $0x8] sm:$0xff]
      %v3641 = vld [vmem:[%s11 + $0x10] sm:$0xff]
      %v3642 = vld [vmem:[%s11 + $0x18] sm:$0xff]
      %v3643 = vld [vmem:[%s11 + $0x20] sm:$0xff]
      %v3644 = vld [vmem:[%s11 + $0x28] sm:$0xff]
      %v3645 = vld [vmem:[%s11 + $0x30] sm:$0xff]
      %v3646 = vld [vmem:[%s11 + $0x38] sm:$0xff]
      %v3647 = vld [vmem:[%s11 + $0x40] sm:$0xff]
      %v3648 = vld [vmem:[%s11 + $0x48] sm:$0xff]
      %v3649 = vld [vmem:[%s11 + $0x50] sm:$0xff]
      %v3650 = vld [vmem:[%s11 + $0x58] sm:$0xff]
      %v3651 = vld [vmem:[%s11 + $0x60] sm:$0xff]
      %v3652 = vld [vmem:[%s11 + $0x68] sm:$0xff]
      %v3653 = vld [vmem:[%s11 + $0x70] sm:$0xff]
      %v3654 = vld [vmem:[%s11 + $0x78] sm:$0xff]
      %v3655 = vld [vmem:[%s11 + $0x80] sm:$0xff]
      %v3656 = vld [vmem:[%s11 + $0x88] sm:$0xff]
      %v3657 = vld [vmem:[%s11 + $0x90] sm:$0xff]
      %v3658 = vld [vmem:[%s11 + $0x98] sm:$0xff]
      %v3659 = vld [vmem:[%s11 + $0xa0] sm:$0xff]
      %v3660 = vld [vmem:[%s11 + $0xa8] sm:$0xff]
      %v3661 = vld [vmem:[%s11 + $0xb0] sm:$0xff]
      %v3662 = vld [vmem:[%s11 + $0xb8] sm:$0xff]
      %v3663 = vld [vmem:[%s11 + $0xc0] sm:$0xff]
      %v3664 = vld [vmem:[%s11 + $0xc8] sm:$0xff]
      %v3665 = vld [vmem:[%s11 + $0xd0] sm:$0xff]
      %v3666 = vld [vmem:[%s11 + $0xd8] sm:$0xff]
      %v3667 = vld [vmem:[%s11 + $0xe0] sm:$0xff]
      %v3668 = vld [vmem:[%s11 + $0xe8] sm:$0xff]
      %v3669 = vld [vmem:[%s11 + $0xf0] sm:$0xff]
      %v3670 = vld [vmem:[%s11 + $0xf8] sm:$0xff]
      %v3671 = vld [vmem:[%s12] sm:$0x3]
      %v3673 = vlaneseq
      %v3674 = vshrl.u32 %v3673, 7
      %v3675 = vsub.s32 0, %v3674
      %v3676 = vrot.slane %v3671, %v3675
      %v3677 = vlaneseq
      %v3678 = vshrl.u32 %v3677, 7
      %v3679 = vsub.s32 1, %v3678
      %v3680 = vrot.slane %v3671, %v3679
      %v3715 = vunpack.c.l.b16 %v3639
      %v3716 = vunpack.c.h.b16 %v3639
      %v3717 = vunpack.c.l.b16 %v3640
      %v3718 = vunpack.c.h.b16 %v3640
      %v3719 = vunpack.c.l.b16 %v3641
      %v3720 = vunpack.c.h.b16 %v3641
      %v3721 = vunpack.c.l.b16 %v3642
      %v3722 = vunpack.c.h.b16 %v3642
      %v3723 = vunpack.c.l.b16 %v3643
      %v3724 = vunpack.c.h.b16 %v3643
      %v3725 = vunpack.c.l.b16 %v3644
      %v3726 = vunpack.c.h.b16 %v3644
      %v3727 = vunpack.c.l.b16 %v3645
      %v3728 = vunpack.c.h.b16 %v3645
      %v3729 = vunpack.c.l.b16 %v3646
      %v3730 = vunpack.c.h.b16 %v3646
      %v3731 = vunpack.c.l.b16 %v3647
      %v3732 = vunpack.c.h.b16 %v3647
      %v3733 = vunpack.c.l.b16 %v3648
      %v3734 = vunpack.c.h.b16 %v3648
      %v3735 = vunpack.c.l.b16 %v3649
      %v3736 = vunpack.c.h.b16 %v3649
      %v3737 = vunpack.c.l.b16 %v3650
      %v3738 = vunpack.c.h.b16 %v3650
      %v3739 = vunpack.c.l.b16 %v3651
      %v3740 = vunpack.c.h.b16 %v3651
      %v3741 = vunpack.c.l.b16 %v3652
      %v3742 = vunpack.c.h.b16 %v3652
      %v3743 = vunpack.c.l.b16 %v3653
      %v3744 = vunpack.c.h.b16 %v3653
      %v3745 = vunpack.c.l.b16 %v3654
      %v3746 = vunpack.c.h.b16 %v3654
      %v3747 = vunpack.c.l.b16 %v3655
      %v3748 = vunpack.c.h.b16 %v3655
      %v3749 = vunpack.c.l.b16 %v3656
      %v3750 = vunpack.c.h.b16 %v3656
      %v3751 = vunpack.c.l.b16 %v3657
      %v3752 = vunpack.c.h.b16 %v3657
      %v3753 = vunpack.c.l.b16 %v3658
      %v3754 = vunpack.c.h.b16 %v3658
      %v3755 = vunpack.c.l.b16 %v3659
      %v3756 = vunpack.c.h.b16 %v3659
      %v3757 = vunpack.c.l.b16 %v3660
      %v3758 = vunpack.c.h.b16 %v3660
      %v3759 = vunpack.c.l.b16 %v3661
      %v3760 = vunpack.c.h.b16 %v3661
      %v3761 = vunpack.c.l.b16 %v3662
      %v3762 = vunpack.c.h.b16 %v3662
      %v3763 = vunpack.c.l.b16 %v3663
      %v3764 = vunpack.c.h.b16 %v3663
      %v3765 = vunpack.c.l.b16 %v3664
      %v3766 = vunpack.c.h.b16 %v3664
      %v3767 = vunpack.c.l.b16 %v3665
      %v3768 = vunpack.c.h.b16 %v3665
      %v3769 = vunpack.c.l.b16 %v3666
      %v3770 = vunpack.c.h.b16 %v3666
      %v3771 = vunpack.c.l.b16 %v3667
      %v3772 = vunpack.c.h.b16 %v3667
      %v3773 = vunpack.c.l.b16 %v3668
      %v3774 = vunpack.c.h.b16 %v3668
      %v3775 = vunpack.c.l.b16 %v3669
      %v3776 = vunpack.c.h.b16 %v3669
      %v3777 = vunpack.c.l.b16 %v3670
      %v3778 = vunpack.c.h.b16 %v3670
      %v3779 = vpack.c.b16 %v3717, %v3715
      %v3780 = vpack.c.b16 %v3718, %v3716
      %v3781 = vpack.c.b16 %v3721, %v3719
      %v3782 = vpack.c.b16 %v3722, %v3720
      %v3783 = vpack.c.b16 %v3725, %v3723
      %v3784 = vpack.c.b16 %v3726, %v3724
      %v3785 = vpack.c.b16 %v3729, %v3727
      %v3786 = vpack.c.b16 %v3730, %v3728
      %v3787 = vpack.c.b16 %v3733, %v3731
      %v3788 = vpack.c.b16 %v3734, %v3732
      %v3789 = vpack.c.b16 %v3737, %v3735
      %v3790 = vpack.c.b16 %v3738, %v3736
      %v3791 = vpack.c.b16 %v3741, %v3739
      %v3792 = vpack.c.b16 %v3742, %v3740
      %v3793 = vpack.c.b16 %v3745, %v3743
      %v3794 = vpack.c.b16 %v3746, %v3744
      %v3795 = vpack.c.b16 %v3749, %v3747
      %v3796 = vpack.c.b16 %v3750, %v3748
      %v3797 = vpack.c.b16 %v3753, %v3751
      %v3798 = vpack.c.b16 %v3754, %v3752
      %v3799 = vpack.c.b16 %v3757, %v3755
      %v3800 = vpack.c.b16 %v3758, %v3756
      %v3801 = vpack.c.b16 %v3761, %v3759
      %v3802 = vpack.c.b16 %v3762, %v3760
      %v3803 = vpack.c.b16 %v3765, %v3763
      %v3804 = vpack.c.b16 %v3766, %v3764
      %v3805 = vpack.c.b16 %v3769, %v3767
      %v3806 = vpack.c.b16 %v3770, %v3768
      %v3807 = vpack.c.b16 %v3773, %v3771
      %v3808 = vpack.c.b16 %v3774, %v3772
      %v3809 = vpack.c.b16 %v3777, %v3775
      %v3810 = vpack.c.b16 %v3778, %v3776
      %3843 = vmatprep.subr.bf16.mxu0 %v3794
      %3844 = vmatpush1.bf16.msra.mxu0 %v3793
      %3845 = vmatprep.subr.bf16.mxu0 %v3792
      %3846 = vmatpush1.bf16.msra.mxu0 %v3791
      %3847 = vmatprep.subr.bf16.mxu0 %v3790
      %3848 = vmatpush1.bf16.msra.mxu0 %v3789
      %3849 = vmatprep.subr.bf16.mxu0 %v3788
      %3850 = vmatpush1.bf16.msra.mxu0 %v3787
      %3851 = vmatprep.subr.bf16.mxu0 %v3786
      %3852 = vmatpush1.bf16.msra.mxu0 %v3785
      %3853 = vmatprep.subr.bf16.mxu0 %v3784
      %3854 = vmatpush1.bf16.msra.mxu0 %v3783
      %3855 = vmatprep.subr.bf16.mxu0 %v3782
      %3856 = vmatpush1.bf16.msra.mxu0 %v3781
      %3857 = vmatprep.subr.bf16.mxu0 %v3780
      %3858 = vmatpush1.bf16.msra.mxu0 %v3779
      %3859 = vmatprep.subr.bf16.mxu0 %v3810
      %3860 = vmatpush2.bf16.msra.mxu0 %v3809
      %3861 = vmatprep.subr.bf16.mxu0 %v3808
      %3862 = vmatpush2.bf16.msra.mxu0 %v3807
      %3863 = vmatprep.subr.bf16.mxu0 %v3806
      %3864 = vmatpush2.bf16.msra.mxu0 %v3805
      %3865 = vmatprep.subr.bf16.mxu0 %v3804
      %3866 = vmatpush2.bf16.msra.mxu0 %v3803
      %3867 = vmatprep.subr.bf16.mxu0 %v3802
      %3868 = vmatpush2.bf16.msra.mxu0 %v3801
      %3869 = vmatprep.subr.bf16.mxu0 %v3800
      %3870 = vmatpush2.bf16.msra.mxu0 %v3799
      %3871 = vmatprep.subr.bf16.mxu0 %v3798
      %3872 = vmatpush2.bf16.msra.mxu0 %v3797
      %3873 = vmatprep.subr.bf16.mxu0 %v3796
      %3874 = vmatpush2.bf16.msra.mxu0 %v3795
      %3875 = vmatprep.mubr.bf16.mxu0 %v3638
      %3876 = vmatmul.mubr.bf16.gmra.mxu0 %v3637
      %v3877 = vpop.f32.mrf.mxu0
      %v3878 = vadd.f32 %v3676, %v3877
      %v3879 = vpop.f32.mrf.mxu0
      %v3880 = vadd.f32 %v3680, %v3879
      %v3881 = vpop.f32.mrf.mxu0
      %v3882 = vpop.f32.mrf.mxu0
      %3883 = vdwg.mxu0
      %v3884 = vadd.f32 %v2789, %v3878
      %v3885 = vadd.f32 %v2790, %v3880
      %v3886 = vpack.c.bf16 %v3884, %v3884
      %v3887 = vpack.c.bf16 %v3885, %v3885
      %v3888 = vld [vmem:[%s13] sm:$0xf]
      %v3889 = vld [vmem:[%s13 + $0x4] sm:$0xf]
      %v3890 = vld [vmem:[%s13 + $0x8] sm:$0xf]
      %v3891 = vld [vmem:[%s13 + $0xc] sm:$0xf]
      %v3892 = vld [vmem:[%s14] sm:$0xf]
      %v3893 = vld [vmem:[%s14 + $0x4] sm:$0xf]
      %v3894 = vld [vmem:[%s14 + $0x8] sm:$0xf]
      %v3895 = vld [vmem:[%s14 + $0xc] sm:$0xf]
      %v3896 = vld [vmem:[%s14 + $0x10] sm:$0xf]
      %v3897 = vld [vmem:[%s14 + $0x14] sm:$0xf]
      %v3898 = vld [vmem:[%s14 + $0x18] sm:$0xf]
      %v3899 = vld [vmem:[%s14 + $0x1c] sm:$0xf]
      %v3908 = vunpack.c.l.b16 %v3892
      %v3909 = vunpack.c.l.b16 %v3893
      %v3910 = vunpack.c.l.b16 %v3894
      %v3911 = vunpack.c.l.b16 %v3895
      %v3912 = vunpack.c.l.b16 %v3896
      %v3913 = vunpack.c.l.b16 %v3897
      %v3914 = vunpack.c.l.b16 %v3898
      %v3915 = vunpack.c.l.b16 %v3899
      %v3916 = vpack.c.b16 %v3909, %v3908
      %v3917 = vpack.c.b16 %v3911, %v3910
      %v3918 = vpack.c.b16 %v3913, %v3912
      %v3919 = vpack.c.b16 %v3915, %v3914
      %3924 = vmatprep.subr.bf16.mxu0 0
      %3925 = vmatpush1.bf16.msra.mxu0 0
      %3926 = vmatprep.subr.bf16.mxu0 0
      %3927 = vmatpush1.bf16.msra.mxu0 0
      %3928 = vmatprep.subr.bf16.mxu0 0
      %3929 = vmatpush1.bf16.msra.mxu0 0
      %3930 = vmatprep.subr.bf16.mxu0 0
      %3931 = vmatpush1.bf16.msra.mxu0 0
      %3932 = vmatprep.subr.bf16.mxu0 0
      %3933 = vmatpush1.bf16.msra.mxu0 %v3919
      %3934 = vmatprep.subr.bf16.mxu0 0
      %3935 = vmatpush1.bf16.msra.mxu0 %v3918
      %3936 = vmatprep.subr.bf16.mxu0 0
      %3937 = vmatpush1.bf16.msra.mxu0 %v3917
      %3938 = vmatprep.subr.bf16.mxu0 0
      %3939 = vmatpush1.bf16.msra.mxu0 %v3916
      %3940 = vmatprep.subr.bf16.mxu0 0
      %3941 = vmatpush2.bf16.msra.mxu0 0
      %3942 = vmatprep.subr.bf16.mxu0 0
      %3943 = vmatpush2.bf16.msra.mxu0 0
      %3944 = vmatprep.subr.bf16.mxu0 0
      %3945 = vmatpush2.bf16.msra.mxu0 0
      %3946 = vmatprep.subr.bf16.mxu0 0
      %3947 = vmatpush2.bf16.msra.mxu0 0
      %3948 = vmatprep.subr.bf16.mxu0 0
      %3949 = vmatpush2.bf16.msra.mxu0 0
      %3950 = vmatprep.subr.bf16.mxu0 0
      %3951 = vmatpush2.bf16.msra.mxu0 0
      %3952 = vmatprep.subr.bf16.mxu0 0
      %3953 = vmatpush2.bf16.msra.mxu0 0
      %3954 = vmatprep.subr.bf16.mxu0 0
      %3955 = vmatpush2.bf16.msra.mxu0 0
      %3956 = vmatprep.mubr.bf16.mxu0 0
      %3957 = vmatmul.mubr.bf16.gmra.mxu0 %v1968
      %v3958 = vpop.f32.mrf.mxu0
      %v3959 = vadd.f32 0.0, %v3958
      %v3960 = vpop.f32.mrf.mxu0
      %v3961 = vpop.f32.mrf.mxu0
      %v3962 = vadd.f32 0.0, %v3961
      %v3963 = vpop.f32.mrf.mxu0
      %3964 = vmatprep.mubr.bf16.mxu0 0
      %3965 = vmatmul.mubr.bf16.gmra.mxu0 %v1900
      %v3966 = vpop.f32.mrf.mxu0
      %v3967 = vadd.f32 0.0, %v3966
      %v3968 = vpop.f32.mrf.mxu0
      %v3969 = vpop.f32.mrf.mxu0
      %v3970 = vadd.f32 0.0, %v3969
      %v3971 = vpop.f32.mrf.mxu0
      %3972 = vmatprep.mubr.bf16.mxu0 0
      %3973 = vmatmul.mubr.bf16.gmra.mxu0 %v2045
      %v3974 = vpop.f32.mrf.mxu0
      %v3975 = vadd.f32 0.0, %v3974
      %v3976 = vpop.f32.mrf.mxu0
      %v3977 = vpop.f32.mrf.mxu0
      %v3978 = vadd.f32 0.0, %v3977
      %v3979 = vpop.f32.mrf.mxu0
      %3980 = vmatprep.mubr.bf16.mxu0 0
      %3981 = vmatmul.mubr.bf16.gmra.mxu0 %v2124
      %v3982 = vpop.f32.mrf.mxu0
      %v3983 = vadd.f32 0.0, %v3982
      %v3984 = vpop.f32.mrf.mxu0
      %v3985 = vpop.f32.mrf.mxu0
      %v3986 = vadd.f32 0.0, %v3985
      %v3987 = vpop.f32.mrf.mxu0
      %3988 = vdwg.mxu0
      %v3989 = vpack.c.bf16 %v3962, %v3959
      %v3990 = vpack.c.bf16 %v3970, %v3967
      %v3991 = vpack.c.bf16 %v3978, %v3975
      %v3992 = vpack.c.bf16 %v3986, %v3983
      %v3993 = vld [vmem:[%s20] sm:$0xf]
      %v3994 = vld [vmem:[%s20 + $0x4] sm:$0xf]
      %v3995 = vld [vmem:[%s20 + $0x8] sm:$0xf]
      %v3996 = vld [vmem:[%s20 + $0xc] sm:$0xf]
      %v3997 = vld [vmem:[%s20 + $0x10] sm:$0xf]
      %v3998 = vld [vmem:[%s20 + $0x14] sm:$0xf]
      %v3999 = vld [vmem:[%s20 + $0x18] sm:$0xf]
      %v4000 = vld [vmem:[%s20 + $0x1c] sm:$0xf]
      %v4001 = vld [vmem:[%s20 + $0x20] sm:$0xf]
      %v4002 = vld [vmem:[%s20 + $0x24] sm:$0xf]
      %v4003 = vld [vmem:[%s20 + $0x28] sm:$0xf]
      %v4004 = vld [vmem:[%s20 + $0x2c] sm:$0xf]
      %v4005 = vld [vmem:[%s20 + $0x30] sm:$0xf]
      %v4006 = vld [vmem:[%s20 + $0x34] sm:$0xf]
      %v4007 = vld [vmem:[%s20 + $0x38] sm:$0xf]
      %v4008 = vld [vmem:[%s20 + $0x3c] sm:$0xf]
      %v4009 = vld [vmem:[%s20 + $0x40] sm:$0xf]
      %v4010 = vld [vmem:[%s20 + $0x44] sm:$0xf]
      %v4011 = vld [vmem:[%s20 + $0x48] sm:$0xf]
      %v4012 = vld [vmem:[%s20 + $0x4c] sm:$0xf]
      %v4013 = vld [vmem:[%s20 + $0x50] sm:$0xf]
      %v4014 = vld [vmem:[%s20 + $0x54] sm:$0xf]
      %v4015 = vld [vmem:[%s20 + $0x58] sm:$0xf]
      %v4016 = vld [vmem:[%s20 + $0x5c] sm:$0xf]
      %v4017 = vld [vmem:[%s20 + $0x60] sm:$0xf]
      %v4018 = vld [vmem:[%s20 + $0x64] sm:$0xf]
      %v4019 = vld [vmem:[%s20 + $0x68] sm:$0xf]
      %v4020 = vld [vmem:[%s20 + $0x6c] sm:$0xf]
      %v4021 = vld [vmem:[%s20 + $0x70] sm:$0xf]
      %v4022 = vld [vmem:[%s20 + $0x74] sm:$0xf]
      %v4023 = vld [vmem:[%s20 + $0x78] sm:$0xf]
      %v4024 = vld [vmem:[%s20 + $0x7c] sm:$0xf]
      %v4057 = vunpack.c.l.b16 %v3993
      %v4058 = vunpack.c.l.b16 %v3994
      %v4059 = vunpack.c.l.b16 %v3995
      %v4060 = vunpack.c.l.b16 %v3996
      %v4061 = vunpack.c.l.b16 %v3997
      %v4062 = vunpack.c.l.b16 %v3998
      %v4063 = vunpack.c.l.b16 %v3999
      %v4064 = vunpack.c.l.b16 %v4000
      %v4065 = vunpack.c.l.b16 %v4001
      %v4066 = vunpack.c.l.b16 %v4002
      %v4067 = vunpack.c.l.b16 %v4003
      %v4068 = vunpack.c.l.b16 %v4004
      %v4069 = vunpack.c.l.b16 %v4005
      %v4070 = vunpack.c.l.b16 %v4006
      %v4071 = vunpack.c.l.b16 %v4007
      %v4072 = vunpack.c.l.b16 %v4008
      %v4073 = vunpack.c.l.b16 %v4009
      %v4074 = vunpack.c.l.b16 %v4010
      %v4075 = vunpack.c.l.b16 %v4011
      %v4076 = vunpack.c.l.b16 %v4012
      %v4077 = vunpack.c.l.b16 %v4013
      %v4078 = vunpack.c.l.b16 %v4014
      %v4079 = vunpack.c.l.b16 %v4015
      %v4080 = vunpack.c.l.b16 %v4016
      %v4081 = vunpack.c.l.b16 %v4017
      %v4082 = vunpack.c.l.b16 %v4018
      %v4083 = vunpack.c.l.b16 %v4019
      %v4084 = vunpack.c.l.b16 %v4020
      %v4085 = vunpack.c.l.b16 %v4021
      %v4086 = vunpack.c.l.b16 %v4022
      %v4087 = vunpack.c.l.b16 %v4023
      %v4088 = vunpack.c.l.b16 %v4024
      %v4089 = vpack.c.b16 %v4058, %v4057
      %v4090 = vpack.c.b16 %v4060, %v4059
      %v4091 = vpack.c.b16 %v4062, %v4061
      %v4092 = vpack.c.b16 %v4064, %v4063
      %v4093 = vpack.c.b16 %v4066, %v4065
      %v4094 = vpack.c.b16 %v4068, %v4067
      %v4095 = vpack.c.b16 %v4070, %v4069
      %v4096 = vpack.c.b16 %v4072, %v4071
      %v4097 = vpack.c.b16 %v4074, %v4073
      %v4098 = vpack.c.b16 %v4076, %v4075
      %v4099 = vpack.c.b16 %v4078, %v4077
      %v4100 = vpack.c.b16 %v4080, %v4079
      %v4101 = vpack.c.b16 %v4082, %v4081
      %v4102 = vpack.c.b16 %v4084, %v4083
      %v4103 = vpack.c.b16 %v4086, %v4085
      %v4104 = vpack.c.b16 %v4088, %v4087
      %v4106 = vsel %vm1898, %v4089, 0
      %v4109 = vsel %vm1898, %v4090, 0
      %v4112 = vsel %vm1898, %v4091, 0
      %v4115 = vsel %vm1898, %v4092, 0
      %v4118 = vsel %vm1898, %v4093, 0
      %v4121 = vsel %vm1898, %v4094, 0
      %v4124 = vsel %vm1898, %v4095, 0
      %v4127 = vsel %vm1898, %v4096, 0
      %v4130 = vsel %vm1898, %v4097, 0
      %v4133 = vsel %vm1898, %v4098, 0
      %v4136 = vsel %vm1898, %v4099, 0
      %v4139 = vsel %vm1898, %v4100, 0
      %v4142 = vsel %vm1898, %v4101, 0
      %v4145 = vsel %vm1898, %v4102, 0
      %v4148 = vsel %vm1898, %v4103, 0
      %v4151 = vsel %vm1898, %v4104, 0
      %4153 = vmatprep.subr.bf16.mxu0 0
      %4154 = vmatpush1.bf16.msra.mxu0 0
      %4155 = vmatprep.subr.bf16.mxu0 0
      %4156 = vmatpush1.bf16.msra.mxu0 0
      %4157 = vmatprep.subr.bf16.mxu0 0
      %4158 = vmatpush1.bf16.msra.mxu0 0
      %4159 = vmatprep.subr.bf16.mxu0 0
      %4160 = vmatpush1.bf16.msra.mxu0 0
      %4161 = vmatprep.subr.bf16.mxu0 0
      %4162 = vmatpush1.bf16.msra.mxu0 %v3992
      %4163 = vmatprep.subr.bf16.mxu0 0
      %4164 = vmatpush1.bf16.msra.mxu0 %v3991
      %4165 = vmatprep.subr.bf16.mxu0 0
      %4166 = vmatpush1.bf16.msra.mxu0 %v3990
      %4167 = vmatprep.subr.bf16.mxu0 0
      %4168 = vmatpush1.bf16.msra.mxu0 %v3989
      %4169 = vmatprep.subr.bf16.mxu0 0
      %4170 = vmatpush2.bf16.msra.mxu0 0
      %4171 = vmatprep.subr.bf16.mxu0 0
      %4172 = vmatpush2.bf16.msra.mxu0 0
      %4173 = vmatprep.subr.bf16.mxu0 0
      %4174 = vmatpush2.bf16.msra.mxu0 0
      %4175 = vmatprep.subr.bf16.mxu0 0
      %4176 = vmatpush2.bf16.msra.mxu0 0
      %4177 = vmatprep.subr.bf16.mxu0 0
      %4178 = vmatpush2.bf16.msra.mxu0 0
      %4179 = vmatprep.subr.bf16.mxu0 0
      %4180 = vmatpush2.bf16.msra.mxu0 0
      %4181 = vmatprep.subr.bf16.mxu0 0
      %4182 = vmatpush2.bf16.msra.mxu0 0
      %4183 = vmatprep.subr.bf16.mxu0 0
      %4184 = vmatpush2.bf16.msra.mxu0 0
      %4185 = vmatprep.mubr.bf16.mxu0 0
      %4186 = vmatmul.mubr.bf16.gmra.mxu0 %v4106
      %v4187 = vpop.f32.mrf.mxu0
      %v4188 = vadd.f32 0.0, %v4187
      %v4189 = vpop.f32.mrf.mxu0
      %v4190 = vpop.f32.mrf.mxu0
      %v4191 = vadd.f32 0.0, %v4190
      %v4192 = vpop.f32.mrf.mxu0
      %4193 = vmatprep.mubr.bf16.mxu0 0
      %4194 = vmatmul.mubr.bf16.gmra.mxu0 %v4109
      %v4195 = vpop.f32.mrf.mxu0
      %v4196 = vadd.f32 0.0, %v4195
      %v4197 = vpop.f32.mrf.mxu0
      %v4198 = vpop.f32.mrf.mxu0
      %v4199 = vadd.f32 0.0, %v4198
      %v4200 = vpop.f32.mrf.mxu0
      %4201 = vmatprep.mubr.bf16.mxu0 0
      %4202 = vmatmul.mubr.bf16.gmra.mxu0 %v4112
      %v4203 = vpop.f32.mrf.mxu0
      %v4204 = vadd.f32 0.0, %v4203
      %v4205 = vpop.f32.mrf.mxu0
      %v4206 = vpop.f32.mrf.mxu0
      %v4207 = vadd.f32 0.0, %v4206
      %v4208 = vpop.f32.mrf.mxu0
      %4209 = vmatprep.mubr.bf16.mxu0 0
      %4210 = vmatmul.mubr.bf16.gmra.mxu0 %v4115
      %v4211 = vpop.f32.mrf.mxu0
      %v4212 = vadd.f32 0.0, %v4211
      %v4213 = vpop.f32.mrf.mxu0
      %v4214 = vpop.f32.mrf.mxu0
      %v4215 = vadd.f32 0.0, %v4214
      %v4216 = vpop.f32.mrf.mxu0
      %4217 = vmatprep.mubr.bf16.mxu0 0
      %4218 = vmatmul.mubr.bf16.gmra.mxu0 %v4118
      %v4219 = vpop.f32.mrf.mxu0
      %v4220 = vadd.f32 0.0, %v4219
      %v4221 = vpop.f32.mrf.mxu0
      %v4222 = vpop.f32.mrf.mxu0
      %v4223 = vadd.f32 0.0, %v4222
      %v4224 = vpop.f32.mrf.mxu0
      %4225 = vmatprep.mubr.bf16.mxu0 0
      %4226 = vmatmul.mubr.bf16.gmra.mxu0 %v4121
      %v4227 = vpop.f32.mrf.mxu0
      %v4228 = vadd.f32 0.0, %v4227
      %v4229 = vpop.f32.mrf.mxu0
      %v4230 = vpop.f32.mrf.mxu0
      %v4231 = vadd.f32 0.0, %v4230
      %v4232 = vpop.f32.mrf.mxu0
      %4233 = vmatprep.mubr.bf16.mxu0 0
      %4234 = vmatmul.mubr.bf16.gmra.mxu0 %v4124
      %v4235 = vpop.f32.mrf.mxu0
      %v4236 = vadd.f32 0.0, %v4235
      %v4237 = vpop.f32.mrf.mxu0
      %v4238 = vpop.f32.mrf.mxu0
      %v4239 = vadd.f32 0.0, %v4238
      %v4240 = vpop.f32.mrf.mxu0
      %4241 = vmatprep.mubr.bf16.mxu0 0
      %4242 = vmatmul.mubr.bf16.gmra.mxu0 %v4127
      %v4243 = vpop.f32.mrf.mxu0
      %v4244 = vadd.f32 0.0, %v4243
      %v4245 = vpop.f32.mrf.mxu0
      %v4246 = vpop.f32.mrf.mxu0
      %v4247 = vadd.f32 0.0, %v4246
      %v4248 = vpop.f32.mrf.mxu0
      %4249 = vmatprep.mubr.bf16.mxu0 0
      %4250 = vmatmul.mubr.bf16.gmra.mxu0 %v4130
      %v4251 = vpop.f32.mrf.mxu0
      %v4252 = vadd.f32 0.0, %v4251
      %v4253 = vpop.f32.mrf.mxu0
      %v4254 = vpop.f32.mrf.mxu0
      %v4255 = vadd.f32 0.0, %v4254
      %v4256 = vpop.f32.mrf.mxu0
      %4257 = vmatprep.mubr.bf16.mxu0 0
      %4258 = vmatmul.mubr.bf16.gmra.mxu0 %v4133
      %v4259 = vpop.f32.mrf.mxu0
      %v4260 = vadd.f32 0.0, %v4259
      %v4261 = vpop.f32.mrf.mxu0
      %v4262 = vpop.f32.mrf.mxu0
      %v4263 = vadd.f32 0.0, %v4262
      %v4264 = vpop.f32.mrf.mxu0
      %4265 = vmatprep.mubr.bf16.mxu0 0
      %4266 = vmatmul.mubr.bf16.gmra.mxu0 %v4136
      %v4267 = vpop.f32.mrf.mxu0
      %v4268 = vadd.f32 0.0, %v4267
      %v4269 = vpop.f32.mrf.mxu0
      %v4270 = vpop.f32.mrf.mxu0
      %v4271 = vadd.f32 0.0, %v4270
      %v4272 = vpop.f32.mrf.mxu0
      %4273 = vmatprep.mubr.bf16.mxu0 0
      %4274 = vmatmul.mubr.bf16.gmra.mxu0 %v4139
      %v4275 = vpop.f32.mrf.mxu0
      %v4276 = vadd.f32 0.0, %v4275
      %v4277 = vpop.f32.mrf.mxu0
      %v4278 = vpop.f32.mrf.mxu0
      %v4279 = vadd.f32 0.0, %v4278
      %v4280 = vpop.f32.mrf.mxu0
      %4281 = vmatprep.mubr.bf16.mxu0 0
      %4282 = vmatmul.mubr.bf16.gmra.mxu0 %v4142
      %v4283 = vpop.f32.mrf.mxu0
      %v4284 = vadd.f32 0.0, %v4283
      %v4285 = vpop.f32.mrf.mxu0
      %v4286 = vpop.f32.mrf.mxu0
      %v4287 = vadd.f32 0.0, %v4286
      %v4288 = vpop.f32.mrf.mxu0
      %4289 = vmatprep.mubr.bf16.mxu0 0
      %4290 = vmatmul.mubr.bf16.gmra.mxu0 %v4145
      %v4291 = vpop.f32.mrf.mxu0
      %v4292 = vadd.f32 0.0, %v4291
      %v4293 = vpop.f32.mrf.mxu0
      %v4294 = vpop.f32.mrf.mxu0
      %v4295 = vadd.f32 0.0, %v4294
      %v4296 = vpop.f32.mrf.mxu0
      %4297 = vmatprep.mubr.bf16.mxu0 0
      %4298 = vmatmul.mubr.bf16.gmra.mxu0 %v4148
      %v4299 = vpop.f32.mrf.mxu0
      %v4300 = vadd.f32 0.0, %v4299
      %v4301 = vpop.f32.mrf.mxu0
      %v4302 = vpop.f32.mrf.mxu0
      %v4303 = vadd.f32 0.0, %v4302
      %v4304 = vpop.f32.mrf.mxu0
      %4305 = vmatprep.mubr.bf16.mxu0 0
      %4306 = vmatmul.mubr.bf16.gmra.mxu0 %v4151
      %v4307 = vpop.f32.mrf.mxu0
      %v4308 = vadd.f32 0.0, %v4307
      %v4309 = vpop.f32.mrf.mxu0
      %v4310 = vpop.f32.mrf.mxu0
      %v4311 = vadd.f32 0.0, %v4310
      %v4312 = vpop.f32.mrf.mxu0
      %4313 = vdwg.mxu0
      %v4318 = vunpack.c.l.b16 %v3888
      %v4319 = vunpack.c.l.b16 %v3889
      %v4320 = vunpack.c.l.b16 %v3890
      %v4321 = vunpack.c.l.b16 %v3891
      %v4322 = vpack.c.b16 %v4319, %v4318
      %v4323 = vpack.c.b16 %v4321, %v4320
      %4326 = vmatprep.subr.bf16.mxu0 0
      %4327 = vmatpush1.bf16.msra.mxu0 0
      %4328 = vmatprep.subr.bf16.mxu0 0
      %4329 = vmatpush1.bf16.msra.mxu0 0
      %4330 = vmatprep.subr.bf16.mxu0 0
      %4331 = vmatpush1.bf16.msra.mxu0 0
      %4332 = vmatprep.subr.bf16.mxu0 0
      %4333 = vmatpush1.bf16.msra.mxu0 0
      %4334 = vmatprep.subr.bf16.mxu0 0
      %4335 = vmatpush1.bf16.msra.mxu0 0
      %4336 = vmatprep.subr.bf16.mxu0 0
      %4337 = vmatpush1.bf16.msra.mxu0 0
      %4338 = vmatprep.subr.bf16.mxu0 0
      %4339 = vmatpush1.bf16.msra.mxu0 %v4323
      %4340 = vmatprep.subr.bf16.mxu0 0
      %4341 = vmatpush1.bf16.msra.mxu0 %v4322
      %4342 = vmatprep.subr.bf16.mxu0 0
      %4343 = vmatpush2.bf16.msra.mxu0 0
      %4344 = vmatprep.subr.bf16.mxu0 0
      %4345 = vmatpush2.bf16.msra.mxu0 0
      %4346 = vmatprep.subr.bf16.mxu0 0
      %4347 = vmatpush2.bf16.msra.mxu0 0
      %4348 = vmatprep.subr.bf16.mxu0 0
      %4349 = vmatpush2.bf16.msra.mxu0 0
      %4350 = vmatprep.subr.bf16.mxu0 0
      %4351 = vmatpush2.bf16.msra.mxu0 0
      %4352 = vmatprep.subr.bf16.mxu0 0
      %4353 = vmatpush2.bf16.msra.mxu0 0
      %4354 = vmatprep.subr.bf16.mxu0 0
      %4355 = vmatpush2.bf16.msra.mxu0 0
      %4356 = vmatprep.subr.bf16.mxu0 0
      %4357 = vmatpush2.bf16.msra.mxu0 0
      %4358 = vmatprep.mubr.bf16.mxu0 0
      %4359 = vmatmul.mubr.bf16.gmra.mxu0 %v1483
      %v4360 = vpop.f32.mrf.mxu0
      %v4361 = vadd.f32 %v4188, %v4360
      %v4362 = vpop.f32.mrf.mxu0
      %v4363 = vpop.f32.mrf.mxu0
      %v4364 = vadd.f32 %v4191, %v4363
      %v4365 = vpop.f32.mrf.mxu0
      %4366 = vmatprep.mubr.bf16.mxu0 0
      %4367 = vmatmul.mubr.bf16.gmra.mxu0 %v1486
      %v4368 = vpop.f32.mrf.mxu0
      %v4369 = vadd.f32 %v4196, %v4368
      %v4370 = vpop.f32.mrf.mxu0
      %v4371 = vpop.f32.mrf.mxu0
      %v4372 = vadd.f32 %v4199, %v4371
      %v4373 = vpop.f32.mrf.mxu0
      %4374 = vmatprep.mubr.bf16.mxu0 0
      %4375 = vmatmul.mubr.bf16.gmra.mxu0 %v1489
      %v4376 = vpop.f32.mrf.mxu0
      %v4377 = vadd.f32 %v4204, %v4376
      %v4378 = vpop.f32.mrf.mxu0
      %v4379 = vpop.f32.mrf.mxu0
      %v4380 = vadd.f32 %v4207, %v4379
      %v4381 = vpop.f32.mrf.mxu0
      %4382 = vmatprep.mubr.bf16.mxu0 0
      %4383 = vmatmul.mubr.bf16.gmra.mxu0 %v1492
      %v4384 = vpop.f32.mrf.mxu0
      %v4385 = vadd.f32 %v4212, %v4384
      %v4386 = vpop.f32.mrf.mxu0
      %v4387 = vpop.f32.mrf.mxu0
      %v4388 = vadd.f32 %v4215, %v4387
      %v4389 = vpop.f32.mrf.mxu0
      %4390 = vmatprep.mubr.bf16.mxu0 0
      %4391 = vmatmul.mubr.bf16.gmra.mxu0 %v1394
      %v4392 = vpop.f32.mrf.mxu0
      %v4393 = vadd.f32 %v4220, %v4392
      %v4394 = vpop.f32.mrf.mxu0
      %v4395 = vpop.f32.mrf.mxu0
      %v4396 = vadd.f32 %v4223, %v4395
      %v4397 = vpop.f32.mrf.mxu0
      %4398 = vmatprep.mubr.bf16.mxu0 0
      %4399 = vmatmul.mubr.bf16.gmra.mxu0 %v1397
      %v4400 = vpop.f32.mrf.mxu0
      %v4401 = vadd.f32 %v4228, %v4400
      %v4402 = vpop.f32.mrf.mxu0
      %v4403 = vpop.f32.mrf.mxu0
      %v4404 = vadd.f32 %v4231, %v4403
      %v4405 = vpop.f32.mrf.mxu0
      %4406 = vmatprep.mubr.bf16.mxu0 0
      %4407 = vmatmul.mubr.bf16.gmra.mxu0 %v1400
      %v4408 = vpop.f32.mrf.mxu0
      %v4409 = vadd.f32 %v4236, %v4408
      %v4410 = vpop.f32.mrf.mxu0
      %v4411 = vpop.f32.mrf.mxu0
      %v4412 = vadd.f32 %v4239, %v4411
      %v4413 = vpop.f32.mrf.mxu0
      %4414 = vmatprep.mubr.bf16.mxu0 0
      %4415 = vmatmul.mubr.bf16.gmra.mxu0 %v1403
      %v4416 = vpop.f32.mrf.mxu0
      %v4417 = vadd.f32 %v4244, %v4416
      %v4418 = vpop.f32.mrf.mxu0
      %v4419 = vpop.f32.mrf.mxu0
      %v4420 = vadd.f32 %v4247, %v4419
      %v4421 = vpop.f32.mrf.mxu0
      %4422 = vmatprep.mubr.bf16.mxu0 0
      %4423 = vmatmul.mubr.bf16.gmra.mxu0 %v1580
      %v4424 = vpop.f32.mrf.mxu0
      %v4425 = vadd.f32 %v4252, %v4424
      %v4426 = vpop.f32.mrf.mxu0
      %v4427 = vpop.f32.mrf.mxu0
      %v4428 = vadd.f32 %v4255, %v4427
      %v4429 = vpop.f32.mrf.mxu0
      %4430 = vmatprep.mubr.bf16.mxu0 0
      %4431 = vmatmul.mubr.bf16.gmra.mxu0 %v1583
      %v4432 = vpop.f32.mrf.mxu0
      %v4433 = vadd.f32 %v4260, %v4432
      %v4434 = vpop.f32.mrf.mxu0
      %v4435 = vpop.f32.mrf.mxu0
      %v4436 = vadd.f32 %v4263, %v4435
      %v4437 = vpop.f32.mrf.mxu0
      %4438 = vmatprep.mubr.bf16.mxu0 0
      %4439 = vmatmul.mubr.bf16.gmra.mxu0 %v1586
      %v4440 = vpop.f32.mrf.mxu0
      %v4441 = vadd.f32 %v4268, %v4440
      %v4442 = vpop.f32.mrf.mxu0
      %v4443 = vpop.f32.mrf.mxu0
      %v4444 = vadd.f32 %v4271, %v4443
      %v4445 = vpop.f32.mrf.mxu0
      %4446 = vmatprep.mubr.bf16.mxu0 0
      %4447 = vmatmul.mubr.bf16.gmra.mxu0 %v1589
      %v4448 = vpop.f32.mrf.mxu0
      %v4449 = vadd.f32 %v4276, %v4448
      %v4450 = vpop.f32.mrf.mxu0
      %v4451 = vpop.f32.mrf.mxu0
      %v4452 = vadd.f32 %v4279, %v4451
      %v4453 = vpop.f32.mrf.mxu0
      %4454 = vmatprep.mubr.bf16.mxu0 0
      %4455 = vmatmul.mubr.bf16.gmra.mxu0 %v1685
      %v4456 = vpop.f32.mrf.mxu0
      %v4457 = vadd.f32 %v4284, %v4456
      %v4458 = vpop.f32.mrf.mxu0
      %v4459 = vpop.f32.mrf.mxu0
      %v4460 = vadd.f32 %v4287, %v4459
      %v4461 = vpop.f32.mrf.mxu0
      %4462 = vmatprep.mubr.bf16.mxu0 0
      %4463 = vmatmul.mubr.bf16.gmra.mxu0 %v1688
      %v4464 = vpop.f32.mrf.mxu0
      %v4465 = vadd.f32 %v4292, %v4464
      %v4466 = vpop.f32.mrf.mxu0
      %v4467 = vpop.f32.mrf.mxu0
      %v4468 = vadd.f32 %v4295, %v4467
      %v4469 = vpop.f32.mrf.mxu0
      %4470 = vmatprep.mubr.bf16.mxu0 0
      %4471 = vmatmul.mubr.bf16.gmra.mxu0 %v1691
      %v4472 = vpop.f32.mrf.mxu0
      %v4473 = vadd.f32 %v4300, %v4472
      %v4474 = vpop.f32.mrf.mxu0
      %v4475 = vpop.f32.mrf.mxu0
      %v4476 = vadd.f32 %v4303, %v4475
      %v4477 = vpop.f32.mrf.mxu0
      %4478 = vmatprep.mubr.bf16.mxu0 0
      %4479 = vmatmul.mubr.bf16.gmra.mxu0 %v1694
      %v4480 = vpop.f32.mrf.mxu0
      %v4481 = vadd.f32 %v4308, %v4480
      %v4482 = vpop.f32.mrf.mxu0
      %v4483 = vpop.f32.mrf.mxu0
      %v4484 = vadd.f32 %v4311, %v4483
      %v4485 = vpop.f32.mrf.mxu0
      %4486 = vdwg.mxu0
      %v4487 = vld [vmem:[%s15] sm:$0xf]
      %v4488 = vld [vmem:[%s15 + $0x4] sm:$0xf]
      %v4489 = vld [vmem:[%s15 + $0x8] sm:$0xf]
      %v4490 = vld [vmem:[%s15 + $0xc] sm:$0xf]
      %v4491 = vld [vmem:[%s15 + $0x10] sm:$0xf]
      %v4492 = vld [vmem:[%s15 + $0x14] sm:$0xf]
      %v4493 = vld [vmem:[%s15 + $0x18] sm:$0xf]
      %v4494 = vld [vmem:[%s15 + $0x1c] sm:$0xf]
      %v4495 = vld [vmem:[%s15 + $0x20] sm:$0xf]
      %v4496 = vld [vmem:[%s15 + $0x24] sm:$0xf]
      %v4497 = vld [vmem:[%s15 + $0x28] sm:$0xf]
      %v4498 = vld [vmem:[%s15 + $0x2c] sm:$0xf]
      %v4499 = vld [vmem:[%s15 + $0x30] sm:$0xf]
      %v4500 = vld [vmem:[%s15 + $0x34] sm:$0xf]
      %v4501 = vld [vmem:[%s15 + $0x38] sm:$0xf]
      %v4502 = vld [vmem:[%s15 + $0x3c] sm:$0xf]
      %v4519 = vunpack.c.l.b16 %v4487
      %v4520 = vunpack.c.l.b16 %v4488
      %v4521 = vunpack.c.l.b16 %v4489
      %v4522 = vunpack.c.l.b16 %v4490
      %v4523 = vunpack.c.l.b16 %v4491
      %v4524 = vunpack.c.l.b16 %v4492
      %v4525 = vunpack.c.l.b16 %v4493
      %v4526 = vunpack.c.l.b16 %v4494
      %v4527 = vunpack.c.l.b16 %v4495
      %v4528 = vunpack.c.l.b16 %v4496
      %v4529 = vunpack.c.l.b16 %v4497
      %v4530 = vunpack.c.l.b16 %v4498
      %v4531 = vunpack.c.l.b16 %v4499
      %v4532 = vunpack.c.l.b16 %v4500
      %v4533 = vunpack.c.l.b16 %v4501
      %v4534 = vunpack.c.l.b16 %v4502
      %v4535 = vpack.c.b16 %v4520, %v4519
      %v4536 = vpack.c.b16 %v4522, %v4521
      %v4537 = vpack.c.b16 %v4524, %v4523
      %v4538 = vpack.c.b16 %v4526, %v4525
      %v4539 = vpack.c.b16 %v4528, %v4527
      %v4540 = vpack.c.b16 %v4530, %v4529
      %v4541 = vpack.c.b16 %v4532, %v4531
      %v4542 = vpack.c.b16 %v4534, %v4533
      %4551 = vmatprep.subr.bf16.mxu0 0
      %4552 = vmatpush1.bf16.msra.mxu0 %v4542
      %4553 = vmatprep.subr.bf16.mxu0 0
      %4554 = vmatpush1.bf16.msra.mxu0 %v4541
      %4555 = vmatprep.subr.bf16.mxu0 0
      %4556 = vmatpush1.bf16.msra.mxu0 %v4540
      %4557 = vmatprep.subr.bf16.mxu0 0
      %4558 = vmatpush1.bf16.msra.mxu0 %v4539
      %4559 = vmatprep.subr.bf16.mxu0 0
      %4560 = vmatpush1.bf16.msra.mxu0 %v4538
      %4561 = vmatprep.subr.bf16.mxu0 0
      %4562 = vmatpush1.bf16.msra.mxu0 %v4537
      %4563 = vmatprep.subr.bf16.mxu0 0
      %4564 = vmatpush1.bf16.msra.mxu0 %v4536
      %4565 = vmatprep.subr.bf16.mxu0 0
      %4566 = vmatpush1.bf16.msra.mxu0 %v4535
      %4567 = vmatprep.subr.bf16.mxu0 0
      %4568 = vmatpush2.bf16.msra.mxu0 0
      %4569 = vmatprep.subr.bf16.mxu0 0
      %4570 = vmatpush2.bf16.msra.mxu0 0
      %4571 = vmatprep.subr.bf16.mxu0 0
      %4572 = vmatpush2.bf16.msra.mxu0 0
      %4573 = vmatprep.subr.bf16.mxu0 0
      %4574 = vmatpush2.bf16.msra.mxu0 0
      %4575 = vmatprep.subr.bf16.mxu0 0
      %4576 = vmatpush2.bf16.msra.mxu0 0
      %4577 = vmatprep.subr.bf16.mxu0 0
      %4578 = vmatpush2.bf16.msra.mxu0 0
      %4579 = vmatprep.subr.bf16.mxu0 0
      %4580 = vmatpush2.bf16.msra.mxu0 0
      %4581 = vmatprep.subr.bf16.mxu0 0
      %4582 = vmatpush2.bf16.msra.mxu0 0
      %4583 = vmatprep.mubr.bf16.mxu0 0
      %4584 = vmatmul.mubr.bf16.gmra.mxu0 %v2791
      %v4585 = vpop.f32.mrf.mxu0
      %v4586 = vadd.f32 0.0, %v4585
      %v4587 = vpop.f32.mrf.mxu0
      %v4588 = vpop.f32.mrf.mxu0
      %v4589 = vadd.f32 0.0, %v4588
      %v4590 = vpop.f32.mrf.mxu0
      %4591 = vdwg.mxu0
      %v4592 = vpack.c.bf16 %v4589, %v4586
      %v4593 = vld [vmem:[%s21] sm:$0xf]
      %v4594 = vld [vmem:[%s21 + $0x4] sm:$0xf]
      %v4595 = vld [vmem:[%s21 + $0x8] sm:$0xf]
      %v4596 = vld [vmem:[%s21 + $0xc] sm:$0xf]
      %v4597 = vld [vmem:[%s21 + $0x10] sm:$0xf]
      %v4598 = vld [vmem:[%s21 + $0x14] sm:$0xf]
      %v4599 = vld [vmem:[%s21 + $0x18] sm:$0xf]
      %v4600 = vld [vmem:[%s21 + $0x1c] sm:$0xf]
      %v4601 = vld [vmem:[%s21 + $0x20] sm:$0xf]
      %v4602 = vld [vmem:[%s21 + $0x24] sm:$0xf]
      %v4603 = vld [vmem:[%s21 + $0x28] sm:$0xf]
      %v4604 = vld [vmem:[%s21 + $0x2c] sm:$0xf]
      %v4605 = vld [vmem:[%s21 + $0x30] sm:$0xf]
      %v4606 = vld [vmem:[%s21 + $0x34] sm:$0xf]
      %v4607 = vld [vmem:[%s21 + $0x38] sm:$0xf]
      %v4608 = vld [vmem:[%s21 + $0x3c] sm:$0xf]
      %v4609 = vld [vmem:[%s21 + $0x40] sm:$0xf]
      %v4610 = vld [vmem:[%s21 + $0x44] sm:$0xf]
      %v4611 = vld [vmem:[%s21 + $0x48] sm:$0xf]
      %v4612 = vld [vmem:[%s21 + $0x4c] sm:$0xf]
      %v4613 = vld [vmem:[%s21 + $0x50] sm:$0xf]
      %v4614 = vld [vmem:[%s21 + $0x54] sm:$0xf]
      %v4615 = vld [vmem:[%s21 + $0x58] sm:$0xf]
      %v4616 = vld [vmem:[%s21 + $0x5c] sm:$0xf]
      %v4617 = vld [vmem:[%s21 + $0x60] sm:$0xf]
      %v4618 = vld [vmem:[%s21 + $0x64] sm:$0xf]
      %v4619 = vld [vmem:[%s21 + $0x68] sm:$0xf]
      %v4620 = vld [vmem:[%s21 + $0x6c] sm:$0xf]
      %v4621 = vld [vmem:[%s21 + $0x70] sm:$0xf]
      %v4622 = vld [vmem:[%s21 + $0x74] sm:$0xf]
      %v4623 = vld [vmem:[%s21 + $0x78] sm:$0xf]
      %v4624 = vld [vmem:[%s21 + $0x7c] sm:$0xf]
      %v4657 = vunpack.c.l.b16 %v4593
      %v4658 = vunpack.c.l.b16 %v4594
      %v4659 = vunpack.c.l.b16 %v4595
      %v4660 = vunpack.c.l.b16 %v4596
      %v4661 = vunpack.c.l.b16 %v4597
      %v4662 = vunpack.c.l.b16 %v4598
      %v4663 = vunpack.c.l.b16 %v4599
      %v4664 = vunpack.c.l.b16 %v4600
      %v4665 = vunpack.c.l.b16 %v4601
      %v4666 = vunpack.c.l.b16 %v4602
      %v4667 = vunpack.c.l.b16 %v4603
      %v4668 = vunpack.c.l.b16 %v4604
      %v4669 = vunpack.c.l.b16 %v4605
      %v4670 = vunpack.c.l.b16 %v4606
      %v4671 = vunpack.c.l.b16 %v4607
      %v4672 = vunpack.c.l.b16 %v4608
      %v4673 = vunpack.c.l.b16 %v4609
      %v4674 = vunpack.c.l.b16 %v4610
      %v4675 = vunpack.c.l.b16 %v4611
      %v4676 = vunpack.c.l.b16 %v4612
      %v4677 = vunpack.c.l.b16 %v4613
      %v4678 = vunpack.c.l.b16 %v4614
      %v4679 = vunpack.c.l.b16 %v4615
      %v4680 = vunpack.c.l.b16 %v4616
      %v4681 = vunpack.c.l.b16 %v4617
      %v4682 = vunpack.c.l.b16 %v4618
      %v4683 = vunpack.c.l.b16 %v4619
      %v4684 = vunpack.c.l.b16 %v4620
      %v4685 = vunpack.c.l.b16 %v4621
      %v4686 = vunpack.c.l.b16 %v4622
      %v4687 = vunpack.c.l.b16 %v4623
      %v4688 = vunpack.c.l.b16 %v4624
      %v4689 = vpack.c.b16 %v4658, %v4657
      %v4690 = vpack.c.b16 %v4660, %v4659
      %v4691 = vpack.c.b16 %v4662, %v4661
      %v4692 = vpack.c.b16 %v4664, %v4663
      %v4693 = vpack.c.b16 %v4666, %v4665
      %v4694 = vpack.c.b16 %v4668, %v4667
      %v4695 = vpack.c.b16 %v4670, %v4669
      %v4696 = vpack.c.b16 %v4672, %v4671
      %v4697 = vpack.c.b16 %v4674, %v4673
      %v4698 = vpack.c.b16 %v4676, %v4675
      %v4699 = vpack.c.b16 %v4678, %v4677
      %v4700 = vpack.c.b16 %v4680, %v4679
      %v4701 = vpack.c.b16 %v4682, %v4681
      %v4702 = vpack.c.b16 %v4684, %v4683
      %v4703 = vpack.c.b16 %v4686, %v4685
      %v4704 = vpack.c.b16 %v4688, %v4687
      %v4706 = vsel %vm866, %v4689, 0
      %v4709 = vsel %vm866, %v4690, 0
      %v4712 = vsel %vm866, %v4691, 0
      %v4715 = vsel %vm866, %v4692, 0
      %v4718 = vsel %vm866, %v4693, 0
      %v4721 = vsel %vm866, %v4694, 0
      %v4724 = vsel %vm866, %v4695, 0
      %v4727 = vsel %vm866, %v4696, 0
      %v4730 = vsel %vm866, %v4697, 0
      %v4733 = vsel %vm866, %v4698, 0
      %v4736 = vsel %vm866, %v4699, 0
      %v4739 = vsel %vm866, %v4700, 0
      %v4742 = vsel %vm866, %v4701, 0
      %v4745 = vsel %vm866, %v4702, 0
      %v4748 = vsel %vm866, %v4703, 0
      %v4751 = vsel %vm866, %v4704, 0
      %4753 = vmatprep.subr.bf16.mxu0 0
      %4754 = vmatpush1.bf16.msra.mxu0 0
      %4755 = vmatprep.subr.bf16.mxu0 0
      %4756 = vmatpush1.bf16.msra.mxu0 0
      %4757 = vmatprep.subr.bf16.mxu0 0
      %4758 = vmatpush1.bf16.msra.mxu0 0
      %4759 = vmatprep.subr.bf16.mxu0 0
      %4760 = vmatpush1.bf16.msra.mxu0 0
      %4761 = vmatprep.subr.bf16.mxu0 0
      %4762 = vmatpush1.bf16.msra.mxu0 0
      %4763 = vmatprep.subr.bf16.mxu0 0
      %4764 = vmatpush1.bf16.msra.mxu0 0
      %4765 = vmatprep.subr.bf16.mxu0 0
      %4766 = vmatpush1.bf16.msra.mxu0 0
      %4767 = vmatprep.subr.bf16.mxu0 0
      %4768 = vmatpush1.bf16.msra.mxu0 %v4592
      %4769 = vmatprep.subr.bf16.mxu0 0
      %4770 = vmatpush2.bf16.msra.mxu0 0
      %4771 = vmatprep.subr.bf16.mxu0 0
      %4772 = vmatpush2.bf16.msra.mxu0 0
      %4773 = vmatprep.subr.bf16.mxu0 0
      %4774 = vmatpush2.bf16.msra.mxu0 0
      %4775 = vmatprep.subr.bf16.mxu0 0
      %4776 = vmatpush2.bf16.msra.mxu0 0
      %4777 = vmatprep.subr.bf16.mxu0 0
      %4778 = vmatpush2.bf16.msra.mxu0 0
      %4779 = vmatprep.subr.bf16.mxu0 0
      %4780 = vmatpush2.bf16.msra.mxu0 0
      %4781 = vmatprep.subr.bf16.mxu0 0
      %4782 = vmatpush2.bf16.msra.mxu0 0
      %4783 = vmatprep.subr.bf16.mxu0 0
      %4784 = vmatpush2.bf16.msra.mxu0 0
      %4785 = vmatprep.mubr.bf16.mxu0 0
      %4786 = vmatmul.mubr.bf16.gmra.mxu0 %v4706
      %v4787 = vpop.f32.mrf.mxu0
      %v4788 = vadd.f32 0.0, %v4787
      %v4789 = vpop.f32.mrf.mxu0
      %v4790 = vpop.f32.mrf.mxu0
      %v4791 = vadd.f32 0.0, %v4790
      %v4792 = vpop.f32.mrf.mxu0
      %4793 = vmatprep.mubr.bf16.mxu0 0
      %4794 = vmatmul.mubr.bf16.gmra.mxu0 %v4709
      %v4795 = vpop.f32.mrf.mxu0
      %v4796 = vadd.f32 0.0, %v4795
      %v4797 = vpop.f32.mrf.mxu0
      %v4798 = vpop.f32.mrf.mxu0
      %v4799 = vadd.f32 0.0, %v4798
      %v4800 = vpop.f32.mrf.mxu0
      %4801 = vmatprep.mubr.bf16.mxu0 0
      %4802 = vmatmul.mubr.bf16.gmra.mxu0 %v4712
      %v4803 = vpop.f32.mrf.mxu0
      %v4804 = vadd.f32 0.0, %v4803
      %v4805 = vpop.f32.mrf.mxu0
      %v4806 = vpop.f32.mrf.mxu0
      %v4807 = vadd.f32 0.0, %v4806
      %v4808 = vpop.f32.mrf.mxu0
      %4809 = vmatprep.mubr.bf16.mxu0 0
      %4810 = vmatmul.mubr.bf16.gmra.mxu0 %v4715
      %v4811 = vpop.f32.mrf.mxu0
      %v4812 = vadd.f32 0.0, %v4811
      %v4813 = vpop.f32.mrf.mxu0
      %v4814 = vpop.f32.mrf.mxu0
      %v4815 = vadd.f32 0.0, %v4814
      %v4816 = vpop.f32.mrf.mxu0
      %4817 = vmatprep.mubr.bf16.mxu0 0
      %4818 = vmatmul.mubr.bf16.gmra.mxu0 %v4718
      %v4819 = vpop.f32.mrf.mxu0
      %v4820 = vadd.f32 0.0, %v4819
      %v4821 = vpop.f32.mrf.mxu0
      %v4822 = vpop.f32.mrf.mxu0
      %v4823 = vadd.f32 0.0, %v4822
      %v4824 = vpop.f32.mrf.mxu0
      %4825 = vmatprep.mubr.bf16.mxu0 0
      %4826 = vmatmul.mubr.bf16.gmra.mxu0 %v4721
      %v4827 = vpop.f32.mrf.mxu0
      %v4828 = vadd.f32 0.0, %v4827
      %v4829 = vpop.f32.mrf.mxu0
      %v4830 = vpop.f32.mrf.mxu0
      %v4831 = vadd.f32 0.0, %v4830
      %v4832 = vpop.f32.mrf.mxu0
      %4833 = vmatprep.mubr.bf16.mxu0 0
      %4834 = vmatmul.mubr.bf16.gmra.mxu0 %v4724
      %v4835 = vpop.f32.mrf.mxu0
      %v4836 = vadd.f32 0.0, %v4835
      %v4837 = vpop.f32.mrf.mxu0
      %v4838 = vpop.f32.mrf.mxu0
      %v4839 = vadd.f32 0.0, %v4838
      %v4840 = vpop.f32.mrf.mxu0
      %4841 = vmatprep.mubr.bf16.mxu0 0
      %4842 = vmatmul.mubr.bf16.gmra.mxu0 %v4727
      %v4843 = vpop.f32.mrf.mxu0
      %v4844 = vadd.f32 0.0, %v4843
      %v4845 = vpop.f32.mrf.mxu0
      %v4846 = vpop.f32.mrf.mxu0
      %v4847 = vadd.f32 0.0, %v4846
      %v4848 = vpop.f32.mrf.mxu0
      %4849 = vmatprep.mubr.bf16.mxu0 0
      %4850 = vmatmul.mubr.bf16.gmra.mxu0 %v4730
      %v4851 = vpop.f32.mrf.mxu0
      %v4852 = vadd.f32 0.0, %v4851
      %v4853 = vpop.f32.mrf.mxu0
      %v4854 = vpop.f32.mrf.mxu0
      %v4855 = vadd.f32 0.0, %v4854
      %v4856 = vpop.f32.mrf.mxu0
      %4857 = vmatprep.mubr.bf16.mxu0 0
      %4858 = vmatmul.mubr.bf16.gmra.mxu0 %v4733
      %v4859 = vpop.f32.mrf.mxu0
      %v4860 = vadd.f32 0.0, %v4859
      %v4861 = vpop.f32.mrf.mxu0
      %v4862 = vpop.f32.mrf.mxu0
      %v4863 = vadd.f32 0.0, %v4862
      %v4864 = vpop.f32.mrf.mxu0
      %4865 = vmatprep.mubr.bf16.mxu0 0
      %4866 = vmatmul.mubr.bf16.gmra.mxu0 %v4736
      %v4867 = vpop.f32.mrf.mxu0
      %v4868 = vadd.f32 0.0, %v4867
      %v4869 = vpop.f32.mrf.mxu0
      %v4870 = vpop.f32.mrf.mxu0
      %v4871 = vadd.f32 0.0, %v4870
      %v4872 = vpop.f32.mrf.mxu0
      %4873 = vmatprep.mubr.bf16.mxu0 0
      %4874 = vmatmul.mubr.bf16.gmra.mxu0 %v4739
      %v4875 = vpop.f32.mrf.mxu0
      %v4876 = vadd.f32 0.0, %v4875
      %v4877 = vpop.f32.mrf.mxu0
      %v4878 = vpop.f32.mrf.mxu0
      %v4879 = vadd.f32 0.0, %v4878
      %v4880 = vpop.f32.mrf.mxu0
      %4881 = vmatprep.mubr.bf16.mxu0 0
      %4882 = vmatmul.mubr.bf16.gmra.mxu0 %v4742
      %v4883 = vpop.f32.mrf.mxu0
      %v4884 = vadd.f32 0.0, %v4883
      %v4885 = vpop.f32.mrf.mxu0
      %v4886 = vpop.f32.mrf.mxu0
      %v4887 = vadd.f32 0.0, %v4886
      %v4888 = vpop.f32.mrf.mxu0
      %4889 = vmatprep.mubr.bf16.mxu0 0
      %4890 = vmatmul.mubr.bf16.gmra.mxu0 %v4745
      %v4891 = vpop.f32.mrf.mxu0
      %v4892 = vadd.f32 0.0, %v4891
      %v4893 = vpop.f32.mrf.mxu0
      %v4894 = vpop.f32.mrf.mxu0
      %v4895 = vadd.f32 0.0, %v4894
      %v4896 = vpop.f32.mrf.mxu0
      %4897 = vmatprep.mubr.bf16.mxu0 0
      %4898 = vmatmul.mubr.bf16.gmra.mxu0 %v4748
      %v4899 = vpop.f32.mrf.mxu0
      %v4900 = vadd.f32 0.0, %v4899
      %v4901 = vpop.f32.mrf.mxu0
      %v4902 = vpop.f32.mrf.mxu0
      %v4903 = vadd.f32 0.0, %v4902
      %v4904 = vpop.f32.mrf.mxu0
      %4905 = vmatprep.mubr.bf16.mxu0 0
      %4906 = vmatmul.mubr.bf16.gmra.mxu0 %v4751
      %v4907 = vpop.f32.mrf.mxu0
      %v4908 = vadd.f32 0.0, %v4907
      %v4909 = vpop.f32.mrf.mxu0
      %v4910 = vpop.f32.mrf.mxu0
      %v4911 = vadd.f32 0.0, %v4910
      %v4912 = vpop.f32.mrf.mxu0
      %4913 = vdwg.mxu0
      %v4914 = vadd.f32 %v4361, %v4788
      %v4915 = vadd.f32 %v4364, %v4791
      %v4916 = vadd.f32 %v4369, %v4796
      %v4917 = vadd.f32 %v4372, %v4799
      %v4918 = vadd.f32 %v4377, %v4804
      %v4919 = vadd.f32 %v4380, %v4807
      %v4920 = vadd.f32 %v4385, %v4812
      %v4921 = vadd.f32 %v4388, %v4815
      %v4922 = vadd.f32 %v4393, %v4820
      %v4923 = vadd.f32 %v4396, %v4823
      %v4924 = vadd.f32 %v4401, %v4828
      %v4925 = vadd.f32 %v4404, %v4831
      %v4926 = vadd.f32 %v4409, %v4836
      %v4927 = vadd.f32 %v4412, %v4839
      %v4928 = vadd.f32 %v4417, %v4844
      %v4929 = vadd.f32 %v4420, %v4847
      %v4930 = vadd.f32 %v4425, %v4852
      %v4931 = vadd.f32 %v4428, %v4855
      %v4932 = vadd.f32 %v4433, %v4860
      %v4933 = vadd.f32 %v4436, %v4863
      %v4934 = vadd.f32 %v4441, %v4868
      %v4935 = vadd.f32 %v4444, %v4871
      %v4936 = vadd.f32 %v4449, %v4876
      %v4937 = vadd.f32 %v4452, %v4879
      %v4938 = vadd.f32 %v4457, %v4884
      %v4939 = vadd.f32 %v4460, %v4887
      %v4940 = vadd.f32 %v4465, %v4892
      %v4941 = vadd.f32 %v4468, %v4895
      %v4942 = vadd.f32 %v4473, %v4900
      %v4943 = vadd.f32 %v4476, %v4903
      %v4944 = vadd.f32 %v4481, %v4908
      %v4945 = vadd.f32 %v4484, %v4911
      %v4946 = vld [vmem:[%s16] sm:$0xf]
      %v4947 = vld [vmem:[%s16 + $0x4] sm:$0xf]
      %v4948 = vld [vmem:[%s16 + $0x8] sm:$0xf]
      %v4949 = vld [vmem:[%s16 + $0xc] sm:$0xf]
      %v4950 = vld [vmem:[%s16 + $0x10] sm:$0xf]
      %v4951 = vld [vmem:[%s16 + $0x14] sm:$0xf]
      %v4952 = vld [vmem:[%s16 + $0x18] sm:$0xf]
      %v4953 = vld [vmem:[%s16 + $0x1c] sm:$0xf]
      %v4954 = vld [vmem:[%s16 + $0x20] sm:$0xf]
      %v4955 = vld [vmem:[%s16 + $0x24] sm:$0xf]
      %v4956 = vld [vmem:[%s16 + $0x28] sm:$0xf]
      %v4957 = vld [vmem:[%s16 + $0x2c] sm:$0xf]
      %v4958 = vld [vmem:[%s16 + $0x30] sm:$0xf]
      %v4959 = vld [vmem:[%s16 + $0x34] sm:$0xf]
      %v4960 = vld [vmem:[%s16 + $0x38] sm:$0xf]
      %v4961 = vld [vmem:[%s16 + $0x3c] sm:$0xf]
      %v4962 = vld [vmem:[%s16 + $0x40] sm:$0xf]
      %v4963 = vld [vmem:[%s16 + $0x44] sm:$0xf]
      %v4964 = vld [vmem:[%s16 + $0x48] sm:$0xf]
      %v4965 = vld [vmem:[%s16 + $0x4c] sm:$0xf]
      %v4966 = vld [vmem:[%s16 + $0x50] sm:$0xf]
      %v4967 = vld [vmem:[%s16 + $0x54] sm:$0xf]
      %v4968 = vld [vmem:[%s16 + $0x58] sm:$0xf]
      %v4969 = vld [vmem:[%s16 + $0x5c] sm:$0xf]
      %v4970 = vld [vmem:[%s16 + $0x60] sm:$0xf]
      %v4971 = vld [vmem:[%s16 + $0x64] sm:$0xf]
      %v4972 = vld [vmem:[%s16 + $0x68] sm:$0xf]
      %v4973 = vld [vmem:[%s16 + $0x6c] sm:$0xf]
      %v4974 = vld [vmem:[%s16 + $0x70] sm:$0xf]
      %v4975 = vld [vmem:[%s16 + $0x74] sm:$0xf]
      %v4976 = vld [vmem:[%s16 + $0x78] sm:$0xf]
      %v4977 = vld [vmem:[%s16 + $0x7c] sm:$0xf]
      %v5010 = vunpack.c.l.b16 %v4946
      %v5011 = vunpack.c.l.b16 %v4947
      %v5012 = vunpack.c.l.b16 %v4948
      %v5013 = vunpack.c.l.b16 %v4949
      %v5014 = vunpack.c.l.b16 %v4950
      %v5015 = vunpack.c.l.b16 %v4951
      %v5016 = vunpack.c.l.b16 %v4952
      %v5017 = vunpack.c.l.b16 %v4953
      %v5018 = vunpack.c.l.b16 %v4954
      %v5019 = vunpack.c.l.b16 %v4955
      %v5020 = vunpack.c.l.b16 %v4956
      %v5021 = vunpack.c.l.b16 %v4957
      %v5022 = vunpack.c.l.b16 %v4958
      %v5023 = vunpack.c.l.b16 %v4959
      %v5024 = vunpack.c.l.b16 %v4960
      %v5025 = vunpack.c.l.b16 %v4961
      %v5026 = vunpack.c.l.b16 %v4962
      %v5027 = vunpack.c.l.b16 %v4963
      %v5028 = vunpack.c.l.b16 %v4964
      %v5029 = vunpack.c.l.b16 %v4965
      %v5030 = vunpack.c.l.b16 %v4966
      %v5031 = vunpack.c.l.b16 %v4967
      %v5032 = vunpack.c.l.b16 %v4968
      %v5033 = vunpack.c.l.b16 %v4969
      %v5034 = vunpack.c.l.b16 %v4970
      %v5035 = vunpack.c.l.b16 %v4971
      %v5036 = vunpack.c.l.b16 %v4972
      %v5037 = vunpack.c.l.b16 %v4973
      %v5038 = vunpack.c.l.b16 %v4974
      %v5039 = vunpack.c.l.b16 %v4975
      %v5040 = vunpack.c.l.b16 %v4976
      %v5041 = vunpack.c.l.b16 %v4977
      %v5042 = vpack.c.b16 %v5011, %v5010
      %v5043 = vpack.c.b16 %v5013, %v5012
      %v5044 = vpack.c.b16 %v5015, %v5014
      %v5045 = vpack.c.b16 %v5017, %v5016
      %v5046 = vpack.c.b16 %v5019, %v5018
      %v5047 = vpack.c.b16 %v5021, %v5020
      %v5048 = vpack.c.b16 %v5023, %v5022
      %v5049 = vpack.c.b16 %v5025, %v5024
      %v5050 = vpack.c.b16 %v5027, %v5026
      %v5051 = vpack.c.b16 %v5029, %v5028
      %v5052 = vpack.c.b16 %v5031, %v5030
      %v5053 = vpack.c.b16 %v5033, %v5032
      %v5054 = vpack.c.b16 %v5035, %v5034
      %v5055 = vpack.c.b16 %v5037, %v5036
      %v5056 = vpack.c.b16 %v5039, %v5038
      %v5057 = vpack.c.b16 %v5041, %v5040
      %5074 = vmatprep.subr.bf16.mxu0 0
      %5075 = vmatpush1.bf16.msra.mxu0 %v5049
      %5076 = vmatprep.subr.bf16.mxu0 0
      %5077 = vmatpush1.bf16.msra.mxu0 %v5048
      %5078 = vmatprep.subr.bf16.mxu0 0
      %5079 = vmatpush1.bf16.msra.mxu0 %v5047
      %5080 = vmatprep.subr.bf16.mxu0 0
      %5081 = vmatpush1.bf16.msra.mxu0 %v5046
      %5082 = vmatprep.subr.bf16.mxu0 0
      %5083 = vmatpush1.bf16.msra.mxu0 %v5045
      %5084 = vmatprep.subr.bf16.mxu0 0
      %5085 = vmatpush1.bf16.msra.mxu0 %v5044
      %5086 = vmatprep.subr.bf16.mxu0 0
      %5087 = vmatpush1.bf16.msra.mxu0 %v5043
      %5088 = vmatprep.subr.bf16.mxu0 0
      %5089 = vmatpush1.bf16.msra.mxu0 %v5042
      %5090 = vmatprep.subr.bf16.mxu0 0
      %5091 = vmatpush2.bf16.msra.mxu0 %v5057
      %5092 = vmatprep.subr.bf16.mxu0 0
      %5093 = vmatpush2.bf16.msra.mxu0 %v5056
      %5094 = vmatprep.subr.bf16.mxu0 0
      %5095 = vmatpush2.bf16.msra.mxu0 %v5055
      %5096 = vmatprep.subr.bf16.mxu0 0
      %5097 = vmatpush2.bf16.msra.mxu0 %v5054
      %5098 = vmatprep.subr.bf16.mxu0 0
      %5099 = vmatpush2.bf16.msra.mxu0 %v5053
      %5100 = vmatprep.subr.bf16.mxu0 0
      %5101 = vmatpush2.bf16.msra.mxu0 %v5052
      %5102 = vmatprep.subr.bf16.mxu0 0
      %5103 = vmatpush2.bf16.msra.mxu0 %v5051
      %5104 = vmatprep.subr.bf16.mxu0 0
      %5105 = vmatpush2.bf16.msra.mxu0 %v5050
      %5106 = vmatprep.mubr.bf16.mxu0 %v3887
      %5107 = vmatmul.mubr.bf16.gmra.mxu0 %v3886
      %v5108 = vpop.f32.mrf.mxu0
      %v5109 = vadd.f32 0.0, %v5108
      %v5110 = vpop.f32.mrf.mxu0
      %v5111 = vpop.f32.mrf.mxu0
      %v5112 = vpop.f32.mrf.mxu0
      %5113 = vdwg.mxu0
      %v5114 = vpack.c.bf16 %v5109, %v5109
      %v5115 = vld [vmem:[%s22] sm:$0xf]
      %v5116 = vld [vmem:[%s22 + $0x4] sm:$0xf]
      %v5117 = vld [vmem:[%s22 + $0x8] sm:$0xf]
      %v5118 = vld [vmem:[%s22 + $0xc] sm:$0xf]
      %v5119 = vld [vmem:[%s22 + $0x10] sm:$0xf]
      %v5120 = vld [vmem:[%s22 + $0x14] sm:$0xf]
      %v5121 = vld [vmem:[%s22 + $0x18] sm:$0xf]
      %v5122 = vld [vmem:[%s22 + $0x1c] sm:$0xf]
      %v5123 = vld [vmem:[%s22 + $0x20] sm:$0xf]
      %v5124 = vld [vmem:[%s22 + $0x24] sm:$0xf]
      %v5125 = vld [vmem:[%s22 + $0x28] sm:$0xf]
      %v5126 = vld [vmem:[%s22 + $0x2c] sm:$0xf]
      %v5127 = vld [vmem:[%s22 + $0x30] sm:$0xf]
      %v5128 = vld [vmem:[%s22 + $0x34] sm:$0xf]
      %v5129 = vld [vmem:[%s22 + $0x38] sm:$0xf]
      %v5130 = vld [vmem:[%s22 + $0x3c] sm:$0xf]
      %v5131 = vld [vmem:[%s22 + $0x40] sm:$0xf]
      %v5132 = vld [vmem:[%s22 + $0x44] sm:$0xf]
      %v5133 = vld [vmem:[%s22 + $0x48] sm:$0xf]
      %v5134 = vld [vmem:[%s22 + $0x4c] sm:$0xf]
      %v5135 = vld [vmem:[%s22 + $0x50] sm:$0xf]
      %v5136 = vld [vmem:[%s22 + $0x54] sm:$0xf]
      %v5137 = vld [vmem:[%s22 + $0x58] sm:$0xf]
      %v5138 = vld [vmem:[%s22 + $0x5c] sm:$0xf]
      %v5139 = vld [vmem:[%s22 + $0x60] sm:$0xf]
      %v5140 = vld [vmem:[%s22 + $0x64] sm:$0xf]
      %v5141 = vld [vmem:[%s22 + $0x68] sm:$0xf]
      %v5142 = vld [vmem:[%s22 + $0x6c] sm:$0xf]
      %v5143 = vld [vmem:[%s22 + $0x70] sm:$0xf]
      %v5144 = vld [vmem:[%s22 + $0x74] sm:$0xf]
      %v5145 = vld [vmem:[%s22 + $0x78] sm:$0xf]
      %v5146 = vld [vmem:[%s22 + $0x7c] sm:$0xf]
      %v5179 = vunpack.c.l.b16 %v5115
      %v5180 = vunpack.c.l.b16 %v5116
      %v5181 = vunpack.c.l.b16 %v5117
      %v5182 = vunpack.c.l.b16 %v5118
      %v5183 = vunpack.c.l.b16 %v5119
      %v5184 = vunpack.c.l.b16 %v5120
      %v5185 = vunpack.c.l.b16 %v5121
      %v5186 = vunpack.c.l.b16 %v5122
      %v5187 = vunpack.c.l.b16 %v5123
      %v5188 = vunpack.c.l.b16 %v5124
      %v5189 = vunpack.c.l.b16 %v5125
      %v5190 = vunpack.c.l.b16 %v5126
      %v5191 = vunpack.c.l.b16 %v5127
      %v5192 = vunpack.c.l.b16 %v5128
      %v5193 = vunpack.c.l.b16 %v5129
      %v5194 = vunpack.c.l.b16 %v5130
      %v5195 = vunpack.c.l.b16 %v5131
      %v5196 = vunpack.c.l.b16 %v5132
      %v5197 = vunpack.c.l.b16 %v5133
      %v5198 = vunpack.c.l.b16 %v5134
      %v5199 = vunpack.c.l.b16 %v5135
      %v5200 = vunpack.c.l.b16 %v5136
      %v5201 = vunpack.c.l.b16 %v5137
      %v5202 = vunpack.c.l.b16 %v5138
      %v5203 = vunpack.c.l.b16 %v5139
      %v5204 = vunpack.c.l.b16 %v5140
      %v5205 = vunpack.c.l.b16 %v5141
      %v5206 = vunpack.c.l.b16 %v5142
      %v5207 = vunpack.c.l.b16 %v5143
      %v5208 = vunpack.c.l.b16 %v5144
      %v5209 = vunpack.c.l.b16 %v5145
      %v5210 = vunpack.c.l.b16 %v5146
      %v5211 = vpack.c.b16 %v5180, %v5179
      %v5212 = vpack.c.b16 %v5182, %v5181
      %v5213 = vpack.c.b16 %v5184, %v5183
      %v5214 = vpack.c.b16 %v5186, %v5185
      %v5215 = vpack.c.b16 %v5188, %v5187
      %v5216 = vpack.c.b16 %v5190, %v5189
      %v5217 = vpack.c.b16 %v5192, %v5191
      %v5218 = vpack.c.b16 %v5194, %v5193
      %v5219 = vpack.c.b16 %v5196, %v5195
      %v5220 = vpack.c.b16 %v5198, %v5197
      %v5221 = vpack.c.b16 %v5200, %v5199
      %v5222 = vpack.c.b16 %v5202, %v5201
      %v5223 = vpack.c.b16 %v5204, %v5203
      %v5224 = vpack.c.b16 %v5206, %v5205
      %v5225 = vpack.c.b16 %v5208, %v5207
      %v5226 = vpack.c.b16 %v5210, %v5209
      %v5228 = vsel %vm3585, %v5211, 0
      %v5231 = vsel %vm3585, %v5212, 0
      %v5234 = vsel %vm3585, %v5213, 0
      %v5237 = vsel %vm3585, %v5214, 0
      %v5240 = vsel %vm3585, %v5215, 0
      %v5243 = vsel %vm3585, %v5216, 0
      %v5246 = vsel %vm3585, %v5217, 0
      %v5249 = vsel %vm3585, %v5218, 0
      %v5252 = vsel %vm3585, %v5219, 0
      %v5255 = vsel %vm3585, %v5220, 0
      %v5258 = vsel %vm3585, %v5221, 0
      %v5261 = vsel %vm3585, %v5222, 0
      %v5264 = vsel %vm3585, %v5223, 0
      %v5267 = vsel %vm3585, %v5224, 0
      %v5270 = vsel %vm3585, %v5225, 0
      %v5273 = vsel %vm3585, %v5226, 0
      %v5276 = vsel %vm3589, %v5114, 0
      %5278 = vmatprep.subr.bf16.mxu0 0
      %5279 = vmatpush1.bf16.msra.mxu0 0
      %5280 = vmatprep.subr.bf16.mxu0 0
      %5281 = vmatpush1.bf16.msra.mxu0 0
      %5282 = vmatprep.subr.bf16.mxu0 0
      %5283 = vmatpush1.bf16.msra.mxu0 0
      %5284 = vmatprep.subr.bf16.mxu0 0
      %5285 = vmatpush1.bf16.msra.mxu0 0
      %5286 = vmatprep.subr.bf16.mxu0 0
      %5287 = vmatpush1.bf16.msra.mxu0 0
      %5288 = vmatprep.subr.bf16.mxu0 0
      %5289 = vmatpush1.bf16.msra.mxu0 0
      %5290 = vmatprep.subr.bf16.mxu0 0
      %5291 = vmatpush1.bf16.msra.mxu0 0
      %5292 = vmatprep.subr.bf16.mxu0 0
      %5293 = vmatpush1.bf16.msra.mxu0 %v5276
      %5294 = vmatprep.subr.bf16.mxu0 0
      %5295 = vmatpush2.bf16.msra.mxu0 0
      %5296 = vmatprep.subr.bf16.mxu0 0
      %5297 = vmatpush2.bf16.msra.mxu0 0
      %5298 = vmatprep.subr.bf16.mxu0 0
      %5299 = vmatpush2.bf16.msra.mxu0 0
      %5300 = vmatprep.subr.bf16.mxu0 0
      %5301 = vmatpush2.bf16.msra.mxu0 0
      %5302 = vmatprep.subr.bf16.mxu0 0
      %5303 = vmatpush2.bf16.msra.mxu0 0
      %5304 = vmatprep.subr.bf16.mxu0 0
      %5305 = vmatpush2.bf16.msra.mxu0 0
      %5306 = vmatprep.subr.bf16.mxu0 0
      %5307 = vmatpush2.bf16.msra.mxu0 0
      %5308 = vmatprep.subr.bf16.mxu0 0
      %5309 = vmatpush2.bf16.msra.mxu0 0
      %5310 = vmatprep.mubr.bf16.mxu0 0
      %5311 = vmatmul.mubr.bf16.gmra.mxu0 %v5228
      %v5312 = vpop.f32.mrf.mxu0
      %v5313 = vadd.f32 0.0, %v5312
      %v5314 = vpop.f32.mrf.mxu0
      %v5315 = vpop.f32.mrf.mxu0
      %v5316 = vadd.f32 0.0, %v5315
      %v5317 = vpop.f32.mrf.mxu0
      %5318 = vmatprep.mubr.bf16.mxu0 0
      %5319 = vmatmul.mubr.bf16.gmra.mxu0 %v5231
      %v5320 = vpop.f32.mrf.mxu0
      %v5321 = vadd.f32 0.0, %v5320
      %v5322 = vpop.f32.mrf.mxu0
      %v5323 = vpop.f32.mrf.mxu0
      %v5324 = vadd.f32 0.0, %v5323
      %v5325 = vpop.f32.mrf.mxu0
      %5326 = vmatprep.mubr.bf16.mxu0 0
      %5327 = vmatmul.mubr.bf16.gmra.mxu0 %v5234
      %v5328 = vpop.f32.mrf.mxu0
      %v5329 = vadd.f32 0.0, %v5328
      %v5330 = vpop.f32.mrf.mxu0
      %v5331 = vpop.f32.mrf.mxu0
      %v5332 = vadd.f32 0.0, %v5331
      %v5333 = vpop.f32.mrf.mxu0
      %5334 = vmatprep.mubr.bf16.mxu0 0
      %5335 = vmatmul.mubr.bf16.gmra.mxu0 %v5237
      %v5336 = vpop.f32.mrf.mxu0
      %v5337 = vadd.f32 0.0, %v5336
      %v5338 = vpop.f32.mrf.mxu0
      %v5339 = vpop.f32.mrf.mxu0
      %v5340 = vadd.f32 0.0, %v5339
      %v5341 = vpop.f32.mrf.mxu0
      %5342 = vmatprep.mubr.bf16.mxu0 0
      %5343 = vmatmul.mubr.bf16.gmra.mxu0 %v5240
      %v5344 = vpop.f32.mrf.mxu0
      %v5345 = vadd.f32 0.0, %v5344
      %v5346 = vpop.f32.mrf.mxu0
      %v5347 = vpop.f32.mrf.mxu0
      %v5348 = vadd.f32 0.0, %v5347
      %v5349 = vpop.f32.mrf.mxu0
      %5350 = vmatprep.mubr.bf16.mxu0 0
      %5351 = vmatmul.mubr.bf16.gmra.mxu0 %v5243
      %v5352 = vpop.f32.mrf.mxu0
      %v5353 = vadd.f32 0.0, %v5352
      %v5354 = vpop.f32.mrf.mxu0
      %v5355 = vpop.f32.mrf.mxu0
      %v5356 = vadd.f32 0.0, %v5355
      %v5357 = vpop.f32.mrf.mxu0
      %5358 = vmatprep.mubr.bf16.mxu0 0
      %5359 = vmatmul.mubr.bf16.gmra.mxu0 %v5246
      %v5360 = vpop.f32.mrf.mxu0
      %v5361 = vadd.f32 0.0, %v5360
      %v5362 = vpop.f32.mrf.mxu0
      %v5363 = vpop.f32.mrf.mxu0
      %v5364 = vadd.f32 0.0, %v5363
      %v5365 = vpop.f32.mrf.mxu0
      %5366 = vmatprep.mubr.bf16.mxu0 0
      %5367 = vmatmul.mubr.bf16.gmra.mxu0 %v5249
      %v5368 = vpop.f32.mrf.mxu0
      %v5369 = vadd.f32 0.0, %v5368
      %v5370 = vpop.f32.mrf.mxu0
      %v5371 = vpop.f32.mrf.mxu0
      %v5372 = vadd.f32 0.0, %v5371
      %v5373 = vpop.f32.mrf.mxu0
      %5374 = vmatprep.mubr.bf16.mxu0 0
      %5375 = vmatmul.mubr.bf16.gmra.mxu0 %v5252
      %v5376 = vpop.f32.mrf.mxu0
      %v5377 = vadd.f32 0.0, %v5376
      %v5378 = vpop.f32.mrf.mxu0
      %v5379 = vpop.f32.mrf.mxu0
      %v5380 = vadd.f32 0.0, %v5379
      %v5381 = vpop.f32.mrf.mxu0
      %5382 = vmatprep.mubr.bf16.mxu0 0
      %5383 = vmatmul.mubr.bf16.gmra.mxu0 %v5255
      %v5384 = vpop.f32.mrf.mxu0
      %v5385 = vadd.f32 0.0, %v5384
      %v5386 = vpop.f32.mrf.mxu0
      %v5387 = vpop.f32.mrf.mxu0
      %v5388 = vadd.f32 0.0, %v5387
      %v5389 = vpop.f32.mrf.mxu0
      %5390 = vmatprep.mubr.bf16.mxu0 0
      %5391 = vmatmul.mubr.bf16.gmra.mxu0 %v5258
      %v5392 = vpop.f32.mrf.mxu0
      %v5393 = vadd.f32 0.0, %v5392
      %v5394 = vpop.f32.mrf.mxu0
      %v5395 = vpop.f32.mrf.mxu0
      %v5396 = vadd.f32 0.0, %v5395
      %v5397 = vpop.f32.mrf.mxu0
      %5398 = vmatprep.mubr.bf16.mxu0 0
      %5399 = vmatmul.mubr.bf16.gmra.mxu0 %v5261
      %v5400 = vpop.f32.mrf.mxu0
      %v5401 = vadd.f32 0.0, %v5400
      %v5402 = vpop.f32.mrf.mxu0
      %v5403 = vpop.f32.mrf.mxu0
      %v5404 = vadd.f32 0.0, %v5403
      %v5405 = vpop.f32.mrf.mxu0
      %5406 = vmatprep.mubr.bf16.mxu0 0
      %5407 = vmatmul.mubr.bf16.gmra.mxu0 %v5264
      %v5408 = vpop.f32.mrf.mxu0
      %v5409 = vadd.f32 0.0, %v5408
      %v5410 = vpop.f32.mrf.mxu0
      %v5411 = vpop.f32.mrf.mxu0
      %v5412 = vadd.f32 0.0, %v5411
      %v5413 = vpop.f32.mrf.mxu0
      %5414 = vmatprep.mubr.bf16.mxu0 0
      %5415 = vmatmul.mubr.bf16.gmra.mxu0 %v5267
      %v5416 = vpop.f32.mrf.mxu0
      %v5417 = vadd.f32 0.0, %v5416
      %v5418 = vpop.f32.mrf.mxu0
      %v5419 = vpop.f32.mrf.mxu0
      %v5420 = vadd.f32 0.0, %v5419
      %v5421 = vpop.f32.mrf.mxu0
      %5422 = vmatprep.mubr.bf16.mxu0 0
      %5423 = vmatmul.mubr.bf16.gmra.mxu0 %v5270
      %v5424 = vpop.f32.mrf.mxu0
      %v5425 = vadd.f32 0.0, %v5424
      %v5426 = vpop.f32.mrf.mxu0
      %v5427 = vpop.f32.mrf.mxu0
      %v5428 = vadd.f32 0.0, %v5427
      %v5429 = vpop.f32.mrf.mxu0
      %5430 = vmatprep.mubr.bf16.mxu0 0
      %5431 = vmatmul.mubr.bf16.gmra.mxu0 %v5273
      %v5432 = vpop.f32.mrf.mxu0
      %v5433 = vadd.f32 0.0, %v5432
      %v5434 = vpop.f32.mrf.mxu0
      %v5435 = vpop.f32.mrf.mxu0
      %v5436 = vadd.f32 0.0, %v5435
      %v5437 = vpop.f32.mrf.mxu0
      %5438 = vdwg.mxu0
      %v5439 = vadd.f32 %v4914, %v5313
      %v5440 = vadd.f32 %v4915, %v5316
      %v5441 = vadd.f32 %v4916, %v5321
      %v5442 = vadd.f32 %v4917, %v5324
      %v5443 = vadd.f32 %v4918, %v5329
      %v5444 = vadd.f32 %v4919, %v5332
      %v5445 = vadd.f32 %v4920, %v5337
      %v5446 = vadd.f32 %v4921, %v5340
      %v5447 = vadd.f32 %v4922, %v5345
      %v5448 = vadd.f32 %v4923, %v5348
      %v5449 = vadd.f32 %v4924, %v5353
      %v5450 = vadd.f32 %v4925, %v5356
      %v5451 = vadd.f32 %v4926, %v5361
      %v5452 = vadd.f32 %v4927, %v5364
      %v5453 = vadd.f32 %v4928, %v5369
      %v5454 = vadd.f32 %v4929, %v5372
      %v5455 = vadd.f32 %v4930, %v5377
      %v5456 = vadd.f32 %v4931, %v5380
      %v5457 = vadd.f32 %v4932, %v5385
      %v5458 = vadd.f32 %v4933, %v5388
      %v5459 = vadd.f32 %v4934, %v5393
      %v5460 = vadd.f32 %v4935, %v5396
      %v5461 = vadd.f32 %v4936, %v5401
      %v5462 = vadd.f32 %v4937, %v5404
      %v5463 = vadd.f32 %v4938, %v5409
      %v5464 = vadd.f32 %v4939, %v5412
      %v5465 = vadd.f32 %v4940, %v5417
      %v5466 = vadd.f32 %v4941, %v5420
      %v5467 = vadd.f32 %v4942, %v5425
      %v5468 = vadd.f32 %v4943, %v5428
      %v5469 = vadd.f32 %v4944, %v5433
      %v5470 = vadd.f32 %v4945, %v5436
      %v5471 = vld [vmem:[%s17] sm:$0x1]
      %v5473 = vlaneseq
      %v5474 = vshrl.u32 %v5473, 7
      %v5475 = vsub.s32 0, %v5474
      %v5476 = vrot.slane %v5471, %v5475
      %v5478 = vadd.f32 %v5439, %v5476
      %v5479 = vadd.f32 %v5440, %v5476
      %v5480 = vadd.f32 %v5441, %v5476
      %v5481 = vadd.f32 %v5442, %v5476
      %v5482 = vadd.f32 %v5443, %v5476
      %v5483 = vadd.f32 %v5444, %v5476
      %v5484 = vadd.f32 %v5445, %v5476
      %v5485 = vadd.f32 %v5446, %v5476
      %v5486 = vadd.f32 %v5447, %v5476
      %v5487 = vadd.f32 %v5448, %v5476
      %v5488 = vadd.f32 %v5449, %v5476
      %v5489 = vadd.f32 %v5450, %v5476
      %v5490 = vadd.f32 %v5451, %v5476
      %v5491 = vadd.f32 %v5452, %v5476
      %v5492 = vadd.f32 %v5453, %v5476
      %v5493 = vadd.f32 %v5454, %v5476
      %v5494 = vadd.f32 %v5455, %v5476
      %v5495 = vadd.f32 %v5456, %v5476
      %v5496 = vadd.f32 %v5457, %v5476
      %v5497 = vadd.f32 %v5458, %v5476
      %v5498 = vadd.f32 %v5459, %v5476
      %v5499 = vadd.f32 %v5460, %v5476
      %v5500 = vadd.f32 %v5461, %v5476
      %v5501 = vadd.f32 %v5462, %v5476
      %v5502 = vadd.f32 %v5463, %v5476
      %v5503 = vadd.f32 %v5464, %v5476
      %v5504 = vadd.f32 %v5465, %v5476
      %v5505 = vadd.f32 %v5466, %v5476
      %v5506 = vadd.f32 %v5467, %v5476
      %v5507 = vadd.f32 %v5468, %v5476
      %v5508 = vadd.f32 %v5469, %v5476
      %v5509 = vadd.f32 %v5470, %v5476
      %v5510 = vmax.f32 %v5478, 0.0
      %v5511 = vmax.f32 %v5479, 0.0
      %v5512 = vmax.f32 %v5480, 0.0
      %v5513 = vmax.f32 %v5481, 0.0
      %v5514 = vmax.f32 %v5482, 0.0
      %v5515 = vmax.f32 %v5483, 0.0
      %v5516 = vmax.f32 %v5484, 0.0
      %v5517 = vmax.f32 %v5485, 0.0
      %v5518 = vmax.f32 %v5486, 0.0
      %v5519 = vmax.f32 %v5487, 0.0
      %v5520 = vmax.f32 %v5488, 0.0
      %v5521 = vmax.f32 %v5489, 0.0
      %v5522 = vmax.f32 %v5490, 0.0
      %v5523 = vmax.f32 %v5491, 0.0
      %v5524 = vmax.f32 %v5492, 0.0
      %v5525 = vmax.f32 %v5493, 0.0
      %v5526 = vmax.f32 %v5494, 0.0
      %v5527 = vmax.f32 %v5495, 0.0
      %v5528 = vmax.f32 %v5496, 0.0
      %v5529 = vmax.f32 %v5497, 0.0
      %v5530 = vmax.f32 %v5498, 0.0
      %v5531 = vmax.f32 %v5499, 0.0
      %v5532 = vmax.f32 %v5500, 0.0
      %v5533 = vmax.f32 %v5501, 0.0
      %v5534 = vmax.f32 %v5502, 0.0
      %v5535 = vmax.f32 %v5503, 0.0
      %v5536 = vmax.f32 %v5504, 0.0
      %v5537 = vmax.f32 %v5505, 0.0
      %v5538 = vmax.f32 %v5506, 0.0
      %v5539 = vmax.f32 %v5507, 0.0
      %v5540 = vmax.f32 %v5508, 0.0
      %v5541 = vmax.f32 %v5509, 0.0
      %v5542 = vpack.c.bf16 %v5511, %v5510
      %v5543 = vpack.c.bf16 %v5513, %v5512
      %v5544 = vpack.c.bf16 %v5515, %v5514
      %v5545 = vpack.c.bf16 %v5517, %v5516
      %v5546 = vpack.c.bf16 %v5519, %v5518
      %v5547 = vpack.c.bf16 %v5521, %v5520
      %v5548 = vpack.c.bf16 %v5523, %v5522
      %v5549 = vpack.c.bf16 %v5525, %v5524
      %v5550 = vpack.c.bf16 %v5527, %v5526
      %v5551 = vpack.c.bf16 %v5529, %v5528
      %v5552 = vpack.c.bf16 %v5531, %v5530
      %v5553 = vpack.c.bf16 %v5533, %v5532
      %v5554 = vpack.c.bf16 %v5535, %v5534
      %v5555 = vpack.c.bf16 %v5537, %v5536
      %v5556 = vpack.c.bf16 %v5539, %v5538
      %v5557 = vpack.c.bf16 %v5541, %v5540
      %v5558 = vld [vmem:[%s18] sm:$0x3]
      %v5559 = vld [vmem:[%s19] sm:$0xf]
      %5561 = vset.pattern.permute.xlu0 0
      %5562 = vperm.xlu0 %5561, %v5559
      %v5563 = vpop.permute.xlu0 %5562
      %5565 = vmatprep.subr.bf16.mxu0 0
      %5566 = vmatpush1.bf16.xpose.msra.mxu0 %v5549
      %5567 = vmatprep.subr.bf16.mxu0 0
      %5568 = vmatpush1.bf16.xpose.msra.mxu0 %v5548
      %5569 = vmatprep.subr.bf16.mxu0 0
      %5570 = vmatpush1.bf16.xpose.msra.mxu0 %v5547
      %5571 = vmatprep.subr.bf16.mxu0 0
      %5572 = vmatpush1.bf16.xpose.msra.mxu0 %v5546
      %5573 = vmatprep.subr.bf16.mxu0 0
      %5574 = vmatpush1.bf16.xpose.msra.mxu0 %v5545
      %5575 = vmatprep.subr.bf16.mxu0 0
      %5576 = vmatpush1.bf16.xpose.msra.mxu0 %v5544
      %5577 = vmatprep.subr.bf16.mxu0 0
      %5578 = vmatpush1.bf16.xpose.msra.mxu0 %v5543
      %5579 = vmatprep.subr.bf16.mxu0 0
      %5580 = vmatpush1.bf16.xpose.msra.mxu0 %v5542
      %5581 = vmatprep.subr.bf16.mxu0 0
      %5582 = vmatpush2.bf16.xpose.msra.mxu0 %v5557
      %5583 = vmatprep.subr.bf16.mxu0 0
      %5584 = vmatpush2.bf16.xpose.msra.mxu0 %v5556
      %5585 = vmatprep.subr.bf16.mxu0 0
      %5586 = vmatpush2.bf16.xpose.msra.mxu0 %v5555
      %5587 = vmatprep.subr.bf16.mxu0 0
      %5588 = vmatpush2.bf16.xpose.msra.mxu0 %v5554
      %5589 = vmatprep.subr.bf16.mxu0 0
      %5590 = vmatpush2.bf16.xpose.msra.mxu0 %v5553
      %5591 = vmatprep.subr.bf16.mxu0 0
      %5592 = vmatpush2.bf16.xpose.msra.mxu0 %v5552
      %5593 = vmatprep.subr.bf16.mxu0 0
      %5594 = vmatpush2.bf16.xpose.msra.mxu0 %v5551
      %5595 = vmatprep.subr.bf16.mxu0 0
      %5596 = vmatpush2.bf16.xpose.msra.mxu0 %v5550
      %5597 = vmatprep.mubr.bf16.mxu0 0
      %5598 = vmatmul.mubr.bf16.gmra.mxu0 %v5558
      %v5599 = vpop.f32.mrf.mxu0
      %v5600 = vadd.f32 %v5563, %v5599
      %v5601 = vpop.f32.mrf.mxu0
      %v5602 = vadd.f32 %v5563, %v5601
      %v5603 = vpop.f32.mrf.mxu0
      %v5604 = vpop.f32.mrf.mxu0
      %5605 = vdwg.mxu0
      %v5606 = vpack.c.bf16 %v5600, %v5600
      %v5607 = vpack.c.bf16 %v5602, %v5602
      %v5608 = vld [vmem:[%s23] sm:$0xff]
      %v5609 = vld [vmem:[%s23 + $0x8] sm:$0xff]
      %v5610 = vld [vmem:[%s23 + $0x10] sm:$0xff]
      %v5611 = vld [vmem:[%s23 + $0x18] sm:$0xff]
      %v5612 = vld [vmem:[%s23 + $0x20] sm:$0xff]
      %v5613 = vld [vmem:[%s23 + $0x28] sm:$0xff]
      %v5614 = vld [vmem:[%s23 + $0x30] sm:$0xff]
      %v5615 = vld [vmem:[%s23 + $0x38] sm:$0xff]
      %v5616 = vld [vmem:[%s23 + $0x40] sm:$0xff]
      %v5617 = vld [vmem:[%s23 + $0x48] sm:$0xff]
      %v5618 = vld [vmem:[%s23 + $0x50] sm:$0xff]
      %v5619 = vld [vmem:[%s23 + $0x58] sm:$0xff]
      %v5620 = vld [vmem:[%s23 + $0x60] sm:$0xff]
      %v5621 = vld [vmem:[%s23 + $0x68] sm:$0xff]
      %v5622 = vld [vmem:[%s23 + $0x70] sm:$0xff]
      %v5623 = vld [vmem:[%s23 + $0x78] sm:$0xff]
      %v5624 = vld [vmem:[%s23 + $0x80] sm:$0xff]
      %v5625 = vld [vmem:[%s23 + $0x88] sm:$0xff]
      %v5626 = vld [vmem:[%s23 + $0x90] sm:$0xff]
      %v5627 = vld [vmem:[%s23 + $0x98] sm:$0xff]
      %v5628 = vld [vmem:[%s23 + $0xa0] sm:$0xff]
      %v5629 = vld [vmem:[%s23 + $0xa8] sm:$0xff]
      %v5630 = vld [vmem:[%s23 + $0xb0] sm:$0xff]
      %v5631 = vld [vmem:[%s23 + $0xb8] sm:$0xff]
      %v5632 = vld [vmem:[%s23 + $0xc0] sm:$0xff]
      %v5633 = vld [vmem:[%s23 + $0xc8] sm:$0xff]
      %v5634 = vld [vmem:[%s23 + $0xd0] sm:$0xff]
      %v5635 = vld [vmem:[%s23 + $0xd8] sm:$0xff]
      %v5636 = vld [vmem:[%s23 + $0xe0] sm:$0xff]
      %v5637 = vld [vmem:[%s23 + $0xe8] sm:$0xff]
      %v5638 = vld [vmem:[%s23 + $0xf0] sm:$0xff]
      %v5639 = vld [vmem:[%s23 + $0xf8] sm:$0xff]
      %v5640 = vld [vmem:[%s23 + $0x100] sm:$0xff]
      %v5641 = vld [vmem:[%s23 + $0x108] sm:$0xff]
      %v5642 = vld [vmem:[%s23 + $0x110] sm:$0xff]
      %v5643 = vld [vmem:[%s23 + $0x118] sm:$0xff]
      %v5644 = vld [vmem:[%s23 + $0x120] sm:$0xff]
      %v5645 = vld [vmem:[%s23 + $0x128] sm:$0xff]
      %v5646 = vld [vmem:[%s23 + $0x130] sm:$0xff]
      %v5647 = vld [vmem:[%s23 + $0x138] sm:$0xff]
      %v5648 = vld [vmem:[%s23 + $0x140] sm:$0xff]
      %v5649 = vld [vmem:[%s23 + $0x148] sm:$0xff]
      %v5650 = vld [vmem:[%s23 + $0x150] sm:$0xff]
      %v5651 = vld [vmem:[%s23 + $0x158] sm:$0xff]
      %v5652 = vld [vmem:[%s23 + $0x160] sm:$0xff]
      %v5653 = vld [vmem:[%s23 + $0x168] sm:$0xff]
      %v5654 = vld [vmem:[%s23 + $0x170] sm:$0xff]
      %v5655 = vld [vmem:[%s23 + $0x178] sm:$0xff]
      %v5656 = vld [vmem:[%s23 + $0x180] sm:$0xff]
      %v5657 = vld [vmem:[%s23 + $0x188] sm:$0xff]
      %v5658 = vld [vmem:[%s23 + $0x190] sm:$0xff]
      %v5659 = vld [vmem:[%s23 + $0x198] sm:$0xff]
      %v5660 = vld [vmem:[%s23 + $0x1a0] sm:$0xff]
      %v5661 = vld [vmem:[%s23 + $0x1a8] sm:$0xff]
      %v5662 = vld [vmem:[%s23 + $0x1b0] sm:$0xff]
      %v5663 = vld [vmem:[%s23 + $0x1b8] sm:$0xff]
      %v5664 = vld [vmem:[%s23 + $0x1c0] sm:$0xff]
      %v5665 = vld [vmem:[%s23 + $0x1c8] sm:$0xff]
      %v5666 = vld [vmem:[%s23 + $0x1d0] sm:$0xff]
      %v5667 = vld [vmem:[%s23 + $0x1d8] sm:$0xff]
      %v5668 = vld [vmem:[%s23 + $0x1e0] sm:$0xff]
      %v5669 = vld [vmem:[%s23 + $0x1e8] sm:$0xff]
      %v5670 = vld [vmem:[%s23 + $0x1f0] sm:$0xff]
      %v5671 = vld [vmem:[%s23 + $0x1f8] sm:$0xff]
      %v5672 = vld [vmem:[%s23 + $0x200] sm:$0xff]
      %v5673 = vld [vmem:[%s23 + $0x208] sm:$0xff]
      %v5674 = vld [vmem:[%s23 + $0x210] sm:$0xff]
      %v5675 = vld [vmem:[%s23 + $0x218] sm:$0xff]
      %v5676 = vld [vmem:[%s23 + $0x220] sm:$0xff]
      %v5677 = vld [vmem:[%s23 + $0x228] sm:$0xff]
      %v5678 = vld [vmem:[%s23 + $0x230] sm:$0xff]
      %v5679 = vld [vmem:[%s23 + $0x238] sm:$0xff]
      %v5680 = vld [vmem:[%s23 + $0x240] sm:$0xff]
      %v5681 = vld [vmem:[%s23 + $0x248] sm:$0xff]
      %v5682 = vld [vmem:[%s23 + $0x250] sm:$0xff]
      %v5683 = vld [vmem:[%s23 + $0x258] sm:$0xff]
      %v5684 = vld [vmem:[%s23 + $0x260] sm:$0xff]
      %v5685 = vld [vmem:[%s23 + $0x268] sm:$0xff]
      %v5686 = vld [vmem:[%s23 + $0x270] sm:$0xff]
      %v5687 = vld [vmem:[%s23 + $0x278] sm:$0xff]
      %v5688 = vld [vmem:[%s23 + $0x280] sm:$0xff]
      %v5689 = vld [vmem:[%s23 + $0x288] sm:$0xff]
      %v5690 = vld [vmem:[%s23 + $0x290] sm:$0xff]
      %v5691 = vld [vmem:[%s23 + $0x298] sm:$0xff]
      %v5692 = vld [vmem:[%s23 + $0x2a0] sm:$0xff]
      %v5693 = vld [vmem:[%s23 + $0x2a8] sm:$0xff]
      %v5694 = vld [vmem:[%s23 + $0x2b0] sm:$0xff]
      %v5695 = vld [vmem:[%s23 + $0x2b8] sm:$0xff]
      %v5696 = vld [vmem:[%s23 + $0x2c0] sm:$0xff]
      %v5697 = vld [vmem:[%s23 + $0x2c8] sm:$0xff]
      %v5698 = vld [vmem:[%s23 + $0x2d0] sm:$0xff]
      %v5699 = vld [vmem:[%s23 + $0x2d8] sm:$0xff]
      %v5700 = vld [vmem:[%s23 + $0x2e0] sm:$0xff]
      %v5701 = vld [vmem:[%s23 + $0x2e8] sm:$0xff]
      %v5702 = vld [vmem:[%s23 + $0x2f0] sm:$0xff]
      %v5703 = vld [vmem:[%s23 + $0x2f8] sm:$0xff]
      %v5704 = vld [vmem:[%s23 + $0x300] sm:$0xff]
      %v5705 = vld [vmem:[%s23 + $0x308] sm:$0xff]
      %v5706 = vld [vmem:[%s23 + $0x310] sm:$0xff]
      %v5707 = vld [vmem:[%s23 + $0x318] sm:$0xff]
      %v5708 = vld [vmem:[%s23 + $0x320] sm:$0xff]
      %v5709 = vld [vmem:[%s23 + $0x328] sm:$0xff]
      %v5710 = vld [vmem:[%s23 + $0x330] sm:$0xff]
      %v5711 = vld [vmem:[%s23 + $0x338] sm:$0xff]
      %v5712 = vld [vmem:[%s23 + $0x340] sm:$0xff]
      %v5713 = vld [vmem:[%s23 + $0x348] sm:$0xff]
      %v5714 = vld [vmem:[%s23 + $0x350] sm:$0xff]
      %v5715 = vld [vmem:[%s23 + $0x358] sm:$0xff]
      %v5716 = vld [vmem:[%s23 + $0x360] sm:$0xff]
      %v5717 = vld [vmem:[%s23 + $0x368] sm:$0xff]
      %v5718 = vld [vmem:[%s23 + $0x370] sm:$0xff]
      %v5719 = vld [vmem:[%s23 + $0x378] sm:$0xff]
      %v5720 = vld [vmem:[%s23 + $0x380] sm:$0xff]
      %v5721 = vld [vmem:[%s23 + $0x388] sm:$0xff]
      %v5722 = vld [vmem:[%s23 + $0x390] sm:$0xff]
      %v5723 = vld [vmem:[%s23 + $0x398] sm:$0xff]
      %v5724 = vld [vmem:[%s23 + $0x3a0] sm:$0xff]
      %v5725 = vld [vmem:[%s23 + $0x3a8] sm:$0xff]
      %v5726 = vld [vmem:[%s23 + $0x3b0] sm:$0xff]
      %v5727 = vld [vmem:[%s23 + $0x3b8] sm:$0xff]
      %v5728 = vld [vmem:[%s23 + $0x3c0] sm:$0xff]
      %v5729 = vld [vmem:[%s23 + $0x3c8] sm:$0xff]
      %v5730 = vld [vmem:[%s23 + $0x3d0] sm:$0xff]
      %v5731 = vld [vmem:[%s23 + $0x3d8] sm:$0xff]
      %v5732 = vld [vmem:[%s23 + $0x3e0] sm:$0xff]
      %v5733 = vld [vmem:[%s23 + $0x3e8] sm:$0xff]
      %v5734 = vld [vmem:[%s23 + $0x3f0] sm:$0xff]
      %v5735 = vld [vmem:[%s23 + $0x3f8] sm:$0xff]
      %v5864 = vunpack.c.l.b16 %v5608
      %v5865 = vunpack.c.h.b16 %v5608
      %v5866 = vunpack.c.l.b16 %v5609
      %v5867 = vunpack.c.h.b16 %v5609
      %v5868 = vunpack.c.l.b16 %v5610
      %v5869 = vunpack.c.h.b16 %v5610
      %v5870 = vunpack.c.l.b16 %v5611
      %v5871 = vunpack.c.h.b16 %v5611
      %v5872 = vunpack.c.l.b16 %v5612
      %v5873 = vunpack.c.h.b16 %v5612
      %v5874 = vunpack.c.l.b16 %v5613
      %v5875 = vunpack.c.h.b16 %v5613
      %v5876 = vunpack.c.l.b16 %v5614
      %v5877 = vunpack.c.h.b16 %v5614
      %v5878 = vunpack.c.l.b16 %v5615
      %v5879 = vunpack.c.h.b16 %v5615
      %v5880 = vunpack.c.l.b16 %v5616
      %v5881 = vunpack.c.h.b16 %v5616
      %v5882 = vunpack.c.l.b16 %v5617
      %v5883 = vunpack.c.h.b16 %v5617
      %v5884 = vunpack.c.l.b16 %v5618
      %v5885 = vunpack.c.h.b16 %v5618
      %v5886 = vunpack.c.l.b16 %v5619
      %v5887 = vunpack.c.h.b16 %v5619
      %v5888 = vunpack.c.l.b16 %v5620
      %v5889 = vunpack.c.h.b16 %v5620
      %v5890 = vunpack.c.l.b16 %v5621
      %v5891 = vunpack.c.h.b16 %v5621
      %v5892 = vunpack.c.l.b16 %v5622
      %v5893 = vunpack.c.h.b16 %v5622
      %v5894 = vunpack.c.l.b16 %v5623
      %v5895 = vunpack.c.h.b16 %v5623
      %v5896 = vunpack.c.l.b16 %v5624
      %v5897 = vunpack.c.h.b16 %v5624
      %v5898 = vunpack.c.l.b16 %v5625
      %v5899 = vunpack.c.h.b16 %v5625
      %v5900 = vunpack.c.l.b16 %v5626
      %v5901 = vunpack.c.h.b16 %v5626
      %v5902 = vunpack.c.l.b16 %v5627
      %v5903 = vunpack.c.h.b16 %v5627
      %v5904 = vunpack.c.l.b16 %v5628
      %v5905 = vunpack.c.h.b16 %v5628
      %v5906 = vunpack.c.l.b16 %v5629
      %v5907 = vunpack.c.h.b16 %v5629
      %v5908 = vunpack.c.l.b16 %v5630
      %v5909 = vunpack.c.h.b16 %v5630
      %v5910 = vunpack.c.l.b16 %v5631
      %v5911 = vunpack.c.h.b16 %v5631
      %v5912 = vunpack.c.l.b16 %v5632
      %v5913 = vunpack.c.h.b16 %v5632
      %v5914 = vunpack.c.l.b16 %v5633
      %v5915 = vunpack.c.h.b16 %v5633
      %v5916 = vunpack.c.l.b16 %v5634
      %v5917 = vunpack.c.h.b16 %v5634
      %v5918 = vunpack.c.l.b16 %v5635
      %v5919 = vunpack.c.h.b16 %v5635
      %v5920 = vunpack.c.l.b16 %v5636
      %v5921 = vunpack.c.h.b16 %v5636
      %v5922 = vunpack.c.l.b16 %v5637
      %v5923 = vunpack.c.h.b16 %v5637
      %v5924 = vunpack.c.l.b16 %v5638
      %v5925 = vunpack.c.h.b16 %v5638
      %v5926 = vunpack.c.l.b16 %v5639
      %v5927 = vunpack.c.h.b16 %v5639
      %v5928 = vunpack.c.l.b16 %v5640
      %v5929 = vunpack.c.h.b16 %v5640
      %v5930 = vunpack.c.l.b16 %v5641
      %v5931 = vunpack.c.h.b16 %v5641
      %v5932 = vunpack.c.l.b16 %v5642
      %v5933 = vunpack.c.h.b16 %v5642
      %v5934 = vunpack.c.l.b16 %v5643
      %v5935 = vunpack.c.h.b16 %v5643
      %v5936 = vunpack.c.l.b16 %v5644
      %v5937 = vunpack.c.h.b16 %v5644
      %v5938 = vunpack.c.l.b16 %v5645
      %v5939 = vunpack.c.h.b16 %v5645
      %v5940 = vunpack.c.l.b16 %v5646
      %v5941 = vunpack.c.h.b16 %v5646
      %v5942 = vunpack.c.l.b16 %v5647
      %v5943 = vunpack.c.h.b16 %v5647
      %v5944 = vunpack.c.l.b16 %v5648
      %v5945 = vunpack.c.h.b16 %v5648
      %v5946 = vunpack.c.l.b16 %v5649
      %v5947 = vunpack.c.h.b16 %v5649
      %v5948 = vunpack.c.l.b16 %v5650
      %v5949 = vunpack.c.h.b16 %v5650
      %v5950 = vunpack.c.l.b16 %v5651
      %v5951 = vunpack.c.h.b16 %v5651
      %v5952 = vunpack.c.l.b16 %v5652
      %v5953 = vunpack.c.h.b16 %v5652
      %v5954 = vunpack.c.l.b16 %v5653
      %v5955 = vunpack.c.h.b16 %v5653
      %v5956 = vunpack.c.l.b16 %v5654
      %v5957 = vunpack.c.h.b16 %v5654
      %v5958 = vunpack.c.l.b16 %v5655
      %v5959 = vunpack.c.h.b16 %v5655
      %v5960 = vunpack.c.l.b16 %v5656
      %v5961 = vunpack.c.h.b16 %v5656
      %v5962 = vunpack.c.l.b16 %v5657
      %v5963 = vunpack.c.h.b16 %v5657
      %v5964 = vunpack.c.l.b16 %v5658
      %v5965 = vunpack.c.h.b16 %v5658
      %v5966 = vunpack.c.l.b16 %v5659
      %v5967 = vunpack.c.h.b16 %v5659
      %v5968 = vunpack.c.l.b16 %v5660
      %v5969 = vunpack.c.h.b16 %v5660
      %v5970 = vunpack.c.l.b16 %v5661
      %v5971 = vunpack.c.h.b16 %v5661
      %v5972 = vunpack.c.l.b16 %v5662
      %v5973 = vunpack.c.h.b16 %v5662
      %v5974 = vunpack.c.l.b16 %v5663
      %v5975 = vunpack.c.h.b16 %v5663
      %v5976 = vunpack.c.l.b16 %v5664
      %v5977 = vunpack.c.h.b16 %v5664
      %v5978 = vunpack.c.l.b16 %v5665
      %v5979 = vunpack.c.h.b16 %v5665
      %v5980 = vunpack.c.l.b16 %v5666
      %v5981 = vunpack.c.h.b16 %v5666
      %v5982 = vunpack.c.l.b16 %v5667
      %v5983 = vunpack.c.h.b16 %v5667
      %v5984 = vunpack.c.l.b16 %v5668
      %v5985 = vunpack.c.h.b16 %v5668
      %v5986 = vunpack.c.l.b16 %v5669
      %v5987 = vunpack.c.h.b16 %v5669
      %v5988 = vunpack.c.l.b16 %v5670
      %v5989 = vunpack.c.h.b16 %v5670
      %v5990 = vunpack.c.l.b16 %v5671
      %v5991 = vunpack.c.h.b16 %v5671
      %v5992 = vunpack.c.l.b16 %v5672
      %v5993 = vunpack.c.h.b16 %v5672
      %v5994 = vunpack.c.l.b16 %v5673
      %v5995 = vunpack.c.h.b16 %v5673
      %v5996 = vunpack.c.l.b16 %v5674
      %v5997 = vunpack.c.h.b16 %v5674
      %v5998 = vunpack.c.l.b16 %v5675
      %v5999 = vunpack.c.h.b16 %v5675
      %v6000 = vunpack.c.l.b16 %v5676
      %v6001 = vunpack.c.h.b16 %v5676
      %v6002 = vunpack.c.l.b16 %v5677
      %v6003 = vunpack.c.h.b16 %v5677
      %v6004 = vunpack.c.l.b16 %v5678
      %v6005 = vunpack.c.h.b16 %v5678
      %v6006 = vunpack.c.l.b16 %v5679
      %v6007 = vunpack.c.h.b16 %v5679
      %v6008 = vunpack.c.l.b16 %v5680
      %v6009 = vunpack.c.h.b16 %v5680
      %v6010 = vunpack.c.l.b16 %v5681
      %v6011 = vunpack.c.h.b16 %v5681
      %v6012 = vunpack.c.l.b16 %v5682
      %v6013 = vunpack.c.h.b16 %v5682
      %v6014 = vunpack.c.l.b16 %v5683
      %v6015 = vunpack.c.h.b16 %v5683
      %v6016 = vunpack.c.l.b16 %v5684
      %v6017 = vunpack.c.h.b16 %v5684
      %v6018 = vunpack.c.l.b16 %v5685
      %v6019 = vunpack.c.h.b16 %v5685
      %v6020 = vunpack.c.l.b16 %v5686
      %v6021 = vunpack.c.h.b16 %v5686
      %v6022 = vunpack.c.l.b16 %v5687
      %v6023 = vunpack.c.h.b16 %v5687
      %v6024 = vunpack.c.l.b16 %v5688
      %v6025 = vunpack.c.h.b16 %v5688
      %v6026 = vunpack.c.l.b16 %v5689
      %v6027 = vunpack.c.h.b16 %v5689
      %v6028 = vunpack.c.l.b16 %v5690
      %v6029 = vunpack.c.h.b16 %v5690
      %v6030 = vunpack.c.l.b16 %v5691
      %v6031 = vunpack.c.h.b16 %v5691
      %v6032 = vunpack.c.l.b16 %v5692
      %v6033 = vunpack.c.h.b16 %v5692
      %v6034 = vunpack.c.l.b16 %v5693
      %v6035 = vunpack.c.h.b16 %v5693
      %v6036 = vunpack.c.l.b16 %v5694
      %v6037 = vunpack.c.h.b16 %v5694
      %v6038 = vunpack.c.l.b16 %v5695
      %v6039 = vunpack.c.h.b16 %v5695
      %v6040 = vunpack.c.l.b16 %v5696
      %v6041 = vunpack.c.h.b16 %v5696
      %v6042 = vunpack.c.l.b16 %v5697
      %v6043 = vunpack.c.h.b16 %v5697
      %v6044 = vunpack.c.l.b16 %v5698
      %v6045 = vunpack.c.h.b16 %v5698
      %v6046 = vunpack.c.l.b16 %v5699
      %v6047 = vunpack.c.h.b16 %v5699
      %v6048 = vunpack.c.l.b16 %v5700
      %v6049 = vunpack.c.h.b16 %v5700
      %v6050 = vunpack.c.l.b16 %v5701
      %v6051 = vunpack.c.h.b16 %v5701
      %v6052 = vunpack.c.l.b16 %v5702
      %v6053 = vunpack.c.h.b16 %v5702
      %v6054 = vunpack.c.l.b16 %v5703
      %v6055 = vunpack.c.h.b16 %v5703
      %v6056 = vunpack.c.l.b16 %v5704
      %v6057 = vunpack.c.h.b16 %v5704
      %v6058 = vunpack.c.l.b16 %v5705
      %v6059 = vunpack.c.h.b16 %v5705
      %v6060 = vunpack.c.l.b16 %v5706
      %v6061 = vunpack.c.h.b16 %v5706
      %v6062 = vunpack.c.l.b16 %v5707
      %v6063 = vunpack.c.h.b16 %v5707
      %v6064 = vunpack.c.l.b16 %v5708
      %v6065 = vunpack.c.h.b16 %v5708
      %v6066 = vunpack.c.l.b16 %v5709
      %v6067 = vunpack.c.h.b16 %v5709
      %v6068 = vunpack.c.l.b16 %v5710
      %v6069 = vunpack.c.h.b16 %v5710
      %v6070 = vunpack.c.l.b16 %v5711
      %v6071 = vunpack.c.h.b16 %v5711
      %v6072 = vunpack.c.l.b16 %v5712
      %v6073 = vunpack.c.h.b16 %v5712
      %v6074 = vunpack.c.l.b16 %v5713
      %v6075 = vunpack.c.h.b16 %v5713
      %v6076 = vunpack.c.l.b16 %v5714
      %v6077 = vunpack.c.h.b16 %v5714
      %v6078 = vunpack.c.l.b16 %v5715
      %v6079 = vunpack.c.h.b16 %v5715
      %v6080 = vunpack.c.l.b16 %v5716
      %v6081 = vunpack.c.h.b16 %v5716
      %v6082 = vunpack.c.l.b16 %v5717
      %v6083 = vunpack.c.h.b16 %v5717
      %v6084 = vunpack.c.l.b16 %v5718
      %v6085 = vunpack.c.h.b16 %v5718
      %v6086 = vunpack.c.l.b16 %v5719
      %v6087 = vunpack.c.h.b16 %v5719
      %v6088 = vunpack.c.l.b16 %v5720
      %v6089 = vunpack.c.h.b16 %v5720
      %v6090 = vunpack.c.l.b16 %v5721
      %v6091 = vunpack.c.h.b16 %v5721
      %v6092 = vunpack.c.l.b16 %v5722
      %v6093 = vunpack.c.h.b16 %v5722
      %v6094 = vunpack.c.l.b16 %v5723
      %v6095 = vunpack.c.h.b16 %v5723
      %v6096 = vunpack.c.l.b16 %v5724
      %v6097 = vunpack.c.h.b16 %v5724
      %v6098 = vunpack.c.l.b16 %v5725
      %v6099 = vunpack.c.h.b16 %v5725
      %v6100 = vunpack.c.l.b16 %v5726
      %v6101 = vunpack.c.h.b16 %v5726
      %v6102 = vunpack.c.l.b16 %v5727
      %v6103 = vunpack.c.h.b16 %v5727
      %v6104 = vunpack.c.l.b16 %v5728
      %v6105 = vunpack.c.h.b16 %v5728
      %v6106 = vunpack.c.l.b16 %v5729
      %v6107 = vunpack.c.h.b16 %v5729
      %v6108 = vunpack.c.l.b16 %v5730
      %v6109 = vunpack.c.h.b16 %v5730
      %v6110 = vunpack.c.l.b16 %v5731
      %v6111 = vunpack.c.h.b16 %v5731
      %v6112 = vunpack.c.l.b16 %v5732
      %v6113 = vunpack.c.h.b16 %v5732
      %v6114 = vunpack.c.l.b16 %v5733
      %v6115 = vunpack.c.h.b16 %v5733
      %v6116 = vunpack.c.l.b16 %v5734
      %v6117 = vunpack.c.h.b16 %v5734
      %v6118 = vunpack.c.l.b16 %v5735
      %v6119 = vunpack.c.h.b16 %v5735
      %v6120 = vpack.c.b16 %v5872, %v5864
      %v6121 = vpack.c.b16 %v5873, %v5865
      %v6122 = vpack.c.b16 %v5874, %v5866
      %v6123 = vpack.c.b16 %v5875, %v5867
      %v6124 = vpack.c.b16 %v5876, %v5868
      %v6125 = vpack.c.b16 %v5877, %v5869
      %v6126 = vpack.c.b16 %v5878, %v5870
      %v6127 = vpack.c.b16 %v5879, %v5871
      %v6128 = vpack.c.b16 %v5888, %v5880
      %v6129 = vpack.c.b16 %v5889, %v5881
      %v6130 = vpack.c.b16 %v5890, %v5882
      %v6131 = vpack.c.b16 %v5891, %v5883
      %v6132 = vpack.c.b16 %v5892, %v5884
      %v6133 = vpack.c.b16 %v5893, %v5885
      %v6134 = vpack.c.b16 %v5894, %v5886
      %v6135 = vpack.c.b16 %v5895, %v5887
      %v6136 = vpack.c.b16 %v5904, %v5896
      %v6137 = vpack.c.b16 %v5905, %v5897
      %v6138 = vpack.c.b16 %v5906, %v5898
      %v6139 = vpack.c.b16 %v5907, %v5899
      %v6140 = vpack.c.b16 %v5908, %v5900
      %v6141 = vpack.c.b16 %v5909, %v5901
      %v6142 = vpack.c.b16 %v5910, %v5902
      %v6143 = vpack.c.b16 %v5911, %v5903
      %v6144 = vpack.c.b16 %v5920, %v5912
      %v6145 = vpack.c.b16 %v5921, %v5913
      %v6146 = vpack.c.b16 %v5922, %v5914
      %v6147 = vpack.c.b16 %v5923, %v5915
      %v6148 = vpack.c.b16 %v5924, %v5916
      %v6149 = vpack.c.b16 %v5925, %v5917
      %v6150 = vpack.c.b16 %v5926, %v5918
      %v6151 = vpack.c.b16 %v5927, %v5919
      %v6152 = vpack.c.b16 %v5936, %v5928
      %v6153 = vpack.c.b16 %v5937, %v5929
      %v6154 = vpack.c.b16 %v5938, %v5930
      %v6155 = vpack.c.b16 %v5939, %v5931
      %v6156 = vpack.c.b16 %v5940, %v5932
      %v6157 = vpack.c.b16 %v5941, %v5933
      %v6158 = vpack.c.b16 %v5942, %v5934
      %v6159 = vpack.c.b16 %v5943, %v5935
      %v6160 = vpack.c.b16 %v5952, %v5944
      %v6161 = vpack.c.b16 %v5953, %v5945
      %v6162 = vpack.c.b16 %v5954, %v5946
      %v6163 = vpack.c.b16 %v5955, %v5947
      %v6164 = vpack.c.b16 %v5956, %v5948
      %v6165 = vpack.c.b16 %v5957, %v5949
      %v6166 = vpack.c.b16 %v5958, %v5950
      %v6167 = vpack.c.b16 %v5959, %v5951
      %v6168 = vpack.c.b16 %v5968, %v5960
      %v6169 = vpack.c.b16 %v5969, %v5961
      %v6170 = vpack.c.b16 %v5970, %v5962
      %v6171 = vpack.c.b16 %v5971, %v5963
      %v6172 = vpack.c.b16 %v5972, %v5964
      %v6173 = vpack.c.b16 %v5973, %v5965
      %v6174 = vpack.c.b16 %v5974, %v5966
      %v6175 = vpack.c.b16 %v5975, %v5967
      %v6176 = vpack.c.b16 %v5984, %v5976
      %v6177 = vpack.c.b16 %v5985, %v5977
      %v6178 = vpack.c.b16 %v5986, %v5978
      %v6179 = vpack.c.b16 %v5987, %v5979
      %v6180 = vpack.c.b16 %v5988, %v5980
      %v6181 = vpack.c.b16 %v5989, %v5981
      %v6182 = vpack.c.b16 %v5990, %v5982
      %v6183 = vpack.c.b16 %v5991, %v5983
      %v6184 = vpack.c.b16 %v6000, %v5992
      %v6185 = vpack.c.b16 %v6001, %v5993
      %v6186 = vpack.c.b16 %v6002, %v5994
      %v6187 = vpack.c.b16 %v6003, %v5995
      %v6188 = vpack.c.b16 %v6004, %v5996
      %v6189 = vpack.c.b16 %v6005, %v5997
      %v6190 = vpack.c.b16 %v6006, %v5998
      %v6191 = vpack.c.b16 %v6007, %v5999
      %v6192 = vpack.c.b16 %v6016, %v6008
      %v6193 = vpack.c.b16 %v6017, %v6009
      %v6194 = vpack.c.b16 %v6018, %v6010
      %v6195 = vpack.c.b16 %v6019, %v6011
      %v6196 = vpack.c.b16 %v6020, %v6012
      %v6197 = vpack.c.b16 %v6021, %v6013
      %v6198 = vpack.c.b16 %v6022, %v6014
      %v6199 = vpack.c.b16 %v6023, %v6015
      %v6200 = vpack.c.b16 %v6032, %v6024
      %v6201 = vpack.c.b16 %v6033, %v6025
      %v6202 = vpack.c.b16 %v6034, %v6026
      %v6203 = vpack.c.b16 %v6035, %v6027
      %v6204 = vpack.c.b16 %v6036, %v6028
      %v6205 = vpack.c.b16 %v6037, %v6029
      %v6206 = vpack.c.b16 %v6038, %v6030
      %v6207 = vpack.c.b16 %v6039, %v6031
      %v6208 = vpack.c.b16 %v6048, %v6040
      %v6209 = vpack.c.b16 %v6049, %v6041
      %v6210 = vpack.c.b16 %v6050, %v6042
      %v6211 = vpack.c.b16 %v6051, %v6043
      %v6212 = vpack.c.b16 %v6052, %v6044
      %v6213 = vpack.c.b16 %v6053, %v6045
      %v6214 = vpack.c.b16 %v6054, %v6046
      %v6215 = vpack.c.b16 %v6055, %v6047
      %v6216 = vpack.c.b16 %v6064, %v6056
      %v6217 = vpack.c.b16 %v6065, %v6057
      %v6218 = vpack.c.b16 %v6066, %v6058
      %v6219 = vpack.c.b16 %v6067, %v6059
      %v6220 = vpack.c.b16 %v6068, %v6060
      %v6221 = vpack.c.b16 %v6069, %v6061
      %v6222 = vpack.c.b16 %v6070, %v6062
      %v6223 = vpack.c.b16 %v6071, %v6063
      %v6224 = vpack.c.b16 %v6080, %v6072
      %v6225 = vpack.c.b16 %v6081, %v6073
      %v6226 = vpack.c.b16 %v6082, %v6074
      %v6227 = vpack.c.b16 %v6083, %v6075
      %v6228 = vpack.c.b16 %v6084, %v6076
      %v6229 = vpack.c.b16 %v6085, %v6077
      %v6230 = vpack.c.b16 %v6086, %v6078
      %v6231 = vpack.c.b16 %v6087, %v6079
      %v6232 = vpack.c.b16 %v6096, %v6088
      %v6233 = vpack.c.b16 %v6097, %v6089
      %v6234 = vpack.c.b16 %v6098, %v6090
      %v6235 = vpack.c.b16 %v6099, %v6091
      %v6236 = vpack.c.b16 %v6100, %v6092
      %v6237 = vpack.c.b16 %v6101, %v6093
      %v6238 = vpack.c.b16 %v6102, %v6094
      %v6239 = vpack.c.b16 %v6103, %v6095
      %v6240 = vpack.c.b16 %v6112, %v6104
      %v6241 = vpack.c.b16 %v6113, %v6105
      %v6242 = vpack.c.b16 %v6114, %v6106
      %v6243 = vpack.c.b16 %v6115, %v6107
      %v6244 = vpack.c.b16 %v6116, %v6108
      %v6245 = vpack.c.b16 %v6117, %v6109
      %v6246 = vpack.c.b16 %v6118, %v6110
      %v6247 = vpack.c.b16 %v6119, %v6111
      %6376 = vmatprep.subr.bf16.mxu0 %v6177
      %6377 = vmatpush1.bf16.msra.mxu0 %v6176
      %6378 = vmatprep.subr.bf16.mxu0 %v6169
      %6379 = vmatpush1.bf16.msra.mxu0 %v6168
      %6380 = vmatprep.subr.bf16.mxu0 %v6161
      %6381 = vmatpush1.bf16.msra.mxu0 %v6160
      %6382 = vmatprep.subr.bf16.mxu0 %v6153
      %6383 = vmatpush1.bf16.msra.mxu0 %v6152
      %6384 = vmatprep.subr.bf16.mxu0 %v6145
      %6385 = vmatpush1.bf16.msra.mxu0 %v6144
      %6386 = vmatprep.subr.bf16.mxu0 %v6137
      %6387 = vmatpush1.bf16.msra.mxu0 %v6136
      %6388 = vmatprep.subr.bf16.mxu0 %v6129
      %6389 = vmatpush1.bf16.msra.mxu0 %v6128
      %6390 = vmatprep.subr.bf16.mxu0 %v6121
      %6391 = vmatpush1.bf16.msra.mxu0 %v6120
      %6392 = vmatprep.subr.bf16.mxu0 %v6241
      %6393 = vmatpush2.bf16.msra.mxu0 %v6240
      %6394 = vmatprep.subr.bf16.mxu0 %v6233
      %6395 = vmatpush2.bf16.msra.mxu0 %v6232
      %6396 = vmatprep.subr.bf16.mxu0 %v6225
      %6397 = vmatpush2.bf16.msra.mxu0 %v6224
      %6398 = vmatprep.subr.bf16.mxu0 %v6217
      %6399 = vmatpush2.bf16.msra.mxu0 %v6216
      %6400 = vmatprep.subr.bf16.mxu0 %v6209
      %6401 = vmatpush2.bf16.msra.mxu0 %v6208
      %6402 = vmatprep.subr.bf16.mxu0 %v6201
      %6403 = vmatpush2.bf16.msra.mxu0 %v6200
      %6404 = vmatprep.subr.bf16.mxu0 %v6193
      %6405 = vmatpush2.bf16.msra.mxu0 %v6192
      %6406 = vmatprep.subr.bf16.mxu0 %v6185
      %6407 = vmatpush2.bf16.msra.mxu0 %v6184
      %6408 = vmatprep.mubr.bf16.mxu0 %v5607
      %6409 = vmatmul.mubr.bf16.gmra.mxu0 %v5606
      %v6410 = vpop.f32.mrf.mxu0
      %v6411 = vadd.f32 0.0, %v6410
      %v6412 = vpop.f32.mrf.mxu0
      %v6413 = vadd.f32 0.0, %v6412
      %v6414 = vpop.f32.mrf.mxu0
      %v6415 = vpop.f32.mrf.mxu0
      %6416 = vdwg.mxu0
      %6417 = vmatprep.subr.bf16.mxu0 %v6179
      %6418 = vmatpush1.bf16.msra.mxu0 %v6178
      %6419 = vmatprep.subr.bf16.mxu0 %v6171
      %6420 = vmatpush1.bf16.msra.mxu0 %v6170
      %6421 = vmatprep.subr.bf16.mxu0 %v6163
      %6422 = vmatpush1.bf16.msra.mxu0 %v6162
      %6423 = vmatprep.subr.bf16.mxu0 %v6155
      %6424 = vmatpush1.bf16.msra.mxu0 %v6154
      %6425 = vmatprep.subr.bf16.mxu0 %v6147
      %6426 = vmatpush1.bf16.msra.mxu0 %v6146
      %6427 = vmatprep.subr.bf16.mxu0 %v6139
      %6428 = vmatpush1.bf16.msra.mxu0 %v6138
      %6429 = vmatprep.subr.bf16.mxu0 %v6131
      %6430 = vmatpush1.bf16.msra.mxu0 %v6130
      %6431 = vmatprep.subr.bf16.mxu0 %v6123
      %6432 = vmatpush1.bf16.msra.mxu0 %v6122
      %6433 = vmatprep.subr.bf16.mxu0 %v6243
      %6434 = vmatpush2.bf16.msra.mxu0 %v6242
      %6435 = vmatprep.subr.bf16.mxu0 %v6235
      %6436 = vmatpush2.bf16.msra.mxu0 %v6234
      %6437 = vmatprep.subr.bf16.mxu0 %v6227
      %6438 = vmatpush2.bf16.msra.mxu0 %v6226
      %6439 = vmatprep.subr.bf16.mxu0 %v6219
      %6440 = vmatpush2.bf16.msra.mxu0 %v6218
      %6441 = vmatprep.subr.bf16.mxu0 %v6211
      %6442 = vmatpush2.bf16.msra.mxu0 %v6210
      %6443 = vmatprep.subr.bf16.mxu0 %v6203
      %6444 = vmatpush2.bf16.msra.mxu0 %v6202
      %6445 = vmatprep.subr.bf16.mxu0 %v6195
      %6446 = vmatpush2.bf16.msra.mxu0 %v6194
      %6447 = vmatprep.subr.bf16.mxu0 %v6187
      %6448 = vmatpush2.bf16.msra.mxu0 %v6186
      %6449 = vmatprep.mubr.bf16.mxu0 %v5607
      %6450 = vmatmul.mubr.bf16.gmra.mxu0 %v5606
      %v6451 = vpop.f32.mrf.mxu0
      %v6452 = vadd.f32 0.0, %v6451
      %v6453 = vpop.f32.mrf.mxu0
      %v6454 = vadd.f32 0.0, %v6453
      %v6455 = vpop.f32.mrf.mxu0
      %v6456 = vpop.f32.mrf.mxu0
      %6457 = vdwg.mxu0
      %6458 = vmatprep.subr.bf16.mxu0 %v6181
      %6459 = vmatpush1.bf16.msra.mxu0 %v6180
      %6460 = vmatprep.subr.bf16.mxu0 %v6173
      %6461 = vmatpush1.bf16.msra.mxu0 %v6172
      %6462 = vmatprep.subr.bf16.mxu0 %v6165
      %6463 = vmatpush1.bf16.msra.mxu0 %v6164
      %6464 = vmatprep.subr.bf16.mxu0 %v6157
      %6465 = vmatpush1.bf16.msra.mxu0 %v6156
      %6466 = vmatprep.subr.bf16.mxu0 %v6149
      %6467 = vmatpush1.bf16.msra.mxu0 %v6148
      %6468 = vmatprep.subr.bf16.mxu0 %v6141
      %6469 = vmatpush1.bf16.msra.mxu0 %v6140
      %6470 = vmatprep.subr.bf16.mxu0 %v6133
      %6471 = vmatpush1.bf16.msra.mxu0 %v6132
      %6472 = vmatprep.subr.bf16.mxu0 %v6125
      %6473 = vmatpush1.bf16.msra.mxu0 %v6124
      %6474 = vmatprep.subr.bf16.mxu0 %v6245
      %6475 = vmatpush2.bf16.msra.mxu0 %v6244
      %6476 = vmatprep.subr.bf16.mxu0 %v6237
      %6477 = vmatpush2.bf16.msra.mxu0 %v6236
      %6478 = vmatprep.subr.bf16.mxu0 %v6229
      %6479 = vmatpush2.bf16.msra.mxu0 %v6228
      %6480 = vmatprep.subr.bf16.mxu0 %v6221
      %6481 = vmatpush2.bf16.msra.mxu0 %v6220
      %6482 = vmatprep.subr.bf16.mxu0 %v6213
      %6483 = vmatpush2.bf16.msra.mxu0 %v6212
      %6484 = vmatprep.subr.bf16.mxu0 %v6205
      %6485 = vmatpush2.bf16.msra.mxu0 %v6204
      %6486 = vmatprep.subr.bf16.mxu0 %v6197
      %6487 = vmatpush2.bf16.msra.mxu0 %v6196
      %6488 = vmatprep.subr.bf16.mxu0 %v6189
      %6489 = vmatpush2.bf16.msra.mxu0 %v6188
      %6490 = vmatprep.mubr.bf16.mxu0 %v5607
      %6491 = vmatmul.mubr.bf16.gmra.mxu0 %v5606
      %v6492 = vpop.f32.mrf.mxu0
      %v6493 = vadd.f32 0.0, %v6492
      %v6494 = vpop.f32.mrf.mxu0
      %v6495 = vadd.f32 0.0, %v6494
      %v6496 = vpop.f32.mrf.mxu0
      %v6497 = vpop.f32.mrf.mxu0
      %6498 = vdwg.mxu0
      %6499 = vmatprep.subr.bf16.mxu0 %v6183
      %6500 = vmatpush1.bf16.msra.mxu0 %v6182
      %6501 = vmatprep.subr.bf16.mxu0 %v6175
      %6502 = vmatpush1.bf16.msra.mxu0 %v6174
      %6503 = vmatprep.subr.bf16.mxu0 %v6167
      %6504 = vmatpush1.bf16.msra.mxu0 %v6166
      %6505 = vmatprep.subr.bf16.mxu0 %v6159
      %6506 = vmatpush1.bf16.msra.mxu0 %v6158
      %6507 = vmatprep.subr.bf16.mxu0 %v6151
      %6508 = vmatpush1.bf16.msra.mxu0 %v6150
      %6509 = vmatprep.subr.bf16.mxu0 %v6143
      %6510 = vmatpush1.bf16.msra.mxu0 %v6142
      %6511 = vmatprep.subr.bf16.mxu0 %v6135
      %6512 = vmatpush1.bf16.msra.mxu0 %v6134
      %6513 = vmatprep.subr.bf16.mxu0 %v6127
      %6514 = vmatpush1.bf16.msra.mxu0 %v6126
      %6515 = vmatprep.subr.bf16.mxu0 %v6247
      %6516 = vmatpush2.bf16.msra.mxu0 %v6246
      %6517 = vmatprep.subr.bf16.mxu0 %v6239
      %6518 = vmatpush2.bf16.msra.mxu0 %v6238
      %6519 = vmatprep.subr.bf16.mxu0 %v6231
      %6520 = vmatpush2.bf16.msra.mxu0 %v6230
      %6521 = vmatprep.subr.bf16.mxu0 %v6223
      %6522 = vmatpush2.bf16.msra.mxu0 %v6222
      %6523 = vmatprep.subr.bf16.mxu0 %v6215
      %6524 = vmatpush2.bf16.msra.mxu0 %v6214
      %6525 = vmatprep.subr.bf16.mxu0 %v6207
      %6526 = vmatpush2.bf16.msra.mxu0 %v6206
      %6527 = vmatprep.subr.bf16.mxu0 %v6199
      %6528 = vmatpush2.bf16.msra.mxu0 %v6198
      %6529 = vmatprep.subr.bf16.mxu0 %v6191
      %6530 = vmatpush2.bf16.msra.mxu0 %v6190
      %6531 = vmatprep.mubr.bf16.mxu0 %v5607
      %6532 = vmatmul.mubr.bf16.gmra.mxu0 %v5606
      %v6533 = vpop.f32.mrf.mxu0
      %v6534 = vadd.f32 0.0, %v6533
      %v6535 = vpop.f32.mrf.mxu0
      %v6536 = vadd.f32 0.0, %v6535
      %v6537 = vpop.f32.mrf.mxu0
      %v6538 = vpop.f32.mrf.mxu0
      %6539 = vdwg.mxu0
      %v6548 = vcombine.low %v6411, %v6413
      %v6549 = vcombine.low %v6452, %v6454
      %v6550 = vcombine.low %v6493, %v6495
      %v6551 = vcombine.low %v6534, %v6536
      %6556 = vst [vmem:[%s737] sm:$0xff] %v6548
      %6557 = vst [vmem:[%s737 + $0x8] sm:$0xff] %v6549
      %6558 = vst [vmem:[%s737 + $0x10] sm:$0xff] %v6550
      %6559 = vst [vmem:[%s737 + $0x18] sm:$0xff] %v6551
      %p6560 = scmp.lt.s32.totalorder %s35, 1
      %s6561 = scalar_select %p6560, %s35, 1
      %s6562 = smul.addr %s6561, 8
      %s6563 = smul.addr %s6562, 4
      %s6564 = scalar_lea.vmem %s24, %s6563
      // Predicated region
      $region117: #{model_forward.1} parent=115 // pred_check
        %p6565 = pneg %p562
      $region118: #{model_forward.1} parent=115 // pred_check_branch
        %6567 = sbr.rel (%p6565) target = $region120
      $region119: #{model_forward.1} parent=115 // pred_region
        _
      $region120: #{model_forward.1} parent=115 // pred_fallthru
        _
    $region116: #{model_forward.1} parent=5 // pred_fallthru
      _
    %p6568 = scmp.le.s32.totalorder 2, %s30
    // Predicated region
    $region121: #{model_forward.1} parent=5 // pred_check
      %p6569 = pneg %p6568
    $region122: #{model_forward.1} parent=5 // pred_check_branch
      %6571 = sbr.rel (%p6569) target = $region124
    $region123: #{model_forward.1} parent=5 // pred_region
      %s6572 = ssub.s32 %s30, 2
      // Predicated region
      $region125: #{model_forward.1} parent=123 // pred_check
        %p6573 = pneg %p568
      $region126: #{model_forward.1} parent=123 // pred_check_branch
        %6575 = sbr.rel (%p6573) target = $region128
      $region127: #{model_forward.1} parent=123 // pred_region
        %p6576 = scmp.lt.s32.totalorder %s36, 1
        %s6577 = scalar_select %p6576, %s36, 1
        %s6578 = smul.addr %s6577, 8
        %s6579 = smul.addr %s6578, 4
        %s6580 = scalar_lea.vmem %s24, %s6579
      $region128: #{model_forward.1} parent=123 // pred_fallthru
        _
    $region124: #{model_forward.1} parent=5 // pred_fallthru
      _
  $region6: #{model_forward.1} parent=0 // loop_footer
    %s34 = sadd.s32 1, %s30
  $region7: #{model_forward.1} parent=0 // loop_footer_branch
    %29 = sbr.rel target = $region3
  $region8: #{model_forward.1} parent=0 // loop_exit
    _

</llo_original>
